<compile_context>
chip_gen: v5e
topology: v5e:2x2
jax: 0.10.0
libtpu: 0.0.40
codegen_flags: <defaults>
</compile_context>

<pallas_src>
from functools import partial

import numpy as np
import jax
import jax.numpy as jnp
from jax import lax
from jax.experimental import pallas as pl
from jax.experimental.pallas import tpu as pltpu


# ----------------------------------------------------------------------------
# Fused Pallas kernel
# ----------------------------------------------------------------------------
def make_fused_kernel(L, T, B, BP, H):
    def kernel(*refs):
        out_ref, xpb_s, seq_s = refs[-3], refs[-2], refs[-1]
        in_refs = refs[:-3]

        x0_ref = in_refs[0]
        pos = 1
        lstm_refs = []
        for l in range(L):
            if l == 0:
                lstm_refs.append((in_refs[pos], in_refs[pos + 1], None))
                pos += 2
            else:
                lstm_refs.append((in_refs[pos], in_refs[pos + 1], in_refs[pos + 2]))
                pos += 3
        mlp_refs = in_refs[pos:]

        # Constants built once from iota (keeps operand count down).
        lane4 = lax.broadcasted_iota(jnp.int32, (BP, 4 * H), 1)
        sig_mask = lane4 < 3 * H                       # [i,f,o] -> sigmoid, g -> tanh
        row2 = lax.broadcasted_iota(jnp.int32, (BP, 2 * H), 0)
        lane2 = lax.broadcasted_iota(jnp.int32, (BP, 2 * H), 1)
        hmask = (((row2 < B) & (lane2 < H)) |
                 ((row2 >= B) & (row2 < 2 * B) & (lane2 >= H))).astype(jnp.float32)

        hb_f32 = jnp.zeros((BP, 2 * H), jnp.float32)
        for l in range(L):
            wih_ref, whh_ref, btile_ref = lstm_refs[l]
            last_layer = (l == L - 1)

            # Hoisted input projection (bf16 MXU, f32 accumulate) + bias, once per layer.
            if l == 0:
                src = x0_ref[...]                       # already bf16; bias via ones-cols
            else:
                src = seq_s[...].astype(jnp.bfloat16)   # previous layer's sequence
            proj = jnp.dot(src, wih_ref[...], preferred_element_type=jnp.float32)
            if btile_ref is not None:
                proj = proj + btile_ref[...]            # pre-tiled bias, once (not per-step)
            xpb_s[...] = proj                           # park in VMEM scratch

            whh = whh_ref[...]                          # (2H, 4H) bf16
            hb_bf = jnp.zeros((BP, 2 * H), jnp.bfloat16)
            c = jnp.zeros((BP, H), jnp.float32)
            for t in range(T):                          # fully unrolled (T static, small)
                gates = (xpb_s[pl.ds(t * BP, BP), :]
                         + jnp.dot(hb_bf, whh, preferred_element_type=jnp.float32))
                # Lane-dense nonlinearities on the full (8,128) gates vreg, one select.
                act = jnp.where(sig_mask, jax.nn.sigmoid(gates), jnp.tanh(gates))
                i_g = act[:, 0:H]
                f_g = act[:, H:2 * H]
                o_g = act[:, 2 * H:3 * H]
                g_g = act[:, 3 * H:]
                c = f_g * c + i_g * g_g
                h = o_g * jnp.tanh(c)                                   # (BP, H) f32
                hb_f32 = jnp.concatenate([h, h], axis=1) * hmask        # block routing
                hb_bf = hb_f32.astype(jnp.bfloat16)                     # MXU operand
                if not last_layer:
                    seq_s[pl.ds(t * BP, BP), :] = hb_f32                # next layer input

        # concat(sentiment_last, price_last): block-form row-group sum.
        xm = hb_f32[:B, :] + hb_f32[B:2 * B, :]                         # (B, 2H)

        # MLP head: BN scale folded into weights, Linear-bias+BN-shift folded into shift.
        # TODO(synk): F.dropout(p=0.3) is stochastic; identity here (inference).
        for i in range(4):
            w_ref, sh_ref = mlp_refs[2 * i], mlp_refs[2 * i + 1]
            y = jnp.dot(xm.astype(jnp.bfloat16), w_ref[...],
                        preferred_element_type=jnp.float32)
            xm = jnp.maximum(y + sh_ref[...], 0.0)
        w5_ref, b5_ref = mlp_refs[8], mlp_refs[9]
        out_ref[...] = (jnp.dot(xm.astype(jnp.bfloat16), w5_ref[...],
                                preferred_element_type=jnp.float32) + b5_ref[...])

    return kernel


# ----------------------------------------------------------------------------
# One-time parameter pre-packing (hoisted out of the per-call path)
# ----------------------------------------------------------------------------
def _perm_gates(p):
    """Reorder canonical PyTorch gate blocks [i, f, g, o] -> [i, f, o, g] (axis 0)."""
    H = p.shape[0] // 4
    return jnp.concatenate([p[:2 * H], p[3 * H:], p[2 * H:3 * H]], axis=0)


def prepack_params(params, input_size, T, B):
    """Pack all weights once (bf16 for MXU operands, biases/shifts f32)."""
    H = params["lstm_sentiment"][0][1].shape[1]        # whh is (4H, H)
    L = len(params["lstm_sentiment"])
    Is, Ip = int(input_size[0]), int(input_size[1])
    K0 = Is + Ip
    K0p = max(8, -(-(K0 + 2) // 8) * 8)                # room for 2 bias-indicator columns
    BP = max(8, -(-2 * B // 8) * 8)                    # sublane-padded stacked batch

    flat = []
    for l, (ls, lp) in enumerate(zip(params["lstm_sentiment"], params["lstm_price"])):
        ws_ih, ws_hh, bs_i, bs_h = ls
        wp_ih, wp_hh, bp_i, bp_h = lp
        if l == 0:
            # Layer 0: bias folded into Wih via ones-columns of x0 (cols K0, K0+1).
            wih = jnp.zeros((K0p, 4 * H), jnp.float32)
            wih = wih.at[:Is, :].set(_perm_gates(ws_ih).T)
            wih = wih.at[Is:K0, :].set(_perm_gates(wp_ih).T)
            wih = wih.at[K0, :].set(_perm_gates(bs_i + bs_h))
            wih = wih.at[K0 + 1, :].set(_perm_gates(bp_i + bp_h))
        else:
            wih = jnp.concatenate(
                [_perm_gates(ws_ih).T, _perm_gates(wp_ih).T], axis=0)   # (2H, 4H)
        whh = jnp.concatenate(
            [_perm_gates(ws_hh).T, _perm_gates(wp_hh).T], axis=0)       # (2H, 4H)
        flat += [wih.astype(jnp.bfloat16), whh.astype(jnp.bfloat16)]
        if l > 0:
            # Layers >= 1: pre-tiled bias added ONCE to the hoisted projection.
            b_blk = jnp.zeros((BP, 4 * H), jnp.float32)
            b_blk = b_blk.at[:B, :].set(_perm_gates(bs_i + bs_h)[None, :])
            b_blk = b_blk.at[B:2 * B, :].set(_perm_gates(bp_i + bp_h)[None, :])
            flat.append(jnp.tile(b_blk, (T, 1)))                        # (T*BP, 4H) f32

    # MLP: fold BN(eval) scale into weights, Linear bias + BN shift into one shift.
    for (w, b, gamma, beta, rmean, rvar) in params["mlp"][:4]:
        s = gamma / jnp.sqrt(rvar + 1e-5)
        shift = (b - rmean) * s + beta
        flat += [(w.T * s[None, :]).astype(jnp.bfloat16),
                 shift[None, :].astype(jnp.float32)]
    w5, b5 = params["mlp"][4]
    flat += [w5.T.astype(jnp.bfloat16), b5[None, :].astype(jnp.float32)]

    meta = dict(H=int(H), L=int(L), T=int(T), B=int(B), BP=int(BP),
                Is=Is, Ip=Ip, K0=int(K0), K0p=int(K0p))
    return tuple(flat), meta


# ----------------------------------------------------------------------------
# Fused forward (Pallas).  Per-call work is only the tiny block-packed x0 build.
# ----------------------------------------------------------------------------
@partial(jax.jit,
         static_argnames=("T", "B", "BP", "Is", "Ip", "K0", "K0p", "H", "L"))
def forward_pallas(sentiment_seq, price_seq, packed, *,
                   T, B, BP, Is, Ip, K0, K0p, H, L):
    sent = sentiment_seq[..., None] if Is == 1 else sentiment_seq
    sent_t = jnp.transpose(sent, (1, 0, 2)).astype(jnp.float32)         # (T, B, Is)
    price_t = jnp.transpose(price_seq, (1, 0, 2)).astype(jnp.float32)   # (T, B, Ip)

    # Block-packed, time-major layer-0 input; cols K0 / K0+1 are ones-indicators that
    # route the (per-stack) layer-0 bias rows of the packed Wih.
    x0 = jnp.zeros((T, BP, K0p), jnp.float32)
    x0 = x0.at[:, :B, :Is].set(sent_t)
    x0 = x0.at[:, B:2 * B, Is:K0].set(price_t)
    x0 = x0.at[:, :B, K0].set(1.0)
    x0 = x0.at[:, B:2 * B, K0 + 1].set(1.0)
    x0 = x0.reshape(T * BP, K0p).astype(jnp.bfloat16)

    flat = (x0,) + tuple(packed)
    vmem = pl.BlockSpec(memory_space=pltpu.MemorySpace.VMEM)
    kernel = make_fused_kernel(L=L, T=T, B=B, BP=BP, H=H)
    return pl.pallas_call(
        kernel,
        out_shape=jax.ShapeDtypeStruct((B, 1), jnp.float32),
        in_specs=[vmem] * len(flat),
        out_specs=vmem,
        scratch_shapes=[pltpu.VMEM((T * BP, 4 * H), jnp.float32),   # projection + bias
                        pltpu.VMEM((T * BP, 2 * H), jnp.float32)],  # layer output sequence
        compiler_params=pltpu.CompilerParams(vmem_limit_bytes=32 * 1024 * 1024),
    )(*flat)


# ----------------------------------------------------------------------------
# Pure-JAX reference (canonical PyTorch layout, f32) for correctness check
# ----------------------------------------------------------------------------
def lstm_stack_ref(x_bti, layers):
    x = jnp.transpose(x_bti, (1, 0, 2))                # (T, B, I)
    for (wih, whh, bih, bhh) in layers:
        H = whh.shape[1]
        Bq = x.shape[1]
        b = (bih + bhh)[None, :]

        def step(carry, x_t, wih=wih, whh=whh, b=b, H=H):
            h, c = carry
            gates = x_t @ wih.T + h @ whh.T + b
            i_g = jax.nn.sigmoid(gates[:, :H])
            f_g = jax.nn.sigmoid(gates[:, H:2 * H])
            g_g = jnp.tanh(gates[:, 2 * H:3 * H])
            o_g = jax.nn.sigmoid(gates[:, 3 * H:])
            c = f_g * c + i_g * g_g
            h = o_g * jnp.tanh(c)
            return (h, c), h

        init = (jnp.zeros((Bq, H), jnp.float32), jnp.zeros((Bq, H), jnp.float32))
        _, hs = lax.scan(step, init, x)
        x = hs
    return x[-1]                                       # (B, H)


def mlp_ref(x, mlp_params):
    for (w, b, gamma, beta, rmean, rvar) in mlp_params[:4]:
        y = x @ w.T + b
        y = (y - rmean) / jnp.sqrt(rvar + 1e-5) * gamma + beta
        x = jnp.maximum(y, 0.0)                        # dropout (identity) + ReLU
    w5, b5 = mlp_params[4]
    return x @ w5.T + b5


def forward_ref(sentiment_seq, price_seq, params, input_size):
    if input_size[0] == 1:
        sentiment_seq = sentiment_seq[..., None]
    s_last = lstm_stack_ref(sentiment_seq, params["lstm_sentiment"])
    p_last = lstm_stack_ref(price_seq, params["lstm_price"])
    x = jnp.concatenate([s_last, p_last], axis=1)
    return mlp_ref(x, params["mlp"])


# ----------------------------------------------------------------------------
# Deterministic parameter init (shapes follow the PyTorch module __init__)
# ----------------------------------------------------------------------------
def init_lstm_canonical(key, in_size, H, L):
    layers = []
    scale = 1.0 / np.sqrt(H)
    for l in range(L):
        isz = in_size if l == 0 else H
        key, k1, k2, k3, k4 = jax.random.split(key, 5)
        wih = jax.random.uniform(k1, (4 * H, isz), jnp.float32, -scale, scale)
        whh = jax.random.uniform(k2, (4 * H, H), jnp.float32, -scale, scale)
        bih = jax.random.uniform(k3, (4 * H,), jnp.float32, -scale, scale)
        bhh = jax.random.uniform(k4, (4 * H,), jnp.float32, -scale, scale)
        layers.append((wih, whh, bih, bhh))
    return layers, key


def init_linear_bn_canonical(key, in_f, out_f, with_bn=True):
    key, k1, k2, k3, k4, k5, k6 = jax.random.split(key, 7)
    sc = 1.0 / np.sqrt(in_f)
    w = jax.random.uniform(k1, (out_f, in_f), jnp.float32, -sc, sc)
    b = jax.random.uniform(k2, (out_f,), jnp.float32, -sc, sc)
    if not with_bn:
        return (w, b), key
    gamma = jax.random.uniform(k3, (out_f,), jnp.float32, 0.5, 1.5)
    beta = jax.random.uniform(k4, (out_f,), jnp.float32, -0.5, 0.5)
    rmean = jax.random.uniform(k5, (out_f,), jnp.float32, -0.2, 0.2)
    rvar = jax.random.uniform(k6, (out_f,), jnp.float32, 0.5, 1.5)
    return (w, b, gamma, beta, rmean, rvar), key


# ----------------------------------------------------------------------------
if __name__ == "__main__":
    key = jax.random.PRNGKey(0)

    # Small cfg consistent with the module's __init__ arithmetic.
    B, T = 2, 8
    input_size = (1, 4)                 # (sentiment features, price features)
    cfg_hidden_size, cfg_hidden_layers, cfg_fc_size = 16, 1, 32
    H = cfg_hidden_size * 2             # 32
    L = cfg_hidden_layers + 2           # 3
    FC = cfg_fc_size * 2                # 64

    params = {}
    params["lstm_price"], key = init_lstm_canonical(key, input_size[1], H, L)
    params["lstm_sentiment"], key = init_lstm_canonical(key, input_size[0], H, L)

    mlp = []
    layer, key = init_linear_bn_canonical(key, 2 * H, FC); mlp.append(layer)
    layer, key = init_linear_bn_canonical(key, FC, FC); mlp.append(layer)
    layer, key = init_linear_bn_canonical(key, FC, FC); mlp.append(layer)
    layer, key = init_linear_bn_canonical(key, FC, FC); mlp.append(layer)
    layer, key = init_linear_bn_canonical(key, FC, 1, with_bn=False); mlp.append(layer)
    params["mlp"] = mlp

    # Inputs: sentiment (B, T) -> unsqueezed to (B, T, 1); price (B, T, 4).
    kx1, kx2 = jax.random.split(key)
    sentiment_seq = jax.random.normal(kx1, (B, T), jnp.float32)
    price_seq = jax.random.normal(kx2, (B, T, input_size[1]), jnp.float32)

    # One-time packing (hoisted out of the per-call path per perf review).
    packed, meta = prepack_params(params, input_size, T=T, B=B)

    out = forward_pallas(sentiment_seq, price_seq, packed, **meta)
    out = jax.block_until_ready(out)
    assert out.shape == (B, 1)

    ref = forward_ref(sentiment_seq, price_seq, params, input_size)
    # Tolerance loosened from 1e-3: MXU operands are bf16 (per perf review) and the
    # rounding compounds across the T*L = 24-step recurrence.
    np.testing.assert_allclose(np.asarray(out), np.asarray(ref),
                               rtol=5e-2, atol=5e-2)

    print("KERNEL_OK")
</pallas_src>

<mosaic_0001>
module attributes {stable_mosaic.version = 11 : i64} {
  func.func @kernel(%arg0: memref<64x8xbf16, #tpu.memory_space<vmem>>, %arg1: memref<8x128xbf16, #tpu.memory_space<vmem>>, %arg2: memref<64x128xbf16, #tpu.memory_space<vmem>>, %arg3: memref<64x128xbf16, #tpu.memory_space<vmem>>, %arg4: memref<64x128xbf16, #tpu.memory_space<vmem>>, %arg5: memref<64x128xf32, #tpu.memory_space<vmem>>, %arg6: memref<64x128xbf16, #tpu.memory_space<vmem>>, %arg7: memref<64x128xbf16, #tpu.memory_space<vmem>>, %arg8: memref<64x128xf32, #tpu.memory_space<vmem>>, %arg9: memref<64x64xbf16, #tpu.memory_space<vmem>>, %arg10: memref<1x64xf32, #tpu.memory_space<vmem>>, %arg11: memref<64x64xbf16, #tpu.memory_space<vmem>>, %arg12: memref<1x64xf32, #tpu.memory_space<vmem>>, %arg13: memref<64x64xbf16, #tpu.memory_space<vmem>>, %arg14: memref<1x64xf32, #tpu.memory_space<vmem>>, %arg15: memref<64x64xbf16, #tpu.memory_space<vmem>>, %arg16: memref<1x64xf32, #tpu.memory_space<vmem>>, %arg17: memref<64x1xbf16, #tpu.memory_space<vmem>>, %arg18: memref<1x1xf32, #tpu.memory_space<vmem>>, %arg19: memref<2x1xf32, #tpu.memory_space<vmem>>, %arg20: memref<64x128xf32, #tpu.memory_space<vmem>>, %arg21: memref<64x64xf32, #tpu.memory_space<vmem>>) attributes {dimension_semantics = [], scalar_prefetch = 0 : i64, scratch_operands = 2 : i64, tpu.core_type = #tpu.core_type<tc>} {
    %0 = tpu.iota {dimensions = array<i32: 1>} : vector<8x128xi32>
    %c96_i32 = arith.constant 96 : i32
    %1 = vector.broadcast %c96_i32 : i32 to vector<8x128xi32>
    %2 = arith.cmpi slt, %0, %1 : vector<8x128xi32>
    %3 = tpu.iota {dimensions = array<i32: 0>} : vector<8x64xi32>
    %4 = tpu.iota {dimensions = array<i32: 1>} : vector<8x64xi32>
    %c2_i32 = arith.constant 2 : i32
    %5 = vector.broadcast %c2_i32 : i32 to vector<8x64xi32>
    %6 = arith.cmpi slt, %3, %5 : vector<8x64xi32>
    %c32_i32 = arith.constant 32 : i32
    %7 = vector.broadcast %c32_i32 : i32 to vector<8x64xi32>
    %8 = arith.cmpi slt, %4, %7 : vector<8x64xi32>
    %9 = arith.andi %6, %8 : vector<8x64xi1>
    %c2_i32_0 = arith.constant 2 : i32
    %10 = vector.broadcast %c2_i32_0 : i32 to vector<8x64xi32>
    %11 = arith.cmpi sge, %3, %10 : vector<8x64xi32>
    %c4_i32 = arith.constant 4 : i32
    %12 = vector.broadcast %c4_i32 : i32 to vector<8x64xi32>
    %13 = arith.cmpi slt, %3, %12 : vector<8x64xi32>
    %14 = arith.andi %11, %13 : vector<8x64xi1>
    %c32_i32_1 = arith.constant 32 : i32
    %15 = vector.broadcast %c32_i32_1 : i32 to vector<8x64xi32>
    %16 = arith.cmpi sge, %4, %15 : vector<8x64xi32>
    %17 = arith.andi %14, %16 : vector<8x64xi1>
    %18 = arith.ori %9, %17 : vector<8x64xi1>
    %19 = arith.extui %18 : vector<8x64xi1> to vector<8x64xi32>
    %20 = arith.sitofp %19 : vector<8x64xi32> to vector<8x64xf32>
    %c0 = arith.constant 0 : index
    %c0_2 = arith.constant 0 : index
    %21 = vector.load %arg0[%c0, %c0_2] : memref<64x8xbf16, #tpu.memory_space<vmem>>, vector<64x8xbf16>
    %c0_3 = arith.constant 0 : index
    %c0_4 = arith.constant 0 : index
    %22 = vector.load %arg1[%c0_3, %c0_4] : memref<8x128xbf16, #tpu.memory_space<vmem>>, vector<8x128xbf16>
    %cst = arith.constant dense<0.000000e+00> : vector<64x128xf32>
    %23 = tpu.matmul %21, %22, %cst {dimension_numbers = #tpu.dot_dimension_numbers<[1], [0], [0], [1], [0, 0, 1, 1], [], []>} : vector<64x8xbf16>, vector<8x128xbf16>, vector<64x128xf32> -> vector<64x128xf32>
    %c0_5 = arith.constant 0 : index
    %c0_6 = arith.constant 0 : index
    %24 = vector.load %arg20[%c0_5, %c0_6] : memref<64x128xf32, #tpu.memory_space<vmem>>, vector<64x128xf32>
    tpu.vector_store %arg20[%c0_5, %c0_6], %23 {strides = array<i32>} : memref<64x128xf32, #tpu.memory_space<vmem>>, vector<64x128xf32>,
    %c0_7 = arith.constant 0 : index
    %c0_8 = arith.constant 0 : index
    %25 = vector.load %arg2[%c0_7, %c0_8] : memref<64x128xbf16, #tpu.memory_space<vmem>>, vector<64x128xbf16>
    %cst_9 = arith.constant 0.000000e+00 : bf16
    %26 = vector.broadcast %cst_9 : bf16 to vector<8x64xbf16>
    %cst_10 = arith.constant 0.000000e+00 : f32
    %27 = vector.broadcast %cst_10 : f32 to vector<8x32xf32>
    %c0_11 = arith.constant 0 : index
    %c0_12 = arith.constant 0 : index
    %28 = vector.load %arg20[%c0_11, %c0_12] : memref<64x128xf32, #tpu.memory_space<vmem>>, vector<8x128xf32>
    %cst_13 = arith.constant dense<0.000000e+00> : vector<8x128xf32>
    %29 = tpu.matmul %26, %25, %cst_13 {dimension_numbers = #tpu.dot_dimension_numbers<[1], [0], [0], [1], [0, 0, 1, 1], [], []>} : vector<8x64xbf16>, vector<64x128xbf16>, vector<8x128xf32> -> vector<8x128xf32>
    %30 = arith.addf %28, %29 : vector<8x128xf32>
    %31 = arith.negf %30 : vector<8x128xf32>
    %32 = math.exp %31 : vector<8x128xf32>
    %cst_14 = arith.constant 1.000000e+00 : f32
    %33 = vector.broadcast %cst_14 : f32 to vector<8x128xf32>
    %34 = arith.addf %33, %32 : vector<8x128xf32>
    %35 = arith.divf %33, %34 : vector<8x128xf32>
    %36 = math.tanh %30 : vector<8x128xf32>
    %37 = arith.select %2, %35, %36 : vector<8x128xi1>, vector<8x128xf32>
    %38 = vector.extract_strided_slice %37 {offsets = [0, 0], sizes = [8, 32], strides = [1, 1]} : vector<8x128xf32> to vector<8x32xf32>
    %39 = vector.extract_strided_slice %37 {offsets = [0, 32], sizes = [8, 32], strides = [1, 1]} : vector<8x128xf32> to vector<8x32xf32>
    %40 = vector.extract_strided_slice %37 {offsets = [0, 64], sizes = [8, 32], strides = [1, 1]} : vector<8x128xf32> to vector<8x32xf32>
    %41 = vector.extract_strided_slice %37 {offsets = [0, 96], sizes = [8, 32], strides = [1, 1]} : vector<8x128xf32> to vector<8x32xf32>
    %42 = arith.mulf %39, %27 : vector<8x32xf32>
    %43 = arith.mulf %38, %41 : vector<8x32xf32>
    %44 = arith.addf %42, %43 : vector<8x32xf32>
    %45 = math.tanh %44 : vector<8x32xf32>
    %46 = arith.mulf %40, %45 : vector<8x32xf32>
    %47 = tpu.concatenate %46, %46 in 1 : vector<8x32xf32>, vector<8x32xf32> -> vector<8x64xf32>
    %48 = arith.mulf %47, %20 : vector<8x64xf32>
    %49 = arith.truncf %48 : vector<8x64xf32> to vector<8x64xbf16>
    %c0_15 = arith.constant 0 : index
    %c0_16 = arith.constant 0 : index
    %50 = vector.load %arg21[%c0_15, %c0_16] : memref<64x64xf32, #tpu.memory_space<vmem>>, vector<8x64xf32>
    tpu.vector_store %arg21[%c0_15, %c0_16], %48 {strides = array<i32>} : memref<64x64xf32, #tpu.memory_space<vmem>>, vector<8x64xf32>,
    %c8 = arith.constant 8 : index
    %c0_17 = arith.constant 0 : index
    %51 = vector.load %arg20[%c8, %c0_17] : memref<64x128xf32, #tpu.memory_space<vmem>>, vector<8x128xf32>
    %cst_18 = arith.constant dense<0.000000e+00> : vector<8x128xf32>
    %52 = tpu.matmul %49, %25, %cst_18 {dimension_numbers = #tpu.dot_dimension_numbers<[1], [0], [0], [1], [0, 0, 1, 1], [], []>} : vector<8x64xbf16>, vector<64x128xbf16>, vector<8x128xf32> -> vector<8x128xf32>
    %53 = arith.addf %51, %52 : vector<8x128xf32>
    %54 = arith.negf %53 : vector<8x128xf32>
    %55 = math.exp %54 : vector<8x128xf32>
    %cst_19 = arith.constant 1.000000e+00 : f32
    %56 = vector.broadcast %cst_19 : f32 to vector<8x128xf32>
    %57 = arith.addf %56, %55 : vector<8x128xf32>
    %58 = arith.divf %56, %57 : vector<8x128xf32>
    %59 = math.tanh %53 : vector<8x128xf32>
    %60 = arith.select %2, %58, %59 : vector<8x128xi1>, vector<8x128xf32>
    %61 = vector.extract_strided_slice %60 {offsets = [0, 0], sizes = [8, 32], strides = [1, 1]} : vector<8x128xf32> to vector<8x32xf32>
    %62 = vector.extract_strided_slice %60 {offsets = [0, 32], sizes = [8, 32], strides = [1, 1]} : vector<8x128xf32> to vector<8x32xf32>
    %63 = vector.extract_strided_slice %60 {offsets = [0, 64], sizes = [8, 32], strides = [1, 1]} : vector<8x128xf32> to vector<8x32xf32>
    %64 = vector.extract_strided_slice %60 {offsets = [0, 96], sizes = [8, 32], strides = [1, 1]} : vector<8x128xf32> to vector<8x32xf32>
    %65 = arith.mulf %62, %44 : vector<8x32xf32>
    %66 = arith.mulf %61, %64 : vector<8x32xf32>
    %67 = arith.addf %65, %66 : vector<8x32xf32>
    %68 = math.tanh %67 : vector<8x32xf32>
    %69 = arith.mulf %63, %68 : vector<8x32xf32>
    %70 = tpu.concatenate %69, %69 in 1 : vector<8x32xf32>, vector<8x32xf32> -> vector<8x64xf32>
    %71 = arith.mulf %70, %20 : vector<8x64xf32>
    %72 = arith.truncf %71 : vector<8x64xf32> to vector<8x64xbf16>
    %c8_20 = arith.constant 8 : index
    %c0_21 = arith.constant 0 : index
    %73 = vector.load %arg21[%c8_20, %c0_21] : memref<64x64xf32, #tpu.memory_space<vmem>>, vector<8x64xf32>
    tpu.vector_store %arg21[%c8_20, %c0_21], %71 {strides = array<i32>} : memref<64x64xf32, #tpu.memory_space<vmem>>, vector<8x64xf32>,
    %c16 = arith.constant 16 : index
    %c0_22 = arith.constant 0 : index
    %74 = vector.load %arg20[%c16, %c0_22] : memref<64x128xf32, #tpu.memory_space<vmem>>, vector<8x128xf32>
    %cst_23 = arith.constant dense<0.000000e+00> : vector<8x128xf32>
    %75 = tpu.matmul %72, %25, %cst_23 {dimension_numbers = #tpu.dot_dimension_numbers<[1], [0], [0], [1], [0, 0, 1, 1], [], []>} : vector<8x64xbf16>, vector<64x128xbf16>, vector<8x128xf32> -> vector<8x128xf32>
    %76 = arith.addf %74, %75 : vector<8x128xf32>
    %77 = arith.negf %76 : vector<8x128xf32>
    %78 = math.exp %77 : vector<8x128xf32>
    %cst_24 = arith.constant 1.000000e+00 : f32
    %79 = vector.broadcast %cst_24 : f32 to vector<8x128xf32>
    %80 = arith.addf %79, %78 : vector<8x128xf32>
    %81 = arith.divf %79, %80 : vector<8x128xf32>
    %82 = math.tanh %76 : vector<8x128xf32>
    %83 = arith.select %2, %81, %82 : vector<8x128xi1>, vector<8x128xf32>
    %84 = vector.extract_strided_slice %83 {offsets = [0, 0], sizes = [8, 32], strides = [1, 1]} : vector<8x128xf32> to vector<8x32xf32>
    %85 = vector.extract_strided_slice %83 {offsets = [0, 32], sizes = [8, 32], strides = [1, 1]} : vector<8x128xf32> to vector<8x32xf32>
    %86 = vector.extract_strided_slice %83 {offsets = [0, 64], sizes = [8, 32], strides = [1, 1]} : vector<8x128xf32> to vector<8x32xf32>
    %87 = vector.extract_strided_slice %83 {offsets = [0, 96], sizes = [8, 32], strides = [1, 1]} : vector<8x128xf32> to vector<8x32xf32>
    %88 = arith.mulf %85, %67 : vector<8x32xf32>
    %89 = arith.mulf %84, %87 : vector<8x32xf32>
    %90 = arith.addf %88, %89 : vector<8x32xf32>
    %91 = math.tanh %90 : vector<8x32xf32>
    %92 = arith.mulf %86, %91 : vector<8x32xf32>
    %93 = tpu.concatenate %92, %92 in 1 : vector<8x32xf32>, vector<8x32xf32> -> vector<8x64xf32>
    %94 = arith.mulf %93, %20 : vector<8x64xf32>
    %95 = arith.truncf %94 : vector<8x64xf32> to vector<8x64xbf16>
    %c16_25 = arith.constant 16 : index
    %c0_26 = arith.constant 0 : index
    %96 = vector.load %arg21[%c16_25, %c0_26] : memref<64x64xf32, #tpu.memory_space<vmem>>, vector<8x64xf32>
    tpu.vector_store %arg21[%c16_25, %c0_26], %94 {strides = array<i32>} : memref<64x64xf32, #tpu.memory_space<vmem>>, vector<8x64xf32>,
    %c24 = arith.constant 24 : index
    %c0_27 = arith.constant 0 : index
    %97 = vector.load %arg20[%c24, %c0_27] : memref<64x128xf32, #tpu.memory_space<vmem>>, vector<8x128xf32>
    %cst_28 = arith.constant dense<0.000000e+00> : vector<8x128xf32>
    %98 = tpu.matmul %95, %25, %cst_28 {dimension_numbers = #tpu.dot_dimension_numbers<[1], [0], [0], [1], [0, 0, 1, 1], [], []>} : vector<8x64xbf16>, vector<64x128xbf16>, vector<8x128xf32> -> vector<8x128xf32>
    %99 = arith.addf %97, %98 : vector<8x128xf32>
    %100 = arith.negf %99 : vector<8x128xf32>
    %101 = math.exp %100 : vector<8x128xf32>
    %cst_29 = arith.constant 1.000000e+00 : f32
    %102 = vector.broadcast %cst_29 : f32 to vector<8x128xf32>
    %103 = arith.addf %102, %101 : vector<8x128xf32>
    %104 = arith.divf %102, %103 : vector<8x128xf32>
    %105 = math.tanh %99 : vector<8x128xf32>
    %106 = arith.select %2, %104, %105 : vector<8x128xi1>, vector<8x128xf32>
    %107 = vector.extract_strided_slice %106 {offsets = [0, 0], sizes = [8, 32], strides = [1, 1]} : vector<8x128xf32> to vector<8x32xf32>
    %108 = vector.extract_strided_slice %106 {offsets = [0, 32], sizes = [8, 32], strides = [1, 1]} : vector<8x128xf32> to vector<8x32xf32>
    %109 = vector.extract_strided_slice %106 {offsets = [0, 64], sizes = [8, 32], strides = [1, 1]} : vector<8x128xf32> to vector<8x32xf32>
    %110 = vector.extract_strided_slice %106 {offsets = [0, 96], sizes = [8, 32], strides = [1, 1]} : vector<8x128xf32> to vector<8x32xf32>
    %111 = arith.mulf %108, %90 : vector<8x32xf32>
    %112 = arith.mulf %107, %110 : vector<8x32xf32>
    %113 = arith.addf %111, %112 : vector<8x32xf32>
    %114 = math.tanh %113 : vector<8x32xf32>
    %115 = arith.mulf %109, %114 : vector<8x32xf32>
    %116 = tpu.concatenate %115, %115 in 1 : vector<8x32xf32>, vector<8x32xf32> -> vector<8x64xf32>
    %117 = arith.mulf %116, %20 : vector<8x64xf32>
    %118 = arith.truncf %117 : vector<8x64xf32> to vector<8x64xbf16>
    %c24_30 = arith.constant 24 : index
    %c0_31 = arith.constant 0 : index
    %119 = vector.load %arg21[%c24_30, %c0_31] : memref<64x64xf32, #tpu.memory_space<vmem>>, vector<8x64xf32>
    tpu.vector_store %arg21[%c24_30, %c0_31], %117 {strides = array<i32>} : memref<64x64xf32, #tpu.memory_space<vmem>>, vector<8x64xf32>,
    %c32 = arith.constant 32 : index
    %c0_32 = arith.constant 0 : index
    %120 = vector.load %arg20[%c32, %c0_32] : memref<64x128xf32, #tpu.memory_space<vmem>>, vector<8x128xf32>
    %cst_33 = arith.constant dense<0.000000e+00> : vector<8x128xf32>
    %121 = tpu.matmul %118, %25, %cst_33 {dimension_numbers = #tpu.dot_dimension_numbers<[1], [0], [0], [1], [0, 0, 1, 1], [], []>} : vector<8x64xbf16>, vector<64x128xbf16>, vector<8x128xf32> -> vector<8x128xf32>
    %122 = arith.addf %120, %121 : vector<8x128xf32>
    %123 = arith.negf %122 : vector<8x128xf32>
    %124 = math.exp %123 : vector<8x128xf32>
    %cst_34 = arith.constant 1.000000e+00 : f32
    %125 = vector.broadcast %cst_34 : f32 to vector<8x128xf32>
    %126 = arith.addf %125, %124 : vector<8x128xf32>
    %127 = arith.divf %125, %126 : vector<8x128xf32>
    %128 = math.tanh %122 : vector<8x128xf32>
    %129 = arith.select %2, %127, %128 : vector<8x128xi1>, vector<8x128xf32>
    %130 = vector.extract_strided_slice %129 {offsets = [0, 0], sizes = [8, 32], strides = [1, 1]} : vector<8x128xf32> to vector<8x32xf32>
    %131 = vector.extract_strided_slice %129 {offsets = [0, 32], sizes = [8, 32], strides = [1, 1]} : vector<8x128xf32> to vector<8x32xf32>
    %132 = vector.extract_strided_slice %129 {offsets = [0, 64], sizes = [8, 32], strides = [1, 1]} : vector<8x128xf32> to vector<8x32xf32>
    %133 = vector.extract_strided_slice %129 {offsets = [0, 96], sizes = [8, 32], strides = [1, 1]} : vector<8x128xf32> to vector<8x32xf32>
    %134 = arith.mulf %131, %113 : vector<8x32xf32>
    %135 = arith.mulf %130, %133 : vector<8x32xf32>
    %136 = arith.addf %134, %135 : vector<8x32xf32>
    %137 = math.tanh %136 : vector<8x32xf32>
    %138 = arith.mulf %132, %137 : vector<8x32xf32>
    %139 = tpu.concatenate %138, %138 in 1 : vector<8x32xf32>, vector<8x32xf32> -> vector<8x64xf32>
    %140 = arith.mulf %139, %20 : vector<8x64xf32>
    %141 = arith.truncf %140 : vector<8x64xf32> to vector<8x64xbf16>
    %c32_35 = arith.constant 32 : index
    %c0_36 = arith.constant 0 : index
    %142 = vector.load %arg21[%c32_35, %c0_36] : memref<64x64xf32, #tpu.memory_space<vmem>>, vector<8x64xf32>
    tpu.vector_store %arg21[%c32_35, %c0_36], %140 {strides = array<i32>} : memref<64x64xf32, #tpu.memory_space<vmem>>, vector<8x64xf32>,
    %c40 = arith.constant 40 : index
    %c0_37 = arith.constant 0 : index
    %143 = vector.load %arg20[%c40, %c0_37] : memref<64x128xf32, #tpu.memory_space<vmem>>, vector<8x128xf32>
    %cst_38 = arith.constant dense<0.000000e+00> : vector<8x128xf32>
    %144 = tpu.matmul %141, %25, %cst_38 {dimension_numbers = #tpu.dot_dimension_numbers<[1], [0], [0], [1], [0, 0, 1, 1], [], []>} : vector<8x64xbf16>, vector<64x128xbf16>, vector<8x128xf32> -> vector<8x128xf32>
    %145 = arith.addf %143, %144 : vector<8x128xf32>
    %146 = arith.negf %145 : vector<8x128xf32>
    %147 = math.exp %146 : vector<8x128xf32>
    %cst_39 = arith.constant 1.000000e+00 : f32
    %148 = vector.broadcast %cst_39 : f32 to vector<8x128xf32>
    %149 = arith.addf %148, %147 : vector<8x128xf32>
    %150 = arith.divf %148, %149 : vector<8x128xf32>
    %151 = math.tanh %145 : vector<8x128xf32>
    %152 = arith.select %2, %150, %151 : vector<8x128xi1>, vector<8x128xf32>
    %153 = vector.extract_strided_slice %152 {offsets = [0, 0], sizes = [8, 32], strides = [1, 1]} : vector<8x128xf32> to vector<8x32xf32>
    %154 = vector.extract_strided_slice %152 {offsets = [0, 32], sizes = [8, 32], strides = [1, 1]} : vector<8x128xf32> to vector<8x32xf32>
    %155 = vector.extract_strided_slice %152 {offsets = [0, 64], sizes = [8, 32], strides = [1, 1]} : vector<8x128xf32> to vector<8x32xf32>
    %156 = vector.extract_strided_slice %152 {offsets = [0, 96], sizes = [8, 32], strides = [1, 1]} : vector<8x128xf32> to vector<8x32xf32>
    %157 = arith.mulf %154, %136 : vector<8x32xf32>
    %158 = arith.mulf %153, %156 : vector<8x32xf32>
    %159 = arith.addf %157, %158 : vector<8x32xf32>
    %160 = math.tanh %159 : vector<8x32xf32>
    %161 = arith.mulf %155, %160 : vector<8x32xf32>
    %162 = tpu.concatenate %161, %161 in 1 : vector<8x32xf32>, vector<8x32xf32> -> vector<8x64xf32>
    %163 = arith.mulf %162, %20 : vector<8x64xf32>
    %164 = arith.truncf %163 : vector<8x64xf32> to vector<8x64xbf16>
    %c40_40 = arith.constant 40 : index
    %c0_41 = arith.constant 0 : index
    %165 = vector.load %arg21[%c40_40, %c0_41] : memref<64x64xf32, #tpu.memory_space<vmem>>, vector<8x64xf32>
    tpu.vector_store %arg21[%c40_40, %c0_41], %163 {strides = array<i32>} : memref<64x64xf32, #tpu.memory_space<vmem>>, vector<8x64xf32>,
    %c48 = arith.constant 48 : index
    %c0_42 = arith.constant 0 : index
    %166 = vector.load %arg20[%c48, %c0_42] : memref<64x128xf32, #tpu.memory_space<vmem>>, vector<8x128xf32>
    %cst_43 = arith.constant dense<0.000000e+00> : vector<8x128xf32>
    %167 = tpu.matmul %164, %25, %cst_43 {dimension_numbers = #tpu.dot_dimension_numbers<[1], [0], [0], [1], [0, 0, 1, 1], [], []>} : vector<8x64xbf16>, vector<64x128xbf16>, vector<8x128xf32> -> vector<8x128xf32>
    %168 = arith.addf %166, %167 : vector<8x128xf32>
    %169 = arith.negf %168 : vector<8x128xf32>
    %170 = math.exp %169 : vector<8x128xf32>
    %cst_44 = arith.constant 1.000000e+00 : f32
    %171 = vector.broadcast %cst_44 : f32 to vector<8x128xf32>
    %172 = arith.addf %171, %170 : vector<8x128xf32>
    %173 = arith.divf %171, %172 : vector<8x128xf32>
    %174 = math.tanh %168 : vector<8x128xf32>
    %175 = arith.select %2, %173, %174 : vector<8x128xi1>, vector<8x128xf32>
    %176 = vector.extract_strided_slice %175 {offsets = [0, 0], sizes = [8, 32], strides = [1, 1]} : vector<8x128xf32> to vector<8x32xf32>
    %177 = vector.extract_strided_slice %175 {offsets = [0, 32], sizes = [8, 32], strides = [1, 1]} : vector<8x128xf32> to vector<8x32xf32>
    %178 = vector.extract_strided_slice %175 {offsets = [0, 64], sizes = [8, 32], strides = [1, 1]} : vector<8x128xf32> to vector<8x32xf32>
    %179 = vector.extract_strided_slice %175 {offsets = [0, 96], sizes = [8, 32], strides = [1, 1]} : vector<8x128xf32> to vector<8x32xf32>
    %180 = arith.mulf %177, %159 : vector<8x32xf32>
    %181 = arith.mulf %176, %179 : vector<8x32xf32>
    %182 = arith.addf %180, %181 : vector<8x32xf32>
    %183 = math.tanh %182 : vector<8x32xf32>
    %184 = arith.mulf %178, %183 : vector<8x32xf32>
    %185 = tpu.concatenate %184, %184 in 1 : vector<8x32xf32>, vector<8x32xf32> -> vector<8x64xf32>
    %186 = arith.mulf %185, %20 : vector<8x64xf32>
    %187 = arith.truncf %186 : vector<8x64xf32> to vector<8x64xbf16>
    %c48_45 = arith.constant 48 : index
    %c0_46 = arith.constant 0 : index
    %188 = vector.load %arg21[%c48_45, %c0_46] : memref<64x64xf32, #tpu.memory_space<vmem>>, vector<8x64xf32>
    tpu.vector_store %arg21[%c48_45, %c0_46], %186 {strides = array<i32>} : memref<64x64xf32, #tpu.memory_space<vmem>>, vector<8x64xf32>,
    %c56 = arith.constant 56 : index
    %c0_47 = arith.constant 0 : index
    %189 = vector.load %arg20[%c56, %c0_47] : memref<64x128xf32, #tpu.memory_space<vmem>>, vector<8x128xf32>
    %cst_48 = arith.constant dense<0.000000e+00> : vector<8x128xf32>
    %190 = tpu.matmul %187, %25, %cst_48 {dimension_numbers = #tpu.dot_dimension_numbers<[1], [0], [0], [1], [0, 0, 1, 1], [], []>} : vector<8x64xbf16>, vector<64x128xbf16>, vector<8x128xf32> -> vector<8x128xf32>
    %191 = arith.addf %189, %190 : vector<8x128xf32>
    %192 = arith.negf %191 : vector<8x128xf32>
    %193 = math.exp %192 : vector<8x128xf32>
    %cst_49 = arith.constant 1.000000e+00 : f32
    %194 = vector.broadcast %cst_49 : f32 to vector<8x128xf32>
    %195 = arith.addf %194, %193 : vector<8x128xf32>
    %196 = arith.divf %194, %195 : vector<8x128xf32>
    %197 = math.tanh %191 : vector<8x128xf32>
    %198 = arith.select %2, %196, %197 : vector<8x128xi1>, vector<8x128xf32>
    %199 = vector.extract_strided_slice %198 {offsets = [0, 0], sizes = [8, 32], strides = [1, 1]} : vector<8x128xf32> to vector<8x32xf32>
    %200 = vector.extract_strided_slice %198 {offsets = [0, 32], sizes = [8, 32], strides = [1, 1]} : vector<8x128xf32> to vector<8x32xf32>
    %201 = vector.extract_strided_slice %198 {offsets = [0, 64], sizes = [8, 32], strides = [1, 1]} : vector<8x128xf32> to vector<8x32xf32>
    %202 = vector.extract_strided_slice %198 {offsets = [0, 96], sizes = [8, 32], strides = [1, 1]} : vector<8x128xf32> to vector<8x32xf32>
    %203 = arith.mulf %200, %182 : vector<8x32xf32>
    %204 = arith.mulf %199, %202 : vector<8x32xf32>
    %205 = arith.addf %203, %204 : vector<8x32xf32>
    %206 = math.tanh %205 : vector<8x32xf32>
    %207 = arith.mulf %201, %206 : vector<8x32xf32>
    %208 = tpu.concatenate %207, %207 in 1 : vector<8x32xf32>, vector<8x32xf32> -> vector<8x64xf32>
    %209 = arith.mulf %208, %20 : vector<8x64xf32>
    %c56_50 = arith.constant 56 : index
    %c0_51 = arith.constant 0 : index
    %210 = vector.load %arg21[%c56_50, %c0_51] : memref<64x64xf32, #tpu.memory_space<vmem>>, vector<8x64xf32>
    tpu.vector_store %arg21[%c56_50, %c0_51], %209 {strides = array<i32>} : memref<64x64xf32, #tpu.memory_space<vmem>>, vector<8x64xf32>,
    %c0_52 = arith.constant 0 : index
    %c0_53 = arith.constant 0 : index
    %211 = vector.load %arg21[%c0_52, %c0_53] : memref<64x64xf32, #tpu.memory_space<vmem>>, vector<64x64xf32>
    %212 = arith.truncf %211 : vector<64x64xf32> to vector<64x64xbf16>
    %c0_54 = arith.constant 0 : index
    %c0_55 = arith.constant 0 : index
    %213 = vector.load %arg3[%c0_54, %c0_55] : memref<64x128xbf16, #tpu.memory_space<vmem>>, vector<64x128xbf16>
    %cst_56 = arith.constant dense<0.000000e+00> : vector<64x128xf32>
    %214 = tpu.matmul %212, %213, %cst_56 {dimension_numbers = #tpu.dot_dimension_numbers<[1], [0], [0], [1], [0, 0, 1, 1], [], []>} : vector<64x64xbf16>, vector<64x128xbf16>, vector<64x128xf32> -> vector<64x128xf32>
    %c0_57 = arith.constant 0 : index
    %c0_58 = arith.constant 0 : index
    %215 = vector.load %arg5[%c0_57, %c0_58] : memref<64x128xf32, #tpu.memory_space<vmem>>, vector<64x128xf32>
    %216 = arith.addf %214, %215 : vector<64x128xf32>
    %c0_59 = arith.constant 0 : index
    %c0_60 = arith.constant 0 : index
    %217 = vector.load %arg20[%c0_59, %c0_60] : memref<64x128xf32, #tpu.memory_space<vmem>>, vector<64x128xf32>
    tpu.vector_store %arg20[%c0_59, %c0_60], %216 {strides = array<i32>} : memref<64x128xf32, #tpu.memory_space<vmem>>, vector<64x128xf32>,
    %c0_61 = arith.constant 0 : index
    %c0_62 = arith.constant 0 : index
    %218 = vector.load %arg4[%c0_61, %c0_62] : memref<64x128xbf16, #tpu.memory_space<vmem>>, vector<64x128xbf16>
    %cst_63 = arith.constant 0.000000e+00 : bf16
    %219 = vector.broadcast %cst_63 : bf16 to vector<8x64xbf16>
    %cst_64 = arith.constant 0.000000e+00 : f32
    %220 = vector.broadcast %cst_64 : f32 to vector<8x32xf32>
    %c0_65 = arith.constant 0 : index
    %c0_66 = arith.constant 0 : index
    %221 = vector.load %arg20[%c0_65, %c0_66] : memref<64x128xf32, #tpu.memory_space<vmem>>, vector<8x128xf32>
    %cst_67 = arith.constant dense<0.000000e+00> : vector<8x128xf32>
    %222 = tpu.matmul %219, %218, %cst_67 {dimension_numbers = #tpu.dot_dimension_numbers<[1], [0], [0], [1], [0, 0, 1, 1], [], []>} : vector<8x64xbf16>, vector<64x128xbf16>, vector<8x128xf32> -> vector<8x128xf32>
    %223 = arith.addf %221, %222 : vector<8x128xf32>
    %224 = arith.negf %223 : vector<8x128xf32>
    %225 = math.exp %224 : vector<8x128xf32>
    %cst_68 = arith.constant 1.000000e+00 : f32
    %226 = vector.broadcast %cst_68 : f32 to vector<8x128xf32>
    %227 = arith.addf %226, %225 : vector<8x128xf32>
    %228 = arith.divf %226, %227 : vector<8x128xf32>
    %229 = math.tanh %223 : vector<8x128xf32>
    %230 = arith.select %2, %228, %229 : vector<8x128xi1>, vector<8x128xf32>
    %231 = vector.extract_strided_slice %230 {offsets = [0, 0], sizes = [8, 32], strides = [1, 1]} : vector<8x128xf32> to vector<8x32xf32>
    %232 = vector.extract_strided_slice %230 {offsets = [0, 32], sizes = [8, 32], strides = [1, 1]} : vector<8x128xf32> to vector<8x32xf32>
    %233 = vector.extract_strided_slice %230 {offsets = [0, 64], sizes = [8, 32], strides = [1, 1]} : vector<8x128xf32> to vector<8x32xf32>
    %234 = vector.extract_strided_slice %230 {offsets = [0, 96], sizes = [8, 32], strides = [1, 1]} : vector<8x128xf32> to vector<8x32xf32>
    %235 = arith.mulf %232, %220 : vector<8x32xf32>
    %236 = arith.mulf %231, %234 : vector<8x32xf32>
    %237 = arith.addf %235, %236 : vector<8x32xf32>
    %238 = math.tanh %237 : vector<8x32xf32>
    %239 = arith.mulf %233, %238 : vector<8x32xf32>
    %240 = tpu.concatenate %239, %239 in 1 : vector<8x32xf32>, vector<8x32xf32> -> vector<8x64xf32>
    %241 = arith.mulf %240, %20 : vector<8x64xf32>
    %242 = arith.truncf %241 : vector<8x64xf32> to vector<8x64xbf16>
    %c0_69 = arith.constant 0 : index
    %c0_70 = arith.constant 0 : index
    %243 = vector.load %arg21[%c0_69, %c0_70] : memref<64x64xf32, #tpu.memory_space<vmem>>, vector<8x64xf32>
    tpu.vector_store %arg21[%c0_69, %c0_70], %241 {strides = array<i32>} : memref<64x64xf32, #tpu.memory_space<vmem>>, vector<8x64xf32>,
    %c8_71 = arith.constant 8 : index
    %c0_72 = arith.constant 0 : index
    %244 = vector.load %arg20[%c8_71, %c0_72] : memref<64x128xf32, #tpu.memory_space<vmem>>, vector<8x128xf32>
    %cst_73 = arith.constant dense<0.000000e+00> : vector<8x128xf32>
    %245 = tpu.matmul %242, %218, %cst_73 {dimension_numbers = #tpu.dot_dimension_numbers<[1], [0], [0], [1], [0, 0, 1, 1], [], []>} : vector<8x64xbf16>, vector<64x128xbf16>, vector<8x128xf32> -> vector<8x128xf32>
    %246 = arith.addf %244, %245 : vector<8x128xf32>
    %247 = arith.negf %246 : vector<8x128xf32>
    %248 = math.exp %247 : vector<8x128xf32>
    %cst_74 = arith.constant 1.000000e+00 : f32
    %249 = vector.broadcast %cst_74 : f32 to vector<8x128xf32>
    %250 = arith.addf %249, %248 : vector<8x128xf32>
    %251 = arith.divf %249, %250 : vector<8x128xf32>
    %252 = math.tanh %246 : vector<8x128xf32>
    %253 = arith.select %2, %251, %252 : vector<8x128xi1>, vector<8x128xf32>
    %254 = vector.extract_strided_slice %253 {offsets = [0, 0], sizes = [8, 32], strides = [1, 1]} : vector<8x128xf32> to vector<8x32xf32>
    %255 = vector.extract_strided_slice %253 {offsets = [0, 32], sizes = [8, 32], strides = [1, 1]} : vector<8x128xf32> to vector<8x32xf32>
    %256 = vector.extract_strided_slice %253 {offsets = [0, 64], sizes = [8, 32], strides = [1, 1]} : vector<8x128xf32> to vector<8x32xf32>
    %257 = vector.extract_strided_slice %253 {offsets = [0, 96], sizes = [8, 32], strides = [1, 1]} : vector<8x128xf32> to vector<8x32xf32>
    %258 = arith.mulf %255, %237 : vector<8x32xf32>
    %259 = arith.mulf %254, %257 : vector<8x32xf32>
    %260 = arith.addf %258, %259 : vector<8x32xf32>
    %261 = math.tanh %260 : vector<8x32xf32>
    %262 = arith.mulf %256, %261 : vector<8x32xf32>
    %263 = tpu.concatenate %262, %262 in 1 : vector<8x32xf32>, vector<8x32xf32> -> vector<8x64xf32>
    %264 = arith.mulf %263, %20 : vector<8x64xf32>
    %265 = arith.truncf %264 : vector<8x64xf32> to vector<8x64xbf16>
    %c8_75 = arith.constant 8 : index
    %c0_76 = arith.constant 0 : index
    %266 = vector.load %arg21[%c8_75, %c0_76] : memref<64x64xf32, #tpu.memory_space<vmem>>, vector<8x64xf32>
    tpu.vector_store %arg21[%c8_75, %c0_76], %264 {strides = array<i32>} : memref<64x64xf32, #tpu.memory_space<vmem>>, vector<8x64xf32>,
    %c16_77 = arith.constant 16 : index
    %c0_78 = arith.constant 0 : index
    %267 = vector.load %arg20[%c16_77, %c0_78] : memref<64x128xf32, #tpu.memory_space<vmem>>, vector<8x128xf32>
    %cst_79 = arith.constant dense<0.000000e+00> : vector<8x128xf32>
    %268 = tpu.matmul %265, %218, %cst_79 {dimension_numbers = #tpu.dot_dimension_numbers<[1], [0], [0], [1], [0, 0, 1, 1], [], []>} : vector<8x64xbf16>, vector<64x128xbf16>, vector<8x128xf32> -> vector<8x128xf32>
    %269 = arith.addf %267, %268 : vector<8x128xf32>
    %270 = arith.negf %269 : vector<8x128xf32>
    %271 = math.exp %270 : vector<8x128xf32>
    %cst_80 = arith.constant 1.000000e+00 : f32
    %272 = vector.broadcast %cst_80 : f32 to vector<8x128xf32>
    %273 = arith.addf %272, %271 : vector<8x128xf32>
    %274 = arith.divf %272, %273 : vector<8x128xf32>
    %275 = math.tanh %269 : vector<8x128xf32>
    %276 = arith.select %2, %274, %275 : vector<8x128xi1>, vector<8x128xf32>
    %277 = vector.extract_strided_slice %276 {offsets = [0, 0], sizes = [8, 32], strides = [1, 1]} : vector<8x128xf32> to vector<8x32xf32>
    %278 = vector.extract_strided_slice %276 {offsets = [0, 32], sizes = [8, 32], strides = [1, 1]} : vector<8x128xf32> to vector<8x32xf32>
    %279 = vector.extract_strided_slice %276 {offsets = [0, 64], sizes = [8, 32], strides = [1, 1]} : vector<8x128xf32> to vector<8x32xf32>
    %280 = vector.extract_strided_slice %276 {offsets = [0, 96], sizes = [8, 32], strides = [1, 1]} : vector<8x128xf32> to vector<8x32xf32>
    %281 = arith.mulf %278, %260 : vector<8x32xf32>
    %282 = arith.mulf %277, %280 : vector<8x32xf32>
    %283 = arith.addf %281, %282 : vector<8x32xf32>
    %284 = math.tanh %283 : vector<8x32xf32>
    %285 = arith.mulf %279, %284 : vector<8x32xf32>
    %286 = tpu.concatenate %285, %285 in 1 : vector<8x32xf32>, vector<8x32xf32> -> vector<8x64xf32>
    %287 = arith.mulf %286, %20 : vector<8x64xf32>
    %288 = arith.truncf %287 : vector<8x64xf32> to vector<8x64xbf16>
    %c16_81 = arith.constant 16 : index
    %c0_82 = arith.constant 0 : index
    %289 = vector.load %arg21[%c16_81, %c0_82] : memref<64x64xf32, #tpu.memory_space<vmem>>, vector<8x64xf32>
    tpu.vector_store %arg21[%c16_81, %c0_82], %287 {strides = array<i32>} : memref<64x64xf32, #tpu.memory_space<vmem>>, vector<8x64xf32>,
    %c24_83 = arith.constant 24 : index
    %c0_84 = arith.constant 0 : index
    %290 = vector.load %arg20[%c24_83, %c0_84] : memref<64x128xf32, #tpu.memory_space<vmem>>, vector<8x128xf32>
    %cst_85 = arith.constant dense<0.000000e+00> : vector<8x128xf32>
    %291 = tpu.matmul %288, %218, %cst_85 {dimension_numbers = #tpu.dot_dimension_numbers<[1], [0], [0], [1], [0, 0, 1, 1], [], []>} : vector<8x64xbf16>, vector<64x128xbf16>, vector<8x128xf32> -> vector<8x128xf32>
    %292 = arith.addf %290, %291 : vector<8x128xf32>
    %293 = arith.negf %292 : vector<8x128xf32>
    %294 = math.exp %293 : vector<8x128xf32>
    %cst_86 = arith.constant 1.000000e+00 : f32
    %295 = vector.broadcast %cst_86 : f32 to vector<8x128xf32>
    %296 = arith.addf %295, %294 : vector<8x128xf32>
    %297 = arith.divf %295, %296 : vector<8x128xf32>
    %298 = math.tanh %292 : vector<8x128xf32>
    %299 = arith.select %2, %297, %298 : vector<8x128xi1>, vector<8x128xf32>
    %300 = vector.extract_strided_slice %299 {offsets = [0, 0], sizes = [8, 32], strides = [1, 1]} : vector<8x128xf32> to vector<8x32xf32>
    %301 = vector.extract_strided_slice %299 {offsets = [0, 32], sizes = [8, 32], strides = [1, 1]} : vector<8x128xf32> to vector<8x32xf32>
    %302 = vector.extract_strided_slice %299 {offsets = [0, 64], sizes = [8, 32], strides = [1, 1]} : vector<8x128xf32> to vector<8x32xf32>
    %303 = vector.extract_strided_slice %299 {offsets = [0, 96], sizes = [8, 32], strides = [1, 1]} : vector<8x128xf32> to vector<8x32xf32>
    %304 = arith.mulf %301, %283 : vector<8x32xf32>
    %305 = arith.mulf %300, %303 : vector<8x32xf32>
    %306 = arith.addf %304, %305 : vector<8x32xf32>
    %307 = math.tanh %306 : vector<8x32xf32>
    %308 = arith.mulf %302, %307 : vector<8x32xf32>
    %309 = tpu.concatenate %308, %308 in 1 : vector<8x32xf32>, vector<8x32xf32> -> vector<8x64xf32>
    %310 = arith.mulf %309, %20 : vector<8x64xf32>
    %311 = arith.truncf %310 : vector<8x64xf32> to vector<8x64xbf16>
    %c24_87 = arith.constant 24 : index
    %c0_88 = arith.constant 0 : index
    %312 = vector.load %arg21[%c24_87, %c0_88] : memref<64x64xf32, #tpu.memory_space<vmem>>, vector<8x64xf32>
    tpu.vector_store %arg21[%c24_87, %c0_88], %310 {strides = array<i32>} : memref<64x64xf32, #tpu.memory_space<vmem>>, vector<8x64xf32>,
    %c32_89 = arith.constant 32 : index
    %c0_90 = arith.constant 0 : index
    %313 = vector.load %arg20[%c32_89, %c0_90] : memref<64x128xf32, #tpu.memory_space<vmem>>, vector<8x128xf32>
    %cst_91 = arith.constant dense<0.000000e+00> : vector<8x128xf32>
    %314 = tpu.matmul %311, %218, %cst_91 {dimension_numbers = #tpu.dot_dimension_numbers<[1], [0], [0], [1], [0, 0, 1, 1], [], []>} : vector<8x64xbf16>, vector<64x128xbf16>, vector<8x128xf32> -> vector<8x128xf32>
    %315 = arith.addf %313, %314 : vector<8x128xf32>
    %316 = arith.negf %315 : vector<8x128xf32>
    %317 = math.exp %316 : vector<8x128xf32>
    %cst_92 = arith.constant 1.000000e+00 : f32
    %318 = vector.broadcast %cst_92 : f32 to vector<8x128xf32>
    %319 = arith.addf %318, %317 : vector<8x128xf32>
    %320 = arith.divf %318, %319 : vector<8x128xf32>
    %321 = math.tanh %315 : vector<8x128xf32>
    %322 = arith.select %2, %320, %321 : vector<8x128xi1>, vector<8x128xf32>
    %323 = vector.extract_strided_slice %322 {offsets = [0, 0], sizes = [8, 32], strides = [1, 1]} : vector<8x128xf32> to vector<8x32xf32>
    %324 = vector.extract_strided_slice %322 {offsets = [0, 32], sizes = [8, 32], strides = [1, 1]} : vector<8x128xf32> to vector<8x32xf32>
    %325 = vector.extract_strided_slice %322 {offsets = [0, 64], sizes = [8, 32], strides = [1, 1]} : vector<8x128xf32> to vector<8x32xf32>
    %326 = vector.extract_strided_slice %322 {offsets = [0, 96], sizes = [8, 32], strides = [1, 1]} : vector<8x128xf32> to vector<8x32xf32>
    %327 = arith.mulf %324, %306 : vector<8x32xf32>
    %328 = arith.mulf %323, %326 : vector<8x32xf32>
    %329 = arith.addf %327, %328 : vector<8x32xf32>
    %330 = math.tanh %329 : vector<8x32xf32>
    %331 = arith.mulf %325, %330 : vector<8x32xf32>
    %332 = tpu.concatenate %331, %331 in 1 : vector<8x32xf32>, vector<8x32xf32> -> vector<8x64xf32>
    %333 = arith.mulf %332, %20 : vector<8x64xf32>
    %334 = arith.truncf %333 : vector<8x64xf32> to vector<8x64xbf16>
    %c32_93 = arith.constant 32 : index
    %c0_94 = arith.constant 0 : index
    %335 = vector.load %arg21[%c32_93, %c0_94] : memref<64x64xf32, #tpu.memory_space<vmem>>, vector<8x64xf32>
    tpu.vector_store %arg21[%c32_93, %c0_94], %333 {strides = array<i32>} : memref<64x64xf32, #tpu.memory_space<vmem>>, vector<8x64xf32>,
    %c40_95 = arith.constant 40 : index
    %c0_96 = arith.constant 0 : index
    %336 = vector.load %arg20[%c40_95, %c0_96] : memref<64x128xf32, #tpu.memory_space<vmem>>, vector<8x128xf32>
    %cst_97 = arith.constant dense<0.000000e+00> : vector<8x128xf32>
    %337 = tpu.matmul %334, %218, %cst_97 {dimension_numbers = #tpu.dot_dimension_numbers<[1], [0], [0], [1], [0, 0, 1, 1], [], []>} : vector<8x64xbf16>, vector<64x128xbf16>, vector<8x128xf32> -> vector<8x128xf32>
    %338 = arith.addf %336, %337 : vector<8x128xf32>
    %339 = arith.negf %338 : vector<8x128xf32>
    %340 = math.exp %339 : vector<8x128xf32>
    %cst_98 = arith.constant 1.000000e+00 : f32
    %341 = vector.broadcast %cst_98 : f32 to vector<8x128xf32>
    %342 = arith.addf %341, %340 : vector<8x128xf32>
    %343 = arith.divf %341, %342 : vector<8x128xf32>
    %344 = math.tanh %338 : vector<8x128xf32>
    %345 = arith.select %2, %343, %344 : vector<8x128xi1>, vector<8x128xf32>
    %346 = vector.extract_strided_slice %345 {offsets = [0, 0], sizes = [8, 32], strides = [1, 1]} : vector<8x128xf32> to vector<8x32xf32>
    %347 = vector.extract_strided_slice %345 {offsets = [0, 32], sizes = [8, 32], strides = [1, 1]} : vector<8x128xf32> to vector<8x32xf32>
    %348 = vector.extract_strided_slice %345 {offsets = [0, 64], sizes = [8, 32], strides = [1, 1]} : vector<8x128xf32> to vector<8x32xf32>
    %349 = vector.extract_strided_slice %345 {offsets = [0, 96], sizes = [8, 32], strides = [1, 1]} : vector<8x128xf32> to vector<8x32xf32>
    %350 = arith.mulf %347, %329 : vector<8x32xf32>
    %351 = arith.mulf %346, %349 : vector<8x32xf32>
    %352 = arith.addf %350, %351 : vector<8x32xf32>
    %353 = math.tanh %352 : vector<8x32xf32>
    %354 = arith.mulf %348, %353 : vector<8x32xf32>
    %355 = tpu.concatenate %354, %354 in 1 : vector<8x32xf32>, vector<8x32xf32> -> vector<8x64xf32>
    %356 = arith.mulf %355, %20 : vector<8x64xf32>
    %357 = arith.truncf %356 : vector<8x64xf32> to vector<8x64xbf16>
    %c40_99 = arith.constant 40 : index
    %c0_100 = arith.constant 0 : index
    %358 = vector.load %arg21[%c40_99, %c0_100] : memref<64x64xf32, #tpu.memory_space<vmem>>, vector<8x64xf32>
    tpu.vector_store %arg21[%c40_99, %c0_100], %356 {strides = array<i32>} : memref<64x64xf32, #tpu.memory_space<vmem>>, vector<8x64xf32>,
    %c48_101 = arith.constant 48 : index
    %c0_102 = arith.constant 0 : index
    %359 = vector.load %arg20[%c48_101, %c0_102] : memref<64x128xf32, #tpu.memory_space<vmem>>, vector<8x128xf32>
    %cst_103 = arith.constant dense<0.000000e+00> : vector<8x128xf32>
    %360 = tpu.matmul %357, %218, %cst_103 {dimension_numbers = #tpu.dot_dimension_numbers<[1], [0], [0], [1], [0, 0, 1, 1], [], []>} : vector<8x64xbf16>, vector<64x128xbf16>, vector<8x128xf32> -> vector<8x128xf32>
    %361 = arith.addf %359, %360 : vector<8x128xf32>
    %362 = arith.negf %361 : vector<8x128xf32>
    %363 = math.exp %362 : vector<8x128xf32>
    %cst_104 = arith.constant 1.000000e+00 : f32
    %364 = vector.broadcast %cst_104 : f32 to vector<8x128xf32>
    %365 = arith.addf %364, %363 : vector<8x128xf32>
    %366 = arith.divf %364, %365 : vector<8x128xf32>
    %367 = math.tanh %361 : vector<8x128xf32>
    %368 = arith.select %2, %366, %367 : vector<8x128xi1>, vector<8x128xf32>
    %369 = vector.extract_strided_slice %368 {offsets = [0, 0], sizes = [8, 32], strides = [1, 1]} : vector<8x128xf32> to vector<8x32xf32>
    %370 = vector.extract_strided_slice %368 {offsets = [0, 32], sizes = [8, 32], strides = [1, 1]} : vector<8x128xf32> to vector<8x32xf32>
    %371 = vector.extract_strided_slice %368 {offsets = [0, 64], sizes = [8, 32], strides = [1, 1]} : vector<8x128xf32> to vector<8x32xf32>
    %372 = vector.extract_strided_slice %368 {offsets = [0, 96], sizes = [8, 32], strides = [1, 1]} : vector<8x128xf32> to vector<8x32xf32>
    %373 = arith.mulf %370, %352 : vector<8x32xf32>
    %374 = arith.mulf %369, %372 : vector<8x32xf32>
    %375 = arith.addf %373, %374 : vector<8x32xf32>
    %376 = math.tanh %375 : vector<8x32xf32>
    %377 = arith.mulf %371, %376 : vector<8x32xf32>
    %378 = tpu.concatenate %377, %377 in 1 : vector<8x32xf32>, vector<8x32xf32> -> vector<8x64xf32>
    %379 = arith.mulf %378, %20 : vector<8x64xf32>
    %380 = arith.truncf %379 : vector<8x64xf32> to vector<8x64xbf16>
    %c48_105 = arith.constant 48 : index
    %c0_106 = arith.constant 0 : index
    %381 = vector.load %arg21[%c48_105, %c0_106] : memref<64x64xf32, #tpu.memory_space<vmem>>, vector<8x64xf32>
    tpu.vector_store %arg21[%c48_105, %c0_106], %379 {strides = array<i32>} : memref<64x64xf32, #tpu.memory_space<vmem>>, vector<8x64xf32>,
    %c56_107 = arith.constant 56 : index
    %c0_108 = arith.constant 0 : index
    %382 = vector.load %arg20[%c56_107, %c0_108] : memref<64x128xf32, #tpu.memory_space<vmem>>, vector<8x128xf32>
    %cst_109 = arith.constant dense<0.000000e+00> : vector<8x128xf32>
    %383 = tpu.matmul %380, %218, %cst_109 {dimension_numbers = #tpu.dot_dimension_numbers<[1], [0], [0], [1], [0, 0, 1, 1], [], []>} : vector<8x64xbf16>, vector<64x128xbf16>, vector<8x128xf32> -> vector<8x128xf32>
    %384 = arith.addf %382, %383 : vector<8x128xf32>
    %385 = arith.negf %384 : vector<8x128xf32>
    %386 = math.exp %385 : vector<8x128xf32>
    %cst_110 = arith.constant 1.000000e+00 : f32
    %387 = vector.broadcast %cst_110 : f32 to vector<8x128xf32>
    %388 = arith.addf %387, %386 : vector<8x128xf32>
    %389 = arith.divf %387, %388 : vector<8x128xf32>
    %390 = math.tanh %384 : vector<8x128xf32>
    %391 = arith.select %2, %389, %390 : vector<8x128xi1>, vector<8x128xf32>
    %392 = vector.extract_strided_slice %391 {offsets = [0, 0], sizes = [8, 32], strides = [1, 1]} : vector<8x128xf32> to vector<8x32xf32>
    %393 = vector.extract_strided_slice %391 {offsets = [0, 32], sizes = [8, 32], strides = [1, 1]} : vector<8x128xf32> to vector<8x32xf32>
    %394 = vector.extract_strided_slice %391 {offsets = [0, 64], sizes = [8, 32], strides = [1, 1]} : vector<8x128xf32> to vector<8x32xf32>
    %395 = vector.extract_strided_slice %391 {offsets = [0, 96], sizes = [8, 32], strides = [1, 1]} : vector<8x128xf32> to vector<8x32xf32>
    %396 = arith.mulf %393, %375 : vector<8x32xf32>
    %397 = arith.mulf %392, %395 : vector<8x32xf32>
    %398 = arith.addf %396, %397 : vector<8x32xf32>
    %399 = math.tanh %398 : vector<8x32xf32>
    %400 = arith.mulf %394, %399 : vector<8x32xf32>
    %401 = tpu.concatenate %400, %400 in 1 : vector<8x32xf32>, vector<8x32xf32> -> vector<8x64xf32>
    %402 = arith.mulf %401, %20 : vector<8x64xf32>
    %c56_111 = arith.constant 56 : index
    %c0_112 = arith.constant 0 : index
    %403 = vector.load %arg21[%c56_111, %c0_112] : memref<64x64xf32, #tpu.memory_space<vmem>>, vector<8x64xf32>
    tpu.vector_store %arg21[%c56_111, %c0_112], %402 {strides = array<i32>} : memref<64x64xf32, #tpu.memory_space<vmem>>, vector<8x64xf32>,
    %c0_113 = arith.constant 0 : index
    %c0_114 = arith.constant 0 : index
    %404 = vector.load %arg21[%c0_113, %c0_114] : memref<64x64xf32, #tpu.memory_space<vmem>>, vector<64x64xf32>
    %405 = arith.truncf %404 : vector<64x64xf32> to vector<64x64xbf16>
    %c0_115 = arith.constant 0 : index
    %c0_116 = arith.constant 0 : index
    %406 = vector.load %arg6[%c0_115, %c0_116] : memref<64x128xbf16, #tpu.memory_space<vmem>>, vector<64x128xbf16>
    %cst_117 = arith.constant dense<0.000000e+00> : vector<64x128xf32>
    %407 = tpu.matmul %405, %406, %cst_117 {dimension_numbers = #tpu.dot_dimension_numbers<[1], [0], [0], [1], [0, 0, 1, 1], [], []>} : vector<64x64xbf16>, vector<64x128xbf16>, vector<64x128xf32> -> vector<64x128xf32>
    %c0_118 = arith.constant 0 : index
    %c0_119 = arith.constant 0 : index
    %408 = vector.load %arg8[%c0_118, %c0_119] : memref<64x128xf32, #tpu.memory_space<vmem>>, vector<64x128xf32>
    %409 = arith.addf %407, %408 : vector<64x128xf32>
    %c0_120 = arith.constant 0 : index
    %c0_121 = arith.constant 0 : index
    %410 = vector.load %arg20[%c0_120, %c0_121] : memref<64x128xf32, #tpu.memory_space<vmem>>, vector<64x128xf32>
    tpu.vector_store %arg20[%c0_120, %c0_121], %409 {strides = array<i32>} : memref<64x128xf32, #tpu.memory_space<vmem>>, vector<64x128xf32>,
    %c0_122 = arith.constant 0 : index
    %c0_123 = arith.constant 0 : index
    %411 = vector.load %arg7[%c0_122, %c0_123] : memref<64x128xbf16, #tpu.memory_space<vmem>>, vector<64x128xbf16>
    %cst_124 = arith.constant 0.000000e+00 : bf16
    %412 = vector.broadcast %cst_124 : bf16 to vector<8x64xbf16>
    %cst_125 = arith.constant 0.000000e+00 : f32
    %413 = vector.broadcast %cst_125 : f32 to vector<8x32xf32>
    %c0_126 = arith.constant 0 : index
    %c0_127 = arith.constant 0 : index
    %414 = vector.load %arg20[%c0_126, %c0_127] : memref<64x128xf32, #tpu.memory_space<vmem>>, vector<8x128xf32>
    %cst_128 = arith.constant dense<0.000000e+00> : vector<8x128xf32>
    %415 = tpu.matmul %412, %411, %cst_128 {dimension_numbers = #tpu.dot_dimension_numbers<[1], [0], [0], [1], [0, 0, 1, 1], [], []>} : vector<8x64xbf16>, vector<64x128xbf16>, vector<8x128xf32> -> vector<8x128xf32>
    %416 = arith.addf %414, %415 : vector<8x128xf32>
    %417 = arith.negf %416 : vector<8x128xf32>
    %418 = math.exp %417 : vector<8x128xf32>
    %cst_129 = arith.constant 1.000000e+00 : f32
    %419 = vector.broadcast %cst_129 : f32 to vector<8x128xf32>
    %420 = arith.addf %419, %418 : vector<8x128xf32>
    %421 = arith.divf %419, %420 : vector<8x128xf32>
    %422 = math.tanh %416 : vector<8x128xf32>
    %423 = arith.select %2, %421, %422 : vector<8x128xi1>, vector<8x128xf32>
    %424 = vector.extract_strided_slice %423 {offsets = [0, 0], sizes = [8, 32], strides = [1, 1]} : vector<8x128xf32> to vector<8x32xf32>
    %425 = vector.extract_strided_slice %423 {offsets = [0, 32], sizes = [8, 32], strides = [1, 1]} : vector<8x128xf32> to vector<8x32xf32>
    %426 = vector.extract_strided_slice %423 {offsets = [0, 64], sizes = [8, 32], strides = [1, 1]} : vector<8x128xf32> to vector<8x32xf32>
    %427 = vector.extract_strided_slice %423 {offsets = [0, 96], sizes = [8, 32], strides = [1, 1]} : vector<8x128xf32> to vector<8x32xf32>
    %428 = arith.mulf %425, %413 : vector<8x32xf32>
    %429 = arith.mulf %424, %427 : vector<8x32xf32>
    %430 = arith.addf %428, %429 : vector<8x32xf32>
    %431 = math.tanh %430 : vector<8x32xf32>
    %432 = arith.mulf %426, %431 : vector<8x32xf32>
    %433 = tpu.concatenate %432, %432 in 1 : vector<8x32xf32>, vector<8x32xf32> -> vector<8x64xf32>
    %434 = arith.mulf %433, %20 : vector<8x64xf32>
    %435 = arith.truncf %434 : vector<8x64xf32> to vector<8x64xbf16>
    %c8_130 = arith.constant 8 : index
    %c0_131 = arith.constant 0 : index
    %436 = vector.load %arg20[%c8_130, %c0_131] : memref<64x128xf32, #tpu.memory_space<vmem>>, vector<8x128xf32>
    %cst_132 = arith.constant dense<0.000000e+00> : vector<8x128xf32>
    %437 = tpu.matmul %435, %411, %cst_132 {dimension_numbers = #tpu.dot_dimension_numbers<[1], [0], [0], [1], [0, 0, 1, 1], [], []>} : vector<8x64xbf16>, vector<64x128xbf16>, vector<8x128xf32> -> vector<8x128xf32>
    %438 = arith.addf %436, %437 : vector<8x128xf32>
    %439 = arith.negf %438 : vector<8x128xf32>
    %440 = math.exp %439 : vector<8x128xf32>
    %cst_133 = arith.constant 1.000000e+00 : f32
    %441 = vector.broadcast %cst_133 : f32 to vector<8x128xf32>
    %442 = arith.addf %441, %440 : vector<8x128xf32>
    %443 = arith.divf %441, %442 : vector<8x128xf32>
    %444 = math.tanh %438 : vector<8x128xf32>
    %445 = arith.select %2, %443, %444 : vector<8x128xi1>, vector<8x128xf32>
    %446 = vector.extract_strided_slice %445 {offsets = [0, 0], sizes = [8, 32], strides = [1, 1]} : vector<8x128xf32> to vector<8x32xf32>
    %447 = vector.extract_strided_slice %445 {offsets = [0, 32], sizes = [8, 32], strides = [1, 1]} : vector<8x128xf32> to vector<8x32xf32>
    %448 = vector.extract_strided_slice %445 {offsets = [0, 64], sizes = [8, 32], strides = [1, 1]} : vector<8x128xf32> to vector<8x32xf32>
    %449 = vector.extract_strided_slice %445 {offsets = [0, 96], sizes = [8, 32], strides = [1, 1]} : vector<8x128xf32> to vector<8x32xf32>
    %450 = arith.mulf %447, %430 : vector<8x32xf32>
    %451 = arith.mulf %446, %449 : vector<8x32xf32>
    %452 = arith.addf %450, %451 : vector<8x32xf32>
    %453 = math.tanh %452 : vector<8x32xf32>
    %454 = arith.mulf %448, %453 : vector<8x32xf32>
    %455 = tpu.concatenate %454, %454 in 1 : vector<8x32xf32>, vector<8x32xf32> -> vector<8x64xf32>
    %456 = arith.mulf %455, %20 : vector<8x64xf32>
    %457 = arith.truncf %456 : vector<8x64xf32> to vector<8x64xbf16>
    %c16_134 = arith.constant 16 : index
    %c0_135 = arith.constant 0 : index
    %458 = vector.load %arg20[%c16_134, %c0_135] : memref<64x128xf32, #tpu.memory_space<vmem>>, vector<8x128xf32>
    %cst_136 = arith.constant dense<0.000000e+00> : vector<8x128xf32>
    %459 = tpu.matmul %457, %411, %cst_136 {dimension_numbers = #tpu.dot_dimension_numbers<[1], [0], [0], [1], [0, 0, 1, 1], [], []>} : vector<8x64xbf16>, vector<64x128xbf16>, vector<8x128xf32> -> vector<8x128xf32>
    %460 = arith.addf %458, %459 : vector<8x128xf32>
    %461 = arith.negf %460 : vector<8x128xf32>
    %462 = math.exp %461 : vector<8x128xf32>
    %cst_137 = arith.constant 1.000000e+00 : f32
    %463 = vector.broadcast %cst_137 : f32 to vector<8x128xf32>
    %464 = arith.addf %463, %462 : vector<8x128xf32>
    %465 = arith.divf %463, %464 : vector<8x128xf32>
    %466 = math.tanh %460 : vector<8x128xf32>
    %467 = arith.select %2, %465, %466 : vector<8x128xi1>, vector<8x128xf32>
    %468 = vector.extract_strided_slice %467 {offsets = [0, 0], sizes = [8, 32], strides = [1, 1]} : vector<8x128xf32> to vector<8x32xf32>
    %469 = vector.extract_strided_slice %467 {offsets = [0, 32], sizes = [8, 32], strides = [1, 1]} : vector<8x128xf32> to vector<8x32xf32>
    %470 = vector.extract_strided_slice %467 {offsets = [0, 64], sizes = [8, 32], strides = [1, 1]} : vector<8x128xf32> to vector<8x32xf32>
    %471 = vector.extract_strided_slice %467 {offsets = [0, 96], sizes = [8, 32], strides = [1, 1]} : vector<8x128xf32> to vector<8x32xf32>
    %472 = arith.mulf %469, %452 : vector<8x32xf32>
    %473 = arith.mulf %468, %471 : vector<8x32xf32>
    %474 = arith.addf %472, %473 : vector<8x32xf32>
    %475 = math.tanh %474 : vector<8x32xf32>
    %476 = arith.mulf %470, %475 : vector<8x32xf32>
    %477 = tpu.concatenate %476, %476 in 1 : vector<8x32xf32>, vector<8x32xf32> -> vector<8x64xf32>
    %478 = arith.mulf %477, %20 : vector<8x64xf32>
    %479 = arith.truncf %478 : vector<8x64xf32> to vector<8x64xbf16>
    %c24_138 = arith.constant 24 : index
    %c0_139 = arith.constant 0 : index
    %480 = vector.load %arg20[%c24_138, %c0_139] : memref<64x128xf32, #tpu.memory_space<vmem>>, vector<8x128xf32>
    %cst_140 = arith.constant dense<0.000000e+00> : vector<8x128xf32>
    %481 = tpu.matmul %479, %411, %cst_140 {dimension_numbers = #tpu.dot_dimension_numbers<[1], [0], [0], [1], [0, 0, 1, 1], [], []>} : vector<8x64xbf16>, vector<64x128xbf16>, vector<8x128xf32> -> vector<8x128xf32>
    %482 = arith.addf %480, %481 : vector<8x128xf32>
    %483 = arith.negf %482 : vector<8x128xf32>
    %484 = math.exp %483 : vector<8x128xf32>
    %cst_141 = arith.constant 1.000000e+00 : f32
    %485 = vector.broadcast %cst_141 : f32 to vector<8x128xf32>
    %486 = arith.addf %485, %484 : vector<8x128xf32>
    %487 = arith.divf %485, %486 : vector<8x128xf32>
    %488 = math.tanh %482 : vector<8x128xf32>
    %489 = arith.select %2, %487, %488 : vector<8x128xi1>, vector<8x128xf32>
    %490 = vector.extract_strided_slice %489 {offsets = [0, 0], sizes = [8, 32], strides = [1, 1]} : vector<8x128xf32> to vector<8x32xf32>
    %491 = vector.extract_strided_slice %489 {offsets = [0, 32], sizes = [8, 32], strides = [1, 1]} : vector<8x128xf32> to vector<8x32xf32>
    %492 = vector.extract_strided_slice %489 {offsets = [0, 64], sizes = [8, 32], strides = [1, 1]} : vector<8x128xf32> to vector<8x32xf32>
    %493 = vector.extract_strided_slice %489 {offsets = [0, 96], sizes = [8, 32], strides = [1, 1]} : vector<8x128xf32> to vector<8x32xf32>
    %494 = arith.mulf %491, %474 : vector<8x32xf32>
    %495 = arith.mulf %490, %493 : vector<8x32xf32>
    %496 = arith.addf %494, %495 : vector<8x32xf32>
    %497 = math.tanh %496 : vector<8x32xf32>
    %498 = arith.mulf %492, %497 : vector<8x32xf32>
    %499 = tpu.concatenate %498, %498 in 1 : vector<8x32xf32>, vector<8x32xf32> -> vector<8x64xf32>
    %500 = arith.mulf %499, %20 : vector<8x64xf32>
    %501 = arith.truncf %500 : vector<8x64xf32> to vector<8x64xbf16>
    %c32_142 = arith.constant 32 : index
    %c0_143 = arith.constant 0 : index
    %502 = vector.load %arg20[%c32_142, %c0_143] : memref<64x128xf32, #tpu.memory_space<vmem>>, vector<8x128xf32>
    %cst_144 = arith.constant dense<0.000000e+00> : vector<8x128xf32>
    %503 = tpu.matmul %501, %411, %cst_144 {dimension_numbers = #tpu.dot_dimension_numbers<[1], [0], [0], [1], [0, 0, 1, 1], [], []>} : vector<8x64xbf16>, vector<64x128xbf16>, vector<8x128xf32> -> vector<8x128xf32>
    %504 = arith.addf %502, %503 : vector<8x128xf32>
    %505 = arith.negf %504 : vector<8x128xf32>
    %506 = math.exp %505 : vector<8x128xf32>
    %cst_145 = arith.constant 1.000000e+00 : f32
    %507 = vector.broadcast %cst_145 : f32 to vector<8x128xf32>
    %508 = arith.addf %507, %506 : vector<8x128xf32>
    %509 = arith.divf %507, %508 : vector<8x128xf32>
    %510 = math.tanh %504 : vector<8x128xf32>
    %511 = arith.select %2, %509, %510 : vector<8x128xi1>, vector<8x128xf32>
    %512 = vector.extract_strided_slice %511 {offsets = [0, 0], sizes = [8, 32], strides = [1, 1]} : vector<8x128xf32> to vector<8x32xf32>
    %513 = vector.extract_strided_slice %511 {offsets = [0, 32], sizes = [8, 32], strides = [1, 1]} : vector<8x128xf32> to vector<8x32xf32>
    %514 = vector.extract_strided_slice %511 {offsets = [0, 64], sizes = [8, 32], strides = [1, 1]} : vector<8x128xf32> to vector<8x32xf32>
    %515 = vector.extract_strided_slice %511 {offsets = [0, 96], sizes = [8, 32], strides = [1, 1]} : vector<8x128xf32> to vector<8x32xf32>
    %516 = arith.mulf %513, %496 : vector<8x32xf32>
    %517 = arith.mulf %512, %515 : vector<8x32xf32>
    %518 = arith.addf %516, %517 : vector<8x32xf32>
    %519 = math.tanh %518 : vector<8x32xf32>
    %520 = arith.mulf %514, %519 : vector<8x32xf32>
    %521 = tpu.concatenate %520, %520 in 1 : vector<8x32xf32>, vector<8x32xf32> -> vector<8x64xf32>
    %522 = arith.mulf %521, %20 : vector<8x64xf32>
    %523 = arith.truncf %522 : vector<8x64xf32> to vector<8x64xbf16>
    %c40_146 = arith.constant 40 : index
    %c0_147 = arith.constant 0 : index
    %524 = vector.load %arg20[%c40_146, %c0_147] : memref<64x128xf32, #tpu.memory_space<vmem>>, vector<8x128xf32>
    %cst_148 = arith.constant dense<0.000000e+00> : vector<8x128xf32>
    %525 = tpu.matmul %523, %411, %cst_148 {dimension_numbers = #tpu.dot_dimension_numbers<[1], [0], [0], [1], [0, 0, 1, 1], [], []>} : vector<8x64xbf16>, vector<64x128xbf16>, vector<8x128xf32> -> vector<8x128xf32>
    %526 = arith.addf %524, %525 : vector<8x128xf32>
    %527 = arith.negf %526 : vector<8x128xf32>
    %528 = math.exp %527 : vector<8x128xf32>
    %cst_149 = arith.constant 1.000000e+00 : f32
    %529 = vector.broadcast %cst_149 : f32 to vector<8x128xf32>
    %530 = arith.addf %529, %528 : vector<8x128xf32>
    %531 = arith.divf %529, %530 : vector<8x128xf32>
    %532 = math.tanh %526 : vector<8x128xf32>
    %533 = arith.select %2, %531, %532 : vector<8x128xi1>, vector<8x128xf32>
    %534 = vector.extract_strided_slice %533 {offsets = [0, 0], sizes = [8, 32], strides = [1, 1]} : vector<8x128xf32> to vector<8x32xf32>
    %535 = vector.extract_strided_slice %533 {offsets = [0, 32], sizes = [8, 32], strides = [1, 1]} : vector<8x128xf32> to vector<8x32xf32>
    %536 = vector.extract_strided_slice %533 {offsets = [0, 64], sizes = [8, 32], strides = [1, 1]} : vector<8x128xf32> to vector<8x32xf32>
    %537 = vector.extract_strided_slice %533 {offsets = [0, 96], sizes = [8, 32], strides = [1, 1]} : vector<8x128xf32> to vector<8x32xf32>
    %538 = arith.mulf %535, %518 : vector<8x32xf32>
    %539 = arith.mulf %534, %537 : vector<8x32xf32>
    %540 = arith.addf %538, %539 : vector<8x32xf32>
    %541 = math.tanh %540 : vector<8x32xf32>
    %542 = arith.mulf %536, %541 : vector<8x32xf32>
    %543 = tpu.concatenate %542, %542 in 1 : vector<8x32xf32>, vector<8x32xf32> -> vector<8x64xf32>
    %544 = arith.mulf %543, %20 : vector<8x64xf32>
    %545 = arith.truncf %544 : vector<8x64xf32> to vector<8x64xbf16>
    %c48_150 = arith.constant 48 : index
    %c0_151 = arith.constant 0 : index
    %546 = vector.load %arg20[%c48_150, %c0_151] : memref<64x128xf32, #tpu.memory_space<vmem>>, vector<8x128xf32>
    %cst_152 = arith.constant dense<0.000000e+00> : vector<8x128xf32>
    %547 = tpu.matmul %545, %411, %cst_152 {dimension_numbers = #tpu.dot_dimension_numbers<[1], [0], [0], [1], [0, 0, 1, 1], [], []>} : vector<8x64xbf16>, vector<64x128xbf16>, vector<8x128xf32> -> vector<8x128xf32>
    %548 = arith.addf %546, %547 : vector<8x128xf32>
    %549 = arith.negf %548 : vector<8x128xf32>
    %550 = math.exp %549 : vector<8x128xf32>
    %cst_153 = arith.constant 1.000000e+00 : f32
    %551 = vector.broadcast %cst_153 : f32 to vector<8x128xf32>
    %552 = arith.addf %551, %550 : vector<8x128xf32>
    %553 = arith.divf %551, %552 : vector<8x128xf32>
    %554 = math.tanh %548 : vector<8x128xf32>
    %555 = arith.select %2, %553, %554 : vector<8x128xi1>, vector<8x128xf32>
    %556 = vector.extract_strided_slice %555 {offsets = [0, 0], sizes = [8, 32], strides = [1, 1]} : vector<8x128xf32> to vector<8x32xf32>
    %557 = vector.extract_strided_slice %555 {offsets = [0, 32], sizes = [8, 32], strides = [1, 1]} : vector<8x128xf32> to vector<8x32xf32>
    %558 = vector.extract_strided_slice %555 {offsets = [0, 64], sizes = [8, 32], strides = [1, 1]} : vector<8x128xf32> to vector<8x32xf32>
    %559 = vector.extract_strided_slice %555 {offsets = [0, 96], sizes = [8, 32], strides = [1, 1]} : vector<8x128xf32> to vector<8x32xf32>
    %560 = arith.mulf %557, %540 : vector<8x32xf32>
    %561 = arith.mulf %556, %559 : vector<8x32xf32>
    %562 = arith.addf %560, %561 : vector<8x32xf32>
    %563 = math.tanh %562 : vector<8x32xf32>
    %564 = arith.mulf %558, %563 : vector<8x32xf32>
    %565 = tpu.concatenate %564, %564 in 1 : vector<8x32xf32>, vector<8x32xf32> -> vector<8x64xf32>
    %566 = arith.mulf %565, %20 : vector<8x64xf32>
    %567 = arith.truncf %566 : vector<8x64xf32> to vector<8x64xbf16>
    %c56_154 = arith.constant 56 : index
    %c0_155 = arith.constant 0 : index
    %568 = vector.load %arg20[%c56_154, %c0_155] : memref<64x128xf32, #tpu.memory_space<vmem>>, vector<8x128xf32>
    %cst_156 = arith.constant dense<0.000000e+00> : vector<8x128xf32>
    %569 = tpu.matmul %567, %411, %cst_156 {dimension_numbers = #tpu.dot_dimension_numbers<[1], [0], [0], [1], [0, 0, 1, 1], [], []>} : vector<8x64xbf16>, vector<64x128xbf16>, vector<8x128xf32> -> vector<8x128xf32>
    %570 = arith.addf %568, %569 : vector<8x128xf32>
    %571 = arith.negf %570 : vector<8x128xf32>
    %572 = math.exp %571 : vector<8x128xf32>
    %cst_157 = arith.constant 1.000000e+00 : f32
    %573 = vector.broadcast %cst_157 : f32 to vector<8x128xf32>
    %574 = arith.addf %573, %572 : vector<8x128xf32>
    %575 = arith.divf %573, %574 : vector<8x128xf32>
    %576 = math.tanh %570 : vector<8x128xf32>
    %577 = arith.select %2, %575, %576 : vector<8x128xi1>, vector<8x128xf32>
    %578 = vector.extract_strided_slice %577 {offsets = [0, 0], sizes = [8, 32], strides = [1, 1]} : vector<8x128xf32> to vector<8x32xf32>
    %579 = vector.extract_strided_slice %577 {offsets = [0, 32], sizes = [8, 32], strides = [1, 1]} : vector<8x128xf32> to vector<8x32xf32>
    %580 = vector.extract_strided_slice %577 {offsets = [0, 64], sizes = [8, 32], strides = [1, 1]} : vector<8x128xf32> to vector<8x32xf32>
    %581 = vector.extract_strided_slice %577 {offsets = [0, 96], sizes = [8, 32], strides = [1, 1]} : vector<8x128xf32> to vector<8x32xf32>
    %582 = arith.mulf %579, %562 : vector<8x32xf32>
    %583 = arith.mulf %578, %581 : vector<8x32xf32>
    %584 = arith.addf %582, %583 : vector<8x32xf32>
    %585 = math.tanh %584 : vector<8x32xf32>
    %586 = arith.mulf %580, %585 : vector<8x32xf32>
    %587 = tpu.concatenate %586, %586 in 1 : vector<8x32xf32>, vector<8x32xf32> -> vector<8x64xf32>
    %588 = arith.mulf %587, %20 : vector<8x64xf32>
    %589 = vector.extract_strided_slice %588 {offsets = [0, 0], sizes = [2, 64], strides = [1, 1]} : vector<8x64xf32> to vector<2x64xf32>
    %590 = vector.extract_strided_slice %588 {offsets = [2, 0], sizes = [2, 64], strides = [1, 1]} : vector<8x64xf32> to vector<2x64xf32>
    %591 = arith.addf %589, %590 : vector<2x64xf32>
    %592 = arith.truncf %591 : vector<2x64xf32> to vector<2x64xbf16>
    %c0_158 = arith.constant 0 : index
    %c0_159 = arith.constant 0 : index
    %593 = vector.load %arg9[%c0_158, %c0_159] : memref<64x64xbf16, #tpu.memory_space<vmem>>, vector<64x64xbf16>
    %cst_160 = arith.constant dense<0.000000e+00> : vector<2x64xf32>
    %594 = tpu.matmul %592, %593, %cst_160 {dimension_numbers = #tpu.dot_dimension_numbers<[1], [0], [0], [1], [0, 0, 1, 1], [], []>} : vector<2x64xbf16>, vector<64x64xbf16>, vector<2x64xf32> -> vector<2x64xf32>
    %c0_161 = arith.constant 0 : index
    %c0_162 = arith.constant 0 : index
    %595 = vector.load %arg10[%c0_161, %c0_162] : memref<1x64xf32, #tpu.memory_space<vmem>>, vector<1x64xf32>
    %596 = vector.broadcast %595 : vector<1x64xf32> to vector<2x64xf32>
    %597 = arith.addf %594, %596 : vector<2x64xf32>
    %cst_163 = arith.constant 0.000000e+00 : f32
    %598 = vector.broadcast %cst_163 : f32 to vector<2x64xf32>
    %599 = arith.maximumf %597, %598 : vector<2x64xf32>
    %600 = arith.truncf %599 : vector<2x64xf32> to vector<2x64xbf16>
    %c0_164 = arith.constant 0 : index
    %c0_165 = arith.constant 0 : index
    %601 = vector.load %arg11[%c0_164, %c0_165] : memref<64x64xbf16, #tpu.memory_space<vmem>>, vector<64x64xbf16>
    %cst_166 = arith.constant dense<0.000000e+00> : vector<2x64xf32>
    %602 = tpu.matmul %600, %601, %cst_166 {dimension_numbers = #tpu.dot_dimension_numbers<[1], [0], [0], [1], [0, 0, 1, 1], [], []>} : vector<2x64xbf16>, vector<64x64xbf16>, vector<2x64xf32> -> vector<2x64xf32>
    %c0_167 = arith.constant 0 : index
    %c0_168 = arith.constant 0 : index
    %603 = vector.load %arg12[%c0_167, %c0_168] : memref<1x64xf32, #tpu.memory_space<vmem>>, vector<1x64xf32>
    %604 = vector.broadcast %603 : vector<1x64xf32> to vector<2x64xf32>
    %605 = arith.addf %602, %604 : vector<2x64xf32>
    %cst_169 = arith.constant 0.000000e+00 : f32
    %606 = vector.broadcast %cst_169 : f32 to vector<2x64xf32>
    %607 = arith.maximumf %605, %606 : vector<2x64xf32>
    %608 = arith.truncf %607 : vector<2x64xf32> to vector<2x64xbf16>
    %c0_170 = arith.constant 0 : index
    %c0_171 = arith.constant 0 : index
    %609 = vector.load %arg13[%c0_170, %c0_171] : memref<64x64xbf16, #tpu.memory_space<vmem>>, vector<64x64xbf16>
    %cst_172 = arith.constant dense<0.000000e+00> : vector<2x64xf32>
    %610 = tpu.matmul %608, %609, %cst_172 {dimension_numbers = #tpu.dot_dimension_numbers<[1], [0], [0], [1], [0, 0, 1, 1], [], []>} : vector<2x64xbf16>, vector<64x64xbf16>, vector<2x64xf32> -> vector<2x64xf32>
    %c0_173 = arith.constant 0 : index
    %c0_174 = arith.constant 0 : index
    %611 = vector.load %arg14[%c0_173, %c0_174] : memref<1x64xf32, #tpu.memory_space<vmem>>, vector<1x64xf32>
    %612 = vector.broadcast %611 : vector<1x64xf32> to vector<2x64xf32>
    %613 = arith.addf %610, %612 : vector<2x64xf32>
    %cst_175 = arith.constant 0.000000e+00 : f32
    %614 = vector.broadcast %cst_175 : f32 to vector<2x64xf32>
    %615 = arith.maximumf %613, %614 : vector<2x64xf32>
    %616 = arith.truncf %615 : vector<2x64xf32> to vector<2x64xbf16>
    %c0_176 = arith.constant 0 : index
    %c0_177 = arith.constant 0 : index
    %617 = vector.load %arg15[%c0_176, %c0_177] : memref<64x64xbf16, #tpu.memory_space<vmem>>, vector<64x64xbf16>
    %cst_178 = arith.constant dense<0.000000e+00> : vector<2x64xf32>
    %618 = tpu.matmul %616, %617, %cst_178 {dimension_numbers = #tpu.dot_dimension_numbers<[1], [0], [0], [1], [0, 0, 1, 1], [], []>} : vector<2x64xbf16>, vector<64x64xbf16>, vector<2x64xf32> -> vector<2x64xf32>
    %c0_179 = arith.constant 0 : index
    %c0_180 = arith.constant 0 : index
    %619 = vector.load %arg16[%c0_179, %c0_180] : memref<1x64xf32, #tpu.memory_space<vmem>>, vector<1x64xf32>
    %620 = vector.broadcast %619 : vector<1x64xf32> to vector<2x64xf32>
    %621 = arith.addf %618, %620 : vector<2x64xf32>
    %cst_181 = arith.constant 0.000000e+00 : f32
    %622 = vector.broadcast %cst_181 : f32 to vector<2x64xf32>
    %623 = arith.maximumf %621, %622 : vector<2x64xf32>
    %624 = arith.truncf %623 : vector<2x64xf32> to vector<2x64xbf16>
    %c0_182 = arith.constant 0 : index
    %c0_183 = arith.constant 0 : index
    %625 = vector.load %arg17[%c0_182, %c0_183] : memref<64x1xbf16, #tpu.memory_space<vmem>>, vector<64x1xbf16>
    %cst_184 = arith.constant dense<0.000000e+00> : vector<2x1xf32>
    %626 = tpu.matmul %624, %625, %cst_184 {dimension_numbers = #tpu.dot_dimension_numbers<[1], [0], [0], [1], [0, 0, 1, 1], [], []>} : vector<2x64xbf16>, vector<64x1xbf16>, vector<2x1xf32> -> vector<2x1xf32>
    %c0_185 = arith.constant 0 : index
    %c0_186 = arith.constant 0 : index
    %627 = vector.load %arg18[%c0_185, %c0_186] : memref<1x1xf32, #tpu.memory_space<vmem>>, vector<1x1xf32>
    %628 = vector.broadcast %627 : vector<1x1xf32> to vector<2x1xf32>
    %629 = arith.addf %626, %628 : vector<2x1xf32>
    %c0_187 = arith.constant 0 : index
    %c0_188 = arith.constant 0 : index
    %630 = vector.load %arg19[%c0_187, %c0_188] : memref<2x1xf32, #tpu.memory_space<vmem>>, vector<2x1xf32>
    tpu.vector_store %arg19[%c0_187, %c0_188], %629 {strides = array<i32>} : memref<2x1xf32, #tpu.memory_space<vmem>>, vector<2x1xf32>,
    return
  }
}

</mosaic_0001>

<llo_original>
// kernel: forward_pallas.1
$region0: #{forward_pallas.1}
  #allocation0 [shape = 'u32[]', space=smem, size = 0x4, offset = 0x4, fixed_abs, tag = 'smem constant byte address 0x4 - core index']
  #allocation1 [shape = 'u32[72,128]{1,0:T(1,128)}', space=vmem, size = 0x9000, scoped, tag = 'internal scratch']
  #allocation2 [shape = 'f32[64,128]{1,0:T(8,128)}', space=vmem, size = 0x8000, scoped, tag = 'scratch operand']
  #allocation3 [shape = 'f32[64,64]{1,0:T(8,128)}', space=vmem, size = 0x8000, scoped, tag = 'scratch operand']
  #allocation4 [shape = 'f32[1,1]{1,0:T(1,128)S(1)}', space=vmem, size = 0x200, scoped, tag = 'scoped memory for forward_pallas.1']
  %s0 = inlined_call_operand.vmem [shape: bf16[64,8], index: 0, kind: input, shape index: {}]
  %s1 = inlined_call_operand.vmem [shape: bf16[8,128], index: 1, kind: input, shape index: {}]
  %s2 = inlined_call_operand.vmem [shape: bf16[64,128], index: 2, kind: input, shape index: {}]
  %s3 = inlined_call_operand.vmem [shape: bf16[64,128], index: 3, kind: input, shape index: {}]
  %s4 = inlined_call_operand.hbm [shape: bf16[64,128], index: 4, kind: input, shape index: {}]
  %s5 = inlined_call_operand.vmem [shape: f32[64,128], index: 5, kind: input, shape index: {}]
  %s6 = inlined_call_operand.hbm [shape: bf16[64,128], index: 6, kind: input, shape index: {}]
  %s7 = inlined_call_operand.hbm [shape: bf16[64,128], index: 7, kind: input, shape index: {}]
  %s8 = inlined_call_operand.hbm [shape: f32[64,128], index: 8, kind: input, shape index: {}]
  %s9 = inlined_call_operand.hbm [shape: bf16[64,64], index: 9, kind: input, shape index: {}]
  %s10 = inlined_call_operand.vmem [shape: f32[1,64], index: 10, kind: input, shape index: {}]
  %s11 = inlined_call_operand.hbm [shape: bf16[64,64], index: 11, kind: input, shape index: {}]
  %s12 = inlined_call_operand.vmem [shape: f32[1,64], index: 12, kind: input, shape index: {}]
  %s13 = inlined_call_operand.hbm [shape: bf16[64,64], index: 13, kind: input, shape index: {}]
  %s14 = inlined_call_operand.vmem [shape: f32[1,64], index: 14, kind: input, shape index: {}]
  %s15 = inlined_call_operand.hbm [shape: bf16[64,64], index: 15, kind: input, shape index: {}]
  %s16 = inlined_call_operand.vmem [shape: f32[1,64], index: 16, kind: input, shape index: {}]
  %s17 = inlined_call_operand.vmem [shape: bf16[64,1], index: 17, kind: input, shape index: {}]
  %s18 = inlined_call_operand.<no memory space> [shape: f32[1,1], index: 18, kind: input, shape index: {}]
  %s19 = inlined_call_operand.vmem [shape: f32[2,1], index: 19, kind: output, shape index: {}]
  %s20 = sld [smem:[#allocation0]]
  $region118: #{forward_pallas.1} parent=0
    _
  %s22 = ssub.s32 1, %s20
  %s23 = scalar_select 0, %s22, %s20
  %v24 = vstv %s18
  %25 = vst [vmem:[#allocation4] sm:$0x1] %v24
  $region1: #{forward_pallas.1} parent=0
    #allocation5 [shape = 'u8[16384]{0}', space=vmem, size = 0x4000, scoped, tag = 'input window, operand 4, single buffered']
    #allocation6 [shape = 's32[1]{0}', space=sflag, size = 0x4, scoped, tag = 'scoped memory for forward_pallas.1']
    #allocation7 [shape = 'u8[16384]{0}', space=vmem, size = 0x4000, scoped, tag = 'input window, operand 6, single buffered']
    #allocation8 [shape = 's32[1]{0}', space=sflag, size = 0x4, scoped, tag = 'scoped memory for forward_pallas.1']
    #allocation9 [shape = 'u8[16384]{0}', space=vmem, size = 0x4000, scoped, tag = 'input window, operand 7, single buffered']
    #allocation10 [shape = 'u8[32768]{0}', space=vmem, size = 0x8000, scoped, tag = 'input window, operand 8, single buffered']
    #allocation11 [shape = 's32[1]{0}', space=sflag, size = 0x4, scoped, tag = 'scoped memory for forward_pallas.1']
    #allocation12 [shape = 'u8[16384]{0}', space=vmem, size = 0x4000, scoped, tag = 'input window, operand 9, single buffered']
    #allocation13 [shape = 'u8[16384]{0}', space=vmem, size = 0x4000, scoped, tag = 'input window, operand 11, single buffered']
    #allocation14 [shape = 's32[1]{0}', space=sflag, size = 0x4, scoped, tag = 'scoped memory for forward_pallas.1']
    #allocation15 [shape = 'u8[16384]{0}', space=vmem, size = 0x4000, scoped, tag = 'input window, operand 13, single buffered']
    #allocation16 [shape = 'u8[16384]{0}', space=vmem, size = 0x4000, scoped, tag = 'input window, operand 15, single buffered']
    #allocation17 [shape = 's32[1]{0}', space=sflag, size = 0x4, scoped, tag = 'scoped memory for forward_pallas.1']
    %26 = vsyncpa [#allocation6], 0
    %27 = vsyncpa [#allocation8], 0
    %28 = vsyncpa [#allocation11], 0
    %29 = vsyncpa [#allocation14], 0
    %30 = vsyncpa [#allocation17], 0
    // Predicated region
    $region2: #{forward_pallas.1} parent=1 // pred_check
      _
    $region3: #{forward_pallas.1} parent=1 // pred_check_branch
      %32 = sbr.rel (0) target = $region5
    $region4: #{forward_pallas.1} parent=1 // pred_region
      _
    $region5: #{forward_pallas.1} parent=1 // pred_fallthru
      _
    // Predicated region
    $region6: #{forward_pallas.1} parent=1 // pred_check
      _
    $region7: #{forward_pallas.1} parent=1 // pred_check_branch
      %34 = sbr.rel (0) target = $region9
    $region8: #{forward_pallas.1} parent=1 // pred_region
      _
    $region9: #{forward_pallas.1} parent=1 // pred_fallthru
      _
    // Predicated region
    $region10: #{forward_pallas.1} parent=1 // pred_check
      _
    $region11: #{forward_pallas.1} parent=1 // pred_check_branch
      %36 = sbr.rel (0) target = $region13
    $region12: #{forward_pallas.1} parent=1 // pred_region
      _
    $region13: #{forward_pallas.1} parent=1 // pred_fallthru
      _
    // Predicated region
    $region14: #{forward_pallas.1} parent=1 // pred_check
      _
    $region15: #{forward_pallas.1} parent=1 // pred_check_branch
      %38 = sbr.rel (0) target = $region17
    $region16: #{forward_pallas.1} parent=1 // pred_region
      _
    $region17: #{forward_pallas.1} parent=1 // pred_fallthru
      _
    // Predicated region
    $region18: #{forward_pallas.1} parent=1 // pred_check
      _
    $region19: #{forward_pallas.1} parent=1 // pred_check_branch
      %40 = sbr.rel (0) target = $region21
    $region20: #{forward_pallas.1} parent=1 // pred_region
      %42 = vsyncadd [#allocation6], 0
      %s43 = sshll.u32 %s4, 4
      %s44 = int_to_ptr.hbm [resolvable:$true] %s43
      %s45 = sshll.u32 [#allocation5], 4
      %s46 = int_to_ptr.vmem [resolvable:$true] %s45
      %51 = dma.hbm_to_vmem [thread:$0]  %s44, 512, %s46, [#allocation6], 64, 64, 4
    $region21: #{forward_pallas.1} parent=1 // pred_fallthru
      _
    // Predicated region
    $region22: #{forward_pallas.1} parent=1 // pred_check
      _
    $region23: #{forward_pallas.1} parent=1 // pred_check_branch
      %53 = sbr.rel (0) target = $region25
    $region24: #{forward_pallas.1} parent=1 // pred_region
      _
    $region25: #{forward_pallas.1} parent=1 // pred_fallthru
      _
    // Predicated region
    $region26: #{forward_pallas.1} parent=1 // pred_check
      _
    $region27: #{forward_pallas.1} parent=1 // pred_check_branch
      %55 = sbr.rel (0) target = $region29
    $region28: #{forward_pallas.1} parent=1 // pred_region
      %57 = vsyncadd [#allocation8], 0
      %s58 = sshll.u32 %s6, 4
      %s59 = int_to_ptr.hbm [resolvable:$true] %s58
      %s60 = sshll.u32 [#allocation7], 4
      %s61 = int_to_ptr.vmem [resolvable:$true] %s60
      %66 = dma.hbm_to_vmem [thread:$0]  %s59, 512, %s61, [#allocation8], 64, 64, 4
    $region29: #{forward_pallas.1} parent=1 // pred_fallthru
      _
    // Predicated region
    $region30: #{forward_pallas.1} parent=1 // pred_check
      _
    $region31: #{forward_pallas.1} parent=1 // pred_check_branch
      %68 = sbr.rel (0) target = $region33
    $region32: #{forward_pallas.1} parent=1 // pred_region
      %70 = vsyncadd [#allocation8], 0
      %s71 = sshll.u32 %s7, 4
      %s72 = int_to_ptr.hbm [resolvable:$true] %s71
      %s73 = sshll.u32 [#allocation9], 4
      %s74 = int_to_ptr.vmem [resolvable:$true] %s73
      %79 = dma.hbm_to_vmem [thread:$0]  %s72, 512, %s74, [#allocation8], 64, 64, 4
    $region33: #{forward_pallas.1} parent=1 // pred_fallthru
      _
    // Predicated region
    $region34: #{forward_pallas.1} parent=1 // pred_check
      _
    $region35: #{forward_pallas.1} parent=1 // pred_check_branch
      %81 = sbr.rel (0) target = $region37
    $region36: #{forward_pallas.1} parent=1 // pred_region
      %83 = vsyncadd [#allocation11], 0
      %s84 = sshll.u32 %s8, 4
      %s85 = int_to_ptr.hbm [resolvable:$true] %s84
      %s86 = sshll.u32 [#allocation10], 4
      %s87 = int_to_ptr.vmem [resolvable:$true] %s86
      %92 = dma.hbm_to_vmem [thread:$0]  %s85, 1024, %s87, [#allocation11], 128, 128, 8
    $region37: #{forward_pallas.1} parent=1 // pred_fallthru
      _
    // Predicated region
    $region38: #{forward_pallas.1} parent=1 // pred_check
      _
    $region39: #{forward_pallas.1} parent=1 // pred_check_branch
      %94 = sbr.rel (0) target = $region41
    $region40: #{forward_pallas.1} parent=1 // pred_region
      %96 = vsyncadd [#allocation11], 0
      %s97 = sshll.u32 %s9, 4
      %s98 = int_to_ptr.hbm [resolvable:$true] %s97
      %s99 = sshll.u32 [#allocation12], 4
      %s100 = int_to_ptr.vmem [resolvable:$true] %s99
      %105 = dma.hbm_to_vmem [thread:$0]  %s98, 512, %s100, [#allocation11], 64, 64, 4
    $region41: #{forward_pallas.1} parent=1 // pred_fallthru
      _
    // Predicated region
    $region42: #{forward_pallas.1} parent=1 // pred_check
      _
    $region43: #{forward_pallas.1} parent=1 // pred_check_branch
      %107 = sbr.rel (0) target = $region45
    $region44: #{forward_pallas.1} parent=1 // pred_region
      _
    $region45: #{forward_pallas.1} parent=1 // pred_fallthru
      _
    // Predicated region
    $region46: #{forward_pallas.1} parent=1 // pred_check
      _
    $region47: #{forward_pallas.1} parent=1 // pred_check_branch
      %109 = sbr.rel (0) target = $region49
    $region48: #{forward_pallas.1} parent=1 // pred_region
      %111 = vsyncadd [#allocation14], 0
      %s112 = sshll.u32 %s11, 4
      %s113 = int_to_ptr.hbm [resolvable:$true] %s112
      %s114 = sshll.u32 [#allocation13], 4
      %s115 = int_to_ptr.vmem [resolvable:$true] %s114
      %120 = dma.hbm_to_vmem [thread:$0]  %s113, 512, %s115, [#allocation14], 64, 64, 4
    $region49: #{forward_pallas.1} parent=1 // pred_fallthru
      _
    // Predicated region
    $region50: #{forward_pallas.1} parent=1 // pred_check
      _
    $region51: #{forward_pallas.1} parent=1 // pred_check_branch
      %122 = sbr.rel (0) target = $region53
    $region52: #{forward_pallas.1} parent=1 // pred_region
      _
    $region53: #{forward_pallas.1} parent=1 // pred_fallthru
      _
    // Predicated region
    $region54: #{forward_pallas.1} parent=1 // pred_check
      _
    $region55: #{forward_pallas.1} parent=1 // pred_check_branch
      %124 = sbr.rel (0) target = $region57
    $region56: #{forward_pallas.1} parent=1 // pred_region
      %126 = vsyncadd [#allocation14], 0
      %s127 = sshll.u32 %s13, 4
      %s128 = int_to_ptr.hbm [resolvable:$true] %s127
      %s129 = sshll.u32 [#allocation15], 4
      %s130 = int_to_ptr.vmem [resolvable:$true] %s129
      %135 = dma.hbm_to_vmem [thread:$0]  %s128, 512, %s130, [#allocation14], 64, 64, 4
    $region57: #{forward_pallas.1} parent=1 // pred_fallthru
      _
    // Predicated region
    $region58: #{forward_pallas.1} parent=1 // pred_check
      _
    $region59: #{forward_pallas.1} parent=1 // pred_check_branch
      %137 = sbr.rel (0) target = $region61
    $region60: #{forward_pallas.1} parent=1 // pred_region
      _
    $region61: #{forward_pallas.1} parent=1 // pred_fallthru
      _
    // Predicated region
    $region62: #{forward_pallas.1} parent=1 // pred_check
      _
    $region63: #{forward_pallas.1} parent=1 // pred_check_branch
      %139 = sbr.rel (0) target = $region65
    $region64: #{forward_pallas.1} parent=1 // pred_region
      %141 = vsyncadd [#allocation17], 0
      %s142 = sshll.u32 %s15, 4
      %s143 = int_to_ptr.hbm [resolvable:$true] %s142
      %s144 = sshll.u32 [#allocation16], 4
      %s145 = int_to_ptr.vmem [resolvable:$true] %s144
      %150 = dma.hbm_to_vmem [thread:$0]  %s143, 512, %s145, [#allocation17], 64, 64, 4
    $region65: #{forward_pallas.1} parent=1 // pred_fallthru
      _
    // Predicated region
    $region66: #{forward_pallas.1} parent=1 // pred_check
      _
    $region67: #{forward_pallas.1} parent=1 // pred_check_branch
      %152 = sbr.rel (0) target = $region69
    $region68: #{forward_pallas.1} parent=1 // pred_region
      _
    $region69: #{forward_pallas.1} parent=1 // pred_fallthru
      _
    // Predicated region
    $region70: #{forward_pallas.1} parent=1 // pred_check
      _
    $region71: #{forward_pallas.1} parent=1 // pred_check_branch
      %154 = sbr.rel (0) target = $region73
    $region72: #{forward_pallas.1} parent=1 // pred_region
      _
    $region73: #{forward_pallas.1} parent=1 // pred_fallthru
      _
    // Predicated region
    $region74: #{forward_pallas.1} parent=1 // pred_check
      _
    $region75: #{forward_pallas.1} parent=1 // pred_check_branch
      %156 = sbr.rel (0) target = $region77
    $region76: #{forward_pallas.1} parent=1 // pred_region
      _
    $region77: #{forward_pallas.1} parent=1 // pred_fallthru
      _
    // Predicated region
    $region78: #{forward_pallas.1} parent=1 // pred_check
      _
    $region79: #{forward_pallas.1} parent=1 // pred_check_branch
      %158 = sbr.rel (0) target = $region81
    $region80: #{forward_pallas.1} parent=1 // pred_region
      %160 = dma.done [#allocation6], 512
    $region81: #{forward_pallas.1} parent=1 // pred_fallthru
      _
    // Predicated region
    $region82: #{forward_pallas.1} parent=1 // pred_check
      _
    $region83: #{forward_pallas.1} parent=1 // pred_check_branch
      %162 = sbr.rel (0) target = $region85
    $region84: #{forward_pallas.1} parent=1 // pred_region
      %164 = dma.done [#allocation8], 512
    $region85: #{forward_pallas.1} parent=1 // pred_fallthru
      _
    // Predicated region
    $region86: #{forward_pallas.1} parent=1 // pred_check
      _
    $region87: #{forward_pallas.1} parent=1 // pred_check_branch
      %166 = sbr.rel (0) target = $region89
    $region88: #{forward_pallas.1} parent=1 // pred_region
      %168 = dma.done [#allocation8], 512
    $region89: #{forward_pallas.1} parent=1 // pred_fallthru
      _
    // Predicated region
    $region90: #{forward_pallas.1} parent=1 // pred_check
      _
    $region91: #{forward_pallas.1} parent=1 // pred_check_branch
      %170 = sbr.rel (0) target = $region93
    $region92: #{forward_pallas.1} parent=1 // pred_region
      %172 = dma.done [#allocation11], 1024
    $region93: #{forward_pallas.1} parent=1 // pred_fallthru
      _
    // Predicated region
    $region94: #{forward_pallas.1} parent=1 // pred_check
      _
    $region95: #{forward_pallas.1} parent=1 // pred_check_branch
      %174 = sbr.rel (0) target = $region97
    $region96: #{forward_pallas.1} parent=1 // pred_region
      %176 = dma.done [#allocation11], 512
    $region97: #{forward_pallas.1} parent=1 // pred_fallthru
      _
    // Predicated region
    $region98: #{forward_pallas.1} parent=1 // pred_check
      _
    $region99: #{forward_pallas.1} parent=1 // pred_check_branch
      %178 = sbr.rel (0) target = $region101
    $region100: #{forward_pallas.1} parent=1 // pred_region
      %180 = dma.done [#allocation14], 512
    $region101: #{forward_pallas.1} parent=1 // pred_fallthru
      _
    // Predicated region
    $region102: #{forward_pallas.1} parent=1 // pred_check
      _
    $region103: #{forward_pallas.1} parent=1 // pred_check_branch
      %182 = sbr.rel (0) target = $region105
    $region104: #{forward_pallas.1} parent=1 // pred_region
      %184 = dma.done [#allocation14], 512
    $region105: #{forward_pallas.1} parent=1 // pred_fallthru
      _
    // Predicated region
    $region106: #{forward_pallas.1} parent=1 // pred_check
      _
    $region107: #{forward_pallas.1} parent=1 // pred_check_branch
      %186 = sbr.rel (0) target = $region109
    $region108: #{forward_pallas.1} parent=1 // pred_region
      %188 = dma.done [#allocation17], 512
    $region109: #{forward_pallas.1} parent=1 // pred_fallthru
      _
    %v190 = vlaneseq
    %v191 = vand.u32 %v190, 127
    %vm192 = vcmp.lt.s32.totalorder %v191, 96
    %v193 = vlaneseq
    %v194 = vshrl.u32 %v193, 7
    %vm195 = vcmp.lt.s32.totalorder %v194, 2
    %vm196 = vcmp.lt.s32.totalorder %v191, 32
    %vm197 = vmand %vm195, %vm196
    %vm198 = vcmp.ge.s32.totalorder %v194, 2
    %vm199 = vcmp.lt.s32.totalorder %v194, 4
    %vm200 = vmand %vm198, %vm199
    %vm201 = vcmp.ge.s32.totalorder %v191, 32
    %vm202 = vmand %vm200, %vm201
    %vm203 = vmor %vm197, %vm202
    %v204 = vsel %vm203, 1, 0
    %v205 = vcvt.s32.f32 %v204
    %v206 = vld [vmem:[%s0] sm:$0xf]
    %v207 = vld [vmem:[%s0 + $0x4] sm:$0xf]
    %v208 = vld [vmem:[%s0 + $0x8] sm:$0xf]
    %v209 = vld [vmem:[%s0 + $0xc] sm:$0xf]
    %v210 = vld [vmem:[%s0 + $0x10] sm:$0xf]
    %v211 = vld [vmem:[%s0 + $0x14] sm:$0xf]
    %v212 = vld [vmem:[%s0 + $0x18] sm:$0xf]
    %v213 = vld [vmem:[%s0 + $0x1c] sm:$0xf]
    %v214 = vld [vmem:[%s1] sm:$0xf]
    %v223 = vunpack.c.l.b16 %v206
    %v224 = vunpack.c.l.b16 %v207
    %v225 = vunpack.c.l.b16 %v208
    %v226 = vunpack.c.l.b16 %v209
    %v227 = vunpack.c.l.b16 %v210
    %v228 = vunpack.c.l.b16 %v211
    %v229 = vunpack.c.l.b16 %v212
    %v230 = vunpack.c.l.b16 %v213
    %v231 = vpack.c.b16 %v224, %v223
    %v232 = vpack.c.b16 %v226, %v225
    %v233 = vpack.c.b16 %v228, %v227
    %v234 = vpack.c.b16 %v230, %v229
    %vm235 = vcmask 64512
    %v237 = vsel %vm235, %v231, 0
    %v240 = vsel %vm235, %v232, 0
    %v243 = vsel %vm235, %v233, 0
    %v246 = vsel %vm235, %v234, 0
    %vm248 = vcmask 1043456
    %v250 = vsel %vm248, %v214, 0
    %252 = vmatpush.bf16.msra.mxu0 0
    %253 = vmatpush.bf16.msra.mxu0 0
    %254 = vmatpush.bf16.msra.mxu0 0
    %255 = vmatpush.bf16.msra.mxu0 0
    %256 = vmatpush.bf16.msra.mxu0 0
    %257 = vmatpush.bf16.msra.mxu0 0
    %258 = vmatpush.bf16.msra.mxu0 0
    %259 = vmatpush.bf16.msra.mxu0 %v250
    %260 = vmatmul.bf16.gmra.mxu0 %v237
    %v261 = vpop.f32.mrf.mxu0
    %v262 = vadd.f32 0.0, %v261
    %v263 = vpop.f32.mrf.mxu0
    %v264 = vadd.f32 0.0, %v263
    %265 = vmatmul.bf16.gmra.mxu0 %v240
    %v266 = vpop.f32.mrf.mxu0
    %v267 = vadd.f32 0.0, %v266
    %v268 = vpop.f32.mrf.mxu0
    %v269 = vadd.f32 0.0, %v268
    %270 = vmatmul.bf16.gmra.mxu0 %v243
    %v271 = vpop.f32.mrf.mxu0
    %v272 = vadd.f32 0.0, %v271
    %v273 = vpop.f32.mrf.mxu0
    %v274 = vadd.f32 0.0, %v273
    %275 = vmatmul.bf16.gmra.mxu0 %v246
    %v276 = vpop.f32.mrf.mxu0
    %v277 = vadd.f32 0.0, %v276
    %v278 = vpop.f32.mrf.mxu0
    %v279 = vadd.f32 0.0, %v278
    %280 = vdwg.mxu0
    %281 = vst [vmem:[#allocation2] sm:$0xff] %v262
    %282 = vst [vmem:[#allocation2 + $0x8] sm:$0xff] %v264
    %283 = vst [vmem:[#allocation2 + $0x10] sm:$0xff] %v267
    %284 = vst [vmem:[#allocation2 + $0x18] sm:$0xff] %v269
    %285 = vst [vmem:[#allocation2 + $0x20] sm:$0xff] %v272
    %286 = vst [vmem:[#allocation2 + $0x28] sm:$0xff] %v274
    %287 = vst [vmem:[#allocation2 + $0x30] sm:$0xff] %v277
    %288 = vst [vmem:[#allocation2 + $0x38] sm:$0xff] %v279
    %v289 = vld [vmem:[%s2] sm:$0xf]
    %v290 = vld [vmem:[%s2 + $0x4] sm:$0xf]
    %v291 = vld [vmem:[%s2 + $0x8] sm:$0xf]
    %v292 = vld [vmem:[%s2 + $0xc] sm:$0xf]
    %v293 = vld [vmem:[%s2 + $0x10] sm:$0xf]
    %v294 = vld [vmem:[%s2 + $0x14] sm:$0xf]
    %v295 = vld [vmem:[%s2 + $0x18] sm:$0xf]
    %v296 = vld [vmem:[%s2 + $0x1c] sm:$0xf]
    %v297 = vld [vmem:[#allocation2] sm:$0xff]
    %v306 = vunpack.c.l.b16 %v289
    %v307 = vunpack.c.l.b16 %v290
    %v308 = vunpack.c.l.b16 %v291
    %v309 = vunpack.c.l.b16 %v292
    %v310 = vunpack.c.l.b16 %v293
    %v311 = vunpack.c.l.b16 %v294
    %v312 = vunpack.c.l.b16 %v295
    %v313 = vunpack.c.l.b16 %v296
    %v314 = vpack.c.b16 %v307, %v306
    %v315 = vpack.c.b16 %v309, %v308
    %v316 = vpack.c.b16 %v311, %v310
    %v317 = vpack.c.b16 %v313, %v312
    %vm322 = vcmask 523264
    %v324 = vsel %vm322, 0, 0
    %326 = vmatpush.bf16.msra.mxu0 0
    %327 = vmatpush.bf16.msra.mxu0 0
    %328 = vmatpush.bf16.msra.mxu0 0
    %329 = vmatpush.bf16.msra.mxu0 0
    %330 = vmatpush.bf16.msra.mxu0 %v317
    %331 = vmatpush.bf16.msra.mxu0 %v316
    %332 = vmatpush.bf16.msra.mxu0 %v315
    %333 = vmatpush.bf16.msra.mxu0 %v314
    %334 = vmatmul.bf16.gmra.mxu0 %v324
    %v335 = vpop.f32.mrf.mxu0
    %v336 = vadd.f32 0.0, %v335
    %v337 = vpop.f32.mrf.mxu0
    %338 = vdwg.mxu0
    %v339 = vadd.f32 %v297, %v336
    %v340 = vxor.u32 %v339, 2147483648
    %v341 = vmul.f32 %v340, 1.442695
    %v342 = vpow.pop %v341
    %v343 = vadd.f32 %v342, 1.0
    %v344 = vrcp.pop %v343
    %v345 = vmul.f32 %v343, %v344
    %v346 = vsub.f32 1.0, %v345
    %v347 = vmul.f32 %v344, %v346
    %v348 = vadd.f32 %v344, %v347
    %vm349 = vweird.f32 %v343
    %vm350 = vweird.f32 %v344
    %vm351 = vmor %vm349, %vm350
    %v352 = vsel %vm351, %v344, %v348
    %v353 = vand.u32 2147483647, %v343
    %vm354 = vcmp.eq.f32.partialorder %v353, 8.507059e+37
    %v355 = vand.u32 %v343, 2147483648
    %v356 = vor.u32 1.1754944e-38, %v355
    %v357 = vsel %vm354, %v356, %v352
    %v358 = vmul.f32 1.0, %v357
    %v359 = vtanh.pop %v339
    %v360 = vsel %vm192, %v358, %v359
    %v361 = vmul.f32 %v360, 0.0
    %363 = vrot.lane.b32.xlu0 %v360, 32
    %v364 = vpop.permute.xlu0 %363
    %v366 = vmul.f32 %v360, %v364
    %368 = vrot.lane.b32.xlu0 %v366, 32
    %v369 = vpop.permute.xlu0 %368
    %v371 = vadd.f32 %v361, %v369
    %v372 = vtanh.pop %v371
    %374 = vrot.lane.b32.xlu0 %v372, 32
    %v375 = vpop.permute.xlu0 %374
    %v377 = vmul.f32 %v360, %v375
    %379 = vrot.lane.b32.xlu0 %v377, 64
    %v380 = vpop.permute.xlu0 %379
    %382 = vrot.lane.b32.xlu0 %v377, 96
    %v383 = vpop.permute.xlu0 %382
    %vm385 = vcmask 261120
    %v386 = vsel %vm385, %v380, %v383
    %v387 = vmul.f32 %v386, %v205
    %v388 = vpack.c.bf16 %v387, %v387
    %389 = vst.msk [vmem:[#allocation3] sm:$0xff] %vm322, %v387
    %v390 = vld [vmem:[#allocation2 + $0x8] sm:$0xff]
    %v392 = vsel %vm322, %v388, 0
    %394 = vmatpush.bf16.msra.mxu0 0
    %395 = vmatpush.bf16.msra.mxu0 0
    %396 = vmatpush.bf16.msra.mxu0 0
    %397 = vmatpush.bf16.msra.mxu0 0
    %398 = vmatpush.bf16.msra.mxu0 %v317
    %399 = vmatpush.bf16.msra.mxu0 %v316
    %400 = vmatpush.bf16.msra.mxu0 %v315
    %401 = vmatpush.bf16.msra.mxu0 %v314
    %402 = vmatmul.bf16.gmra.mxu0 %v392
    %v403 = vpop.f32.mrf.mxu0
    %v404 = vadd.f32 0.0, %v403
    %v405 = vpop.f32.mrf.mxu0
    %406 = vdwg.mxu0
    %v407 = vadd.f32 %v390, %v404
    %v408 = vxor.u32 %v407, 2147483648
    %v409 = vmul.f32 %v408, 1.442695
    %v410 = vpow.pop %v409
    %v411 = vadd.f32 %v410, 1.0
    %v412 = vrcp.pop %v411
    %v413 = vmul.f32 %v411, %v412
    %v414 = vsub.f32 1.0, %v413
    %v415 = vmul.f32 %v412, %v414
    %v416 = vadd.f32 %v412, %v415
    %vm417 = vweird.f32 %v411
    %vm418 = vweird.f32 %v412
    %vm419 = vmor %vm417, %vm418
    %v420 = vsel %vm419, %v412, %v416
    %v421 = vand.u32 2147483647, %v411
    %vm422 = vcmp.eq.f32.partialorder %v421, 8.507059e+37
    %v423 = vand.u32 %v411, 2147483648
    %v424 = vor.u32 1.1754944e-38, %v423
    %v425 = vsel %vm422, %v424, %v420
    %v426 = vmul.f32 1.0, %v425
    %v427 = vtanh.pop %v407
    %v428 = vsel %vm192, %v426, %v427
    %v429 = vmul.f32 %v428, %v371
    %431 = vrot.lane.b32.xlu0 %v428, 32
    %v432 = vpop.permute.xlu0 %431
    %v434 = vmul.f32 %v428, %v432
    %436 = vrot.lane.b32.xlu0 %v434, 32
    %v437 = vpop.permute.xlu0 %436
    %v439 = vadd.f32 %v429, %v437
    %v440 = vtanh.pop %v439
    %442 = vrot.lane.b32.xlu0 %v440, 32
    %v443 = vpop.permute.xlu0 %442
    %v445 = vmul.f32 %v428, %v443
    %447 = vrot.lane.b32.xlu0 %v445, 64
    %v448 = vpop.permute.xlu0 %447
    %450 = vrot.lane.b32.xlu0 %v445, 96
    %v451 = vpop.permute.xlu0 %450
    %v453 = vsel %vm385, %v448, %v451
    %v454 = vmul.f32 %v453, %v205
    %v455 = vpack.c.bf16 %v454, %v454
    %456 = vst.msk [vmem:[#allocation3 + $0x8] sm:$0xff] %vm322, %v454
    %v457 = vld [vmem:[#allocation2 + $0x10] sm:$0xff]
    %v459 = vsel %vm322, %v455, 0
    %461 = vmatpush.bf16.msra.mxu0 0
    %462 = vmatpush.bf16.msra.mxu0 0
    %463 = vmatpush.bf16.msra.mxu0 0
    %464 = vmatpush.bf16.msra.mxu0 0
    %465 = vmatpush.bf16.msra.mxu0 %v317
    %466 = vmatpush.bf16.msra.mxu0 %v316
    %467 = vmatpush.bf16.msra.mxu0 %v315
    %468 = vmatpush.bf16.msra.mxu0 %v314
    %469 = vmatmul.bf16.gmra.mxu0 %v459
    %v470 = vpop.f32.mrf.mxu0
    %v471 = vadd.f32 0.0, %v470
    %v472 = vpop.f32.mrf.mxu0
    %473 = vdwg.mxu0
    %v474 = vadd.f32 %v457, %v471
    %v475 = vxor.u32 %v474, 2147483648
    %v476 = vmul.f32 %v475, 1.442695
    %v477 = vpow.pop %v476
    %v478 = vadd.f32 %v477, 1.0
    %v479 = vrcp.pop %v478
    %v480 = vmul.f32 %v478, %v479
    %v481 = vsub.f32 1.0, %v480
    %v482 = vmul.f32 %v479, %v481
    %v483 = vadd.f32 %v479, %v482
    %vm484 = vweird.f32 %v478
    %vm485 = vweird.f32 %v479
    %vm486 = vmor %vm484, %vm485
    %v487 = vsel %vm486, %v479, %v483
    %v488 = vand.u32 2147483647, %v478
    %vm489 = vcmp.eq.f32.partialorder %v488, 8.507059e+37
    %v490 = vand.u32 %v478, 2147483648
    %v491 = vor.u32 1.1754944e-38, %v490
    %v492 = vsel %vm489, %v491, %v487
    %v493 = vmul.f32 1.0, %v492
    %v494 = vtanh.pop %v474
    %v495 = vsel %vm192, %v493, %v494
    %v496 = vmul.f32 %v495, %v439
    %498 = vrot.lane.b32.xlu0 %v495, 32
    %v499 = vpop.permute.xlu0 %498
    %v501 = vmul.f32 %v495, %v499
    %503 = vrot.lane.b32.xlu0 %v501, 32
    %v504 = vpop.permute.xlu0 %503
    %v506 = vadd.f32 %v496, %v504
    %v507 = vtanh.pop %v506
    %509 = vrot.lane.b32.xlu0 %v507, 32
    %v510 = vpop.permute.xlu0 %509
    %v512 = vmul.f32 %v495, %v510
    %514 = vrot.lane.b32.xlu0 %v512, 64
    %v515 = vpop.permute.xlu0 %514
    %517 = vrot.lane.b32.xlu0 %v512, 96
    %v518 = vpop.permute.xlu0 %517
    %v520 = vsel %vm385, %v515, %v518
    %v521 = vmul.f32 %v520, %v205
    %v522 = vpack.c.bf16 %v521, %v521
    %523 = vst.msk [vmem:[#allocation3 + $0x10] sm:$0xff] %vm322, %v521
    %v524 = vld [vmem:[#allocation2 + $0x18] sm:$0xff]
    %v526 = vsel %vm322, %v522, 0
    %528 = vmatpush.bf16.msra.mxu0 0
    %529 = vmatpush.bf16.msra.mxu0 0
    %530 = vmatpush.bf16.msra.mxu0 0
    %531 = vmatpush.bf16.msra.mxu0 0
    %532 = vmatpush.bf16.msra.mxu0 %v317
    %533 = vmatpush.bf16.msra.mxu0 %v316
    %534 = vmatpush.bf16.msra.mxu0 %v315
    %535 = vmatpush.bf16.msra.mxu0 %v314
    %536 = vmatmul.bf16.gmra.mxu0 %v526
    %v537 = vpop.f32.mrf.mxu0
    %v538 = vadd.f32 0.0, %v537
    %v539 = vpop.f32.mrf.mxu0
    %540 = vdwg.mxu0
    %v541 = vadd.f32 %v524, %v538
    %v542 = vxor.u32 %v541, 2147483648
    %v543 = vmul.f32 %v542, 1.442695
    %v544 = vpow.pop %v543
    %v545 = vadd.f32 %v544, 1.0
    %v546 = vrcp.pop %v545
    %v547 = vmul.f32 %v545, %v546
    %v548 = vsub.f32 1.0, %v547
    %v549 = vmul.f32 %v546, %v548
    %v550 = vadd.f32 %v546, %v549
    %vm551 = vweird.f32 %v545
    %vm552 = vweird.f32 %v546
    %vm553 = vmor %vm551, %vm552
    %v554 = vsel %vm553, %v546, %v550
    %v555 = vand.u32 2147483647, %v545
    %vm556 = vcmp.eq.f32.partialorder %v555, 8.507059e+37
    %v557 = vand.u32 %v545, 2147483648
    %v558 = vor.u32 1.1754944e-38, %v557
    %v559 = vsel %vm556, %v558, %v554
    %v560 = vmul.f32 1.0, %v559
    %v561 = vtanh.pop %v541
    %v562 = vsel %vm192, %v560, %v561
    %v563 = vmul.f32 %v562, %v506
    %565 = vrot.lane.b32.xlu0 %v562, 32
    %v566 = vpop.permute.xlu0 %565
    %v568 = vmul.f32 %v562, %v566
    %570 = vrot.lane.b32.xlu0 %v568, 32
    %v571 = vpop.permute.xlu0 %570
    %v573 = vadd.f32 %v563, %v571
    %v574 = vtanh.pop %v573
    %576 = vrot.lane.b32.xlu0 %v574, 32
    %v577 = vpop.permute.xlu0 %576
    %v579 = vmul.f32 %v562, %v577
    %581 = vrot.lane.b32.xlu0 %v579, 64
    %v582 = vpop.permute.xlu0 %581
    %584 = vrot.lane.b32.xlu0 %v579, 96
    %v585 = vpop.permute.xlu0 %584
    %v587 = vsel %vm385, %v582, %v585
    %v588 = vmul.f32 %v587, %v205
    %v589 = vpack.c.bf16 %v588, %v588
    %590 = vst.msk [vmem:[#allocation3 + $0x18] sm:$0xff] %vm322, %v588
    %v591 = vld [vmem:[#allocation2 + $0x20] sm:$0xff]
    %v593 = vsel %vm322, %v589, 0
    %595 = vmatpush.bf16.msra.mxu0 0
    %596 = vmatpush.bf16.msra.mxu0 0
    %597 = vmatpush.bf16.msra.mxu0 0
    %598 = vmatpush.bf16.msra.mxu0 0
    %599 = vmatpush.bf16.msra.mxu0 %v317
    %600 = vmatpush.bf16.msra.mxu0 %v316
    %601 = vmatpush.bf16.msra.mxu0 %v315
    %602 = vmatpush.bf16.msra.mxu0 %v314
    %603 = vmatmul.bf16.gmra.mxu0 %v593
    %v604 = vpop.f32.mrf.mxu0
    %v605 = vadd.f32 0.0, %v604
    %v606 = vpop.f32.mrf.mxu0
    %607 = vdwg.mxu0
    %v608 = vadd.f32 %v591, %v605
    %v609 = vxor.u32 %v608, 2147483648
    %v610 = vmul.f32 %v609, 1.442695
    %v611 = vpow.pop %v610
    %v612 = vadd.f32 %v611, 1.0
    %v613 = vrcp.pop %v612
    %v614 = vmul.f32 %v612, %v613
    %v615 = vsub.f32 1.0, %v614
    %v616 = vmul.f32 %v613, %v615
    %v617 = vadd.f32 %v613, %v616
    %vm618 = vweird.f32 %v612
    %vm619 = vweird.f32 %v613
    %vm620 = vmor %vm618, %vm619
    %v621 = vsel %vm620, %v613, %v617
    %v622 = vand.u32 2147483647, %v612
    %vm623 = vcmp.eq.f32.partialorder %v622, 8.507059e+37
    %v624 = vand.u32 %v612, 2147483648
    %v625 = vor.u32 1.1754944e-38, %v624
    %v626 = vsel %vm623, %v625, %v621
    %v627 = vmul.f32 1.0, %v626
    %v628 = vtanh.pop %v608
    %v629 = vsel %vm192, %v627, %v628
    %v630 = vmul.f32 %v629, %v573
    %632 = vrot.lane.b32.xlu0 %v629, 32
    %v633 = vpop.permute.xlu0 %632
    %v635 = vmul.f32 %v629, %v633
    %637 = vrot.lane.b32.xlu0 %v635, 32
    %v638 = vpop.permute.xlu0 %637
    %v640 = vadd.f32 %v630, %v638
    %v641 = vtanh.pop %v640
    %643 = vrot.lane.b32.xlu0 %v641, 32
    %v644 = vpop.permute.xlu0 %643
    %v646 = vmul.f32 %v629, %v644
    %648 = vrot.lane.b32.xlu0 %v646, 64
    %v649 = vpop.permute.xlu0 %648
    %651 = vrot.lane.b32.xlu0 %v646, 96
    %v652 = vpop.permute.xlu0 %651
    %v654 = vsel %vm385, %v649, %v652
    %v655 = vmul.f32 %v654, %v205
    %v656 = vpack.c.bf16 %v655, %v655
    %657 = vst.msk [vmem:[#allocation3 + $0x20] sm:$0xff] %vm322, %v655
    %v658 = vld [vmem:[#allocation2 + $0x28] sm:$0xff]
    %v660 = vsel %vm322, %v656, 0
    %662 = vmatpush.bf16.msra.mxu0 0
    %663 = vmatpush.bf16.msra.mxu0 0
    %664 = vmatpush.bf16.msra.mxu0 0
    %665 = vmatpush.bf16.msra.mxu0 0
    %666 = vmatpush.bf16.msra.mxu0 %v317
    %667 = vmatpush.bf16.msra.mxu0 %v316
    %668 = vmatpush.bf16.msra.mxu0 %v315
    %669 = vmatpush.bf16.msra.mxu0 %v314
    %670 = vmatmul.bf16.gmra.mxu0 %v660
    %v671 = vpop.f32.mrf.mxu0
    %v672 = vadd.f32 0.0, %v671
    %v673 = vpop.f32.mrf.mxu0
    %674 = vdwg.mxu0
    %v675 = vadd.f32 %v658, %v672
    %v676 = vxor.u32 %v675, 2147483648
    %v677 = vmul.f32 %v676, 1.442695
    %v678 = vpow.pop %v677
    %v679 = vadd.f32 %v678, 1.0
    %v680 = vrcp.pop %v679
    %v681 = vmul.f32 %v679, %v680
    %v682 = vsub.f32 1.0, %v681
    %v683 = vmul.f32 %v680, %v682
    %v684 = vadd.f32 %v680, %v683
    %vm685 = vweird.f32 %v679
    %vm686 = vweird.f32 %v680
    %vm687 = vmor %vm685, %vm686
    %v688 = vsel %vm687, %v680, %v684
    %v689 = vand.u32 2147483647, %v679
    %vm690 = vcmp.eq.f32.partialorder %v689, 8.507059e+37
    %v691 = vand.u32 %v679, 2147483648
    %v692 = vor.u32 1.1754944e-38, %v691
    %v693 = vsel %vm690, %v692, %v688
    %v694 = vmul.f32 1.0, %v693
    %v695 = vtanh.pop %v675
    %v696 = vsel %vm192, %v694, %v695
    %v697 = vmul.f32 %v696, %v640
    %699 = vrot.lane.b32.xlu0 %v696, 32
    %v700 = vpop.permute.xlu0 %699
    %v702 = vmul.f32 %v696, %v700
    %704 = vrot.lane.b32.xlu0 %v702, 32
    %v705 = vpop.permute.xlu0 %704
    %v707 = vadd.f32 %v697, %v705
    %v708 = vtanh.pop %v707
    %710 = vrot.lane.b32.xlu0 %v708, 32
    %v711 = vpop.permute.xlu0 %710
    %v713 = vmul.f32 %v696, %v711
    %715 = vrot.lane.b32.xlu0 %v713, 64
    %v716 = vpop.permute.xlu0 %715
    %718 = vrot.lane.b32.xlu0 %v713, 96
    %v719 = vpop.permute.xlu0 %718
    %v721 = vsel %vm385, %v716, %v719
    %v722 = vmul.f32 %v721, %v205
    %v723 = vpack.c.bf16 %v722, %v722
    %724 = vst.msk [vmem:[#allocation3 + $0x28] sm:$0xff] %vm322, %v722
    %v725 = vld [vmem:[#allocation2 + $0x30] sm:$0xff]
    %v727 = vsel %vm322, %v723, 0
    %729 = vmatpush.bf16.msra.mxu0 0
    %730 = vmatpush.bf16.msra.mxu0 0
    %731 = vmatpush.bf16.msra.mxu0 0
    %732 = vmatpush.bf16.msra.mxu0 0
    %733 = vmatpush.bf16.msra.mxu0 %v317
    %734 = vmatpush.bf16.msra.mxu0 %v316
    %735 = vmatpush.bf16.msra.mxu0 %v315
    %736 = vmatpush.bf16.msra.mxu0 %v314
    %737 = vmatmul.bf16.gmra.mxu0 %v727
    %v738 = vpop.f32.mrf.mxu0
    %v739 = vadd.f32 0.0, %v738
    %v740 = vpop.f32.mrf.mxu0
    %741 = vdwg.mxu0
    %v742 = vadd.f32 %v725, %v739
    %v743 = vxor.u32 %v742, 2147483648
    %v744 = vmul.f32 %v743, 1.442695
    %v745 = vpow.pop %v744
    %v746 = vadd.f32 %v745, 1.0
    %v747 = vrcp.pop %v746
    %v748 = vmul.f32 %v746, %v747
    %v749 = vsub.f32 1.0, %v748
    %v750 = vmul.f32 %v747, %v749
    %v751 = vadd.f32 %v747, %v750
    %vm752 = vweird.f32 %v746
    %vm753 = vweird.f32 %v747
    %vm754 = vmor %vm752, %vm753
    %v755 = vsel %vm754, %v747, %v751
    %v756 = vand.u32 2147483647, %v746
    %vm757 = vcmp.eq.f32.partialorder %v756, 8.507059e+37
    %v758 = vand.u32 %v746, 2147483648
    %v759 = vor.u32 1.1754944e-38, %v758
    %v760 = vsel %vm757, %v759, %v755
    %v761 = vmul.f32 1.0, %v760
    %v762 = vtanh.pop %v742
    %v763 = vsel %vm192, %v761, %v762
    %v764 = vmul.f32 %v763, %v707
    %766 = vrot.lane.b32.xlu0 %v763, 32
    %v767 = vpop.permute.xlu0 %766
    %v769 = vmul.f32 %v763, %v767
    %771 = vrot.lane.b32.xlu0 %v769, 32
    %v772 = vpop.permute.xlu0 %771
    %v774 = vadd.f32 %v764, %v772
    %v775 = vtanh.pop %v774
    %777 = vrot.lane.b32.xlu0 %v775, 32
    %v778 = vpop.permute.xlu0 %777
    %v780 = vmul.f32 %v763, %v778
    %782 = vrot.lane.b32.xlu0 %v780, 64
    %v783 = vpop.permute.xlu0 %782
    %785 = vrot.lane.b32.xlu0 %v780, 96
    %v786 = vpop.permute.xlu0 %785
    %v788 = vsel %vm385, %v783, %v786
    %v789 = vmul.f32 %v788, %v205
    %v790 = vpack.c.bf16 %v789, %v789
    %791 = vst.msk [vmem:[#allocation3 + $0x30] sm:$0xff] %vm322, %v789
    %v792 = vld [vmem:[#allocation2 + $0x38] sm:$0xff]
    %v794 = vsel %vm322, %v790, 0
    %796 = vmatpush.bf16.msra.mxu0 0
    %797 = vmatpush.bf16.msra.mxu0 0
    %798 = vmatpush.bf16.msra.mxu0 0
    %799 = vmatpush.bf16.msra.mxu0 0
    %800 = vmatpush.bf16.msra.mxu0 %v317
    %801 = vmatpush.bf16.msra.mxu0 %v316
    %802 = vmatpush.bf16.msra.mxu0 %v315
    %803 = vmatpush.bf16.msra.mxu0 %v314
    %804 = vmatmul.bf16.gmra.mxu0 %v794
    %v805 = vpop.f32.mrf.mxu0
    %v806 = vadd.f32 0.0, %v805
    %v807 = vpop.f32.mrf.mxu0
    %808 = vdwg.mxu0
    %v809 = vadd.f32 %v792, %v806
    %v810 = vxor.u32 %v809, 2147483648
    %v811 = vmul.f32 %v810, 1.442695
    %v812 = vpow.pop %v811
    %v813 = vadd.f32 %v812, 1.0
    %v814 = vrcp.pop %v813
    %v815 = vmul.f32 %v813, %v814
    %v816 = vsub.f32 1.0, %v815
    %v817 = vmul.f32 %v814, %v816
    %v818 = vadd.f32 %v814, %v817
    %vm819 = vweird.f32 %v813
    %vm820 = vweird.f32 %v814
    %vm821 = vmor %vm819, %vm820
    %v822 = vsel %vm821, %v814, %v818
    %v823 = vand.u32 2147483647, %v813
    %vm824 = vcmp.eq.f32.partialorder %v823, 8.507059e+37
    %v825 = vand.u32 %v813, 2147483648
    %v826 = vor.u32 1.1754944e-38, %v825
    %v827 = vsel %vm824, %v826, %v822
    %v828 = vmul.f32 1.0, %v827
    %v829 = vtanh.pop %v809
    %v830 = vsel %vm192, %v828, %v829
    %v831 = vmul.f32 %v830, %v774
    %833 = vrot.lane.b32.xlu0 %v830, 32
    %v834 = vpop.permute.xlu0 %833
    %v836 = vmul.f32 %v830, %v834
    %838 = vrot.lane.b32.xlu0 %v836, 32
    %v839 = vpop.permute.xlu0 %838
    %v841 = vadd.f32 %v831, %v839
    %v842 = vtanh.pop %v841
    %844 = vrot.lane.b32.xlu0 %v842, 32
    %v845 = vpop.permute.xlu0 %844
    %v847 = vmul.f32 %v830, %v845
    %849 = vrot.lane.b32.xlu0 %v847, 64
    %v850 = vpop.permute.xlu0 %849
    %852 = vrot.lane.b32.xlu0 %v847, 96
    %v853 = vpop.permute.xlu0 %852
    %v855 = vsel %vm385, %v850, %v853
    %v856 = vmul.f32 %v855, %v205
    %857 = vst.msk [vmem:[#allocation3 + $0x38] sm:$0xff] %vm322, %v856
    %v858 = vld [vmem:[#allocation3] sm:$0xff]
    %v859 = vld [vmem:[#allocation3 + $0x8] sm:$0xff]
    %v860 = vld [vmem:[#allocation3 + $0x10] sm:$0xff]
    %v861 = vld [vmem:[#allocation3 + $0x18] sm:$0xff]
    %v862 = vld [vmem:[#allocation3 + $0x20] sm:$0xff]
    %v863 = vld [vmem:[#allocation3 + $0x28] sm:$0xff]
    %v864 = vld [vmem:[#allocation3 + $0x30] sm:$0xff]
    %v865 = vld [vmem:[#allocation3 + $0x38] sm:$0xff]
    %v866 = vpack.c.bf16 %v859, %v858
    %v867 = vpack.c.bf16 %v861, %v860
    %v868 = vpack.c.bf16 %v863, %v862
    %v869 = vpack.c.bf16 %v865, %v864
    %v870 = vld [vmem:[%s3] sm:$0xf]
    %v871 = vld [vmem:[%s3 + $0x4] sm:$0xf]
    %v872 = vld [vmem:[%s3 + $0x8] sm:$0xf]
    %v873 = vld [vmem:[%s3 + $0xc] sm:$0xf]
    %v874 = vld [vmem:[%s3 + $0x10] sm:$0xf]
    %v875 = vld [vmem:[%s3 + $0x14] sm:$0xf]
    %v876 = vld [vmem:[%s3 + $0x18] sm:$0xf]
    %v877 = vld [vmem:[%s3 + $0x1c] sm:$0xf]
    %v878 = vld [vmem:[%s5] sm:$0xff]
    %v879 = vld [vmem:[%s5 + $0x8] sm:$0xff]
    %v880 = vld [vmem:[%s5 + $0x10] sm:$0xff]
    %v881 = vld [vmem:[%s5 + $0x18] sm:$0xff]
    %v882 = vld [vmem:[%s5 + $0x20] sm:$0xff]
    %v883 = vld [vmem:[%s5 + $0x28] sm:$0xff]
    %v884 = vld [vmem:[%s5 + $0x30] sm:$0xff]
    %v885 = vld [vmem:[%s5 + $0x38] sm:$0xff]
    %v894 = vunpack.c.l.b16 %v870
    %v895 = vunpack.c.l.b16 %v871
    %v896 = vunpack.c.l.b16 %v872
    %v897 = vunpack.c.l.b16 %v873
    %v898 = vunpack.c.l.b16 %v874
    %v899 = vunpack.c.l.b16 %v875
    %v900 = vunpack.c.l.b16 %v876
    %v901 = vunpack.c.l.b16 %v877
    %v902 = vpack.c.b16 %v895, %v894
    %v903 = vpack.c.b16 %v897, %v896
    %v904 = vpack.c.b16 %v899, %v898
    %v905 = vpack.c.b16 %v901, %v900
    %v911 = vsel %vm322, %v866, 0
    %v914 = vsel %vm322, %v867, 0
    %v917 = vsel %vm322, %v868, 0
    %v920 = vsel %vm322, %v869, 0
    %922 = vmatpush.bf16.msra.mxu0 0
    %923 = vmatpush.bf16.msra.mxu0 0
    %924 = vmatpush.bf16.msra.mxu0 0
    %925 = vmatpush.bf16.msra.mxu0 0
    %926 = vmatpush.bf16.msra.mxu0 %v905
    %927 = vmatpush.bf16.msra.mxu0 %v904
    %928 = vmatpush.bf16.msra.mxu0 %v903
    %929 = vmatpush.bf16.msra.mxu0 %v902
    %930 = vmatmul.bf16.gmra.mxu0 %v911
    %v931 = vpop.f32.mrf.mxu0
    %v932 = vadd.f32 %v878, %v931
    %v933 = vpop.f32.mrf.mxu0
    %v934 = vadd.f32 %v879, %v933
    %935 = vmatmul.bf16.gmra.mxu0 %v914
    %v936 = vpop.f32.mrf.mxu0
    %v937 = vadd.f32 %v880, %v936
    %v938 = vpop.f32.mrf.mxu0
    %v939 = vadd.f32 %v881, %v938
    %940 = vmatmul.bf16.gmra.mxu0 %v917
    %v941 = vpop.f32.mrf.mxu0
    %v942 = vadd.f32 %v882, %v941
    %v943 = vpop.f32.mrf.mxu0
    %v944 = vadd.f32 %v883, %v943
    %945 = vmatmul.bf16.gmra.mxu0 %v920
    %v946 = vpop.f32.mrf.mxu0
    %v947 = vadd.f32 %v884, %v946
    %v948 = vpop.f32.mrf.mxu0
    %v949 = vadd.f32 %v885, %v948
    %950 = vdwg.mxu0
    %951 = vst [vmem:[#allocation2] sm:$0xff] %v932
    %952 = vst [vmem:[#allocation2 + $0x8] sm:$0xff] %v934
    %953 = vst [vmem:[#allocation2 + $0x10] sm:$0xff] %v937
    %954 = vst [vmem:[#allocation2 + $0x18] sm:$0xff] %v939
    %955 = vst [vmem:[#allocation2 + $0x20] sm:$0xff] %v942
    %956 = vst [vmem:[#allocation2 + $0x28] sm:$0xff] %v944
    %957 = vst [vmem:[#allocation2 + $0x30] sm:$0xff] %v947
    %958 = vst [vmem:[#allocation2 + $0x38] sm:$0xff] %v949
    %v959 = vld [vmem:[#allocation5] sm:$0xf]
    %v960 = vld [vmem:[#allocation5 + $0x4] sm:$0xf]
    %v961 = vld [vmem:[#allocation5 + $0x8] sm:$0xf]
    %v962 = vld [vmem:[#allocation5 + $0xc] sm:$0xf]
    %v963 = vld [vmem:[#allocation5 + $0x10] sm:$0xf]
    %v964 = vld [vmem:[#allocation5 + $0x14] sm:$0xf]
    %v965 = vld [vmem:[#allocation5 + $0x18] sm:$0xf]
    %v966 = vld [vmem:[#allocation5 + $0x1c] sm:$0xf]
    %v967 = vld [vmem:[#allocation2] sm:$0xff]
    %v976 = vunpack.c.l.b16 %v959
    %v977 = vunpack.c.l.b16 %v960
    %v978 = vunpack.c.l.b16 %v961
    %v979 = vunpack.c.l.b16 %v962
    %v980 = vunpack.c.l.b16 %v963
    %v981 = vunpack.c.l.b16 %v964
    %v982 = vunpack.c.l.b16 %v965
    %v983 = vunpack.c.l.b16 %v966
    %v984 = vpack.c.b16 %v977, %v976
    %v985 = vpack.c.b16 %v979, %v978
    %v986 = vpack.c.b16 %v981, %v980
    %v987 = vpack.c.b16 %v983, %v982
    %992 = vmatpush.bf16.msra.mxu0 0
    %993 = vmatpush.bf16.msra.mxu0 0
    %994 = vmatpush.bf16.msra.mxu0 0
    %995 = vmatpush.bf16.msra.mxu0 0
    %996 = vmatpush.bf16.msra.mxu0 %v987
    %997 = vmatpush.bf16.msra.mxu0 %v986
    %998 = vmatpush.bf16.msra.mxu0 %v985
    %999 = vmatpush.bf16.msra.mxu0 %v984
    %1000 = vmatmul.bf16.gmra.mxu0 %v324
    %v1001 = vpop.f32.mrf.mxu0
    %v1002 = vadd.f32 0.0, %v1001
    %v1003 = vpop.f32.mrf.mxu0
    %1004 = vdwg.mxu0
    %v1005 = vadd.f32 %v967, %v1002
    %v1006 = vxor.u32 %v1005, 2147483648
    %v1007 = vmul.f32 %v1006, 1.442695
    %v1008 = vpow.pop %v1007
    %v1009 = vadd.f32 %v1008, 1.0
    %v1010 = vrcp.pop %v1009
    %v1011 = vmul.f32 %v1009, %v1010
    %v1012 = vsub.f32 1.0, %v1011
    %v1013 = vmul.f32 %v1010, %v1012
    %v1014 = vadd.f32 %v1010, %v1013
    %vm1015 = vweird.f32 %v1009
    %vm1016 = vweird.f32 %v1010
    %vm1017 = vmor %vm1015, %vm1016
    %v1018 = vsel %vm1017, %v1010, %v1014
    %v1019 = vand.u32 2147483647, %v1009
    %vm1020 = vcmp.eq.f32.partialorder %v1019, 8.507059e+37
    %v1021 = vand.u32 %v1009, 2147483648
    %v1022 = vor.u32 1.1754944e-38, %v1021
    %v1023 = vsel %vm1020, %v1022, %v1018
    %v1024 = vmul.f32 1.0, %v1023
    %v1025 = vtanh.pop %v1005
    %v1026 = vsel %vm192, %v1024, %v1025
    %v1027 = vmul.f32 %v1026, 0.0
    %1029 = vrot.lane.b32.xlu0 %v1026, 32
    %v1030 = vpop.permute.xlu0 %1029
    %v1032 = vmul.f32 %v1026, %v1030
    %1034 = vrot.lane.b32.xlu0 %v1032, 32
    %v1035 = vpop.permute.xlu0 %1034
    %v1037 = vadd.f32 %v1027, %v1035
    %v1038 = vtanh.pop %v1037
    %1040 = vrot.lane.b32.xlu0 %v1038, 32
    %v1041 = vpop.permute.xlu0 %1040
    %v1043 = vmul.f32 %v1026, %v1041
    %1045 = vrot.lane.b32.xlu0 %v1043, 64
    %v1046 = vpop.permute.xlu0 %1045
    %1048 = vrot.lane.b32.xlu0 %v1043, 96
    %v1049 = vpop.permute.xlu0 %1048
    %v1051 = vsel %vm385, %v1046, %v1049
    %v1052 = vmul.f32 %v1051, %v205
    %v1053 = vpack.c.bf16 %v1052, %v1052
    %1054 = vst.msk [vmem:[#allocation3] sm:$0xff] %vm322, %v1052
    %v1055 = vld [vmem:[#allocation2 + $0x8] sm:$0xff]
    %v1057 = vsel %vm322, %v1053, 0
    %1059 = vmatpush.bf16.msra.mxu0 0
    %1060 = vmatpush.bf16.msra.mxu0 0
    %1061 = vmatpush.bf16.msra.mxu0 0
    %1062 = vmatpush.bf16.msra.mxu0 0
    %1063 = vmatpush.bf16.msra.mxu0 %v987
    %1064 = vmatpush.bf16.msra.mxu0 %v986
    %1065 = vmatpush.bf16.msra.mxu0 %v985
    %1066 = vmatpush.bf16.msra.mxu0 %v984
    %1067 = vmatmul.bf16.gmra.mxu0 %v1057
    %v1068 = vpop.f32.mrf.mxu0
    %v1069 = vadd.f32 0.0, %v1068
    %v1070 = vpop.f32.mrf.mxu0
    %1071 = vdwg.mxu0
    %v1072 = vadd.f32 %v1055, %v1069
    %v1073 = vxor.u32 %v1072, 2147483648
    %v1074 = vmul.f32 %v1073, 1.442695
    %v1075 = vpow.pop %v1074
    %v1076 = vadd.f32 %v1075, 1.0
    %v1077 = vrcp.pop %v1076
    %v1078 = vmul.f32 %v1076, %v1077
    %v1079 = vsub.f32 1.0, %v1078
    %v1080 = vmul.f32 %v1077, %v1079
    %v1081 = vadd.f32 %v1077, %v1080
    %vm1082 = vweird.f32 %v1076
    %vm1083 = vweird.f32 %v1077
    %vm1084 = vmor %vm1082, %vm1083
    %v1085 = vsel %vm1084, %v1077, %v1081
    %v1086 = vand.u32 2147483647, %v1076
    %vm1087 = vcmp.eq.f32.partialorder %v1086, 8.507059e+37
    %v1088 = vand.u32 %v1076, 2147483648
    %v1089 = vor.u32 1.1754944e-38, %v1088
    %v1090 = vsel %vm1087, %v1089, %v1085
    %v1091 = vmul.f32 1.0, %v1090
    %v1092 = vtanh.pop %v1072
    %v1093 = vsel %vm192, %v1091, %v1092
    %v1094 = vmul.f32 %v1093, %v1037
    %1096 = vrot.lane.b32.xlu0 %v1093, 32
    %v1097 = vpop.permute.xlu0 %1096
    %v1099 = vmul.f32 %v1093, %v1097
    %1101 = vrot.lane.b32.xlu0 %v1099, 32
    %v1102 = vpop.permute.xlu0 %1101
    %v1104 = vadd.f32 %v1094, %v1102
    %v1105 = vtanh.pop %v1104
    %1107 = vrot.lane.b32.xlu0 %v1105, 32
    %v1108 = vpop.permute.xlu0 %1107
    %v1110 = vmul.f32 %v1093, %v1108
    %1112 = vrot.lane.b32.xlu0 %v1110, 64
    %v1113 = vpop.permute.xlu0 %1112
    %1115 = vrot.lane.b32.xlu0 %v1110, 96
    %v1116 = vpop.permute.xlu0 %1115
    %v1118 = vsel %vm385, %v1113, %v1116
    %v1119 = vmul.f32 %v1118, %v205
    %v1120 = vpack.c.bf16 %v1119, %v1119
    %1121 = vst.msk [vmem:[#allocation3 + $0x8] sm:$0xff] %vm322, %v1119
    %v1122 = vld [vmem:[#allocation2 + $0x10] sm:$0xff]
    %v1124 = vsel %vm322, %v1120, 0
    %1126 = vmatpush.bf16.msra.mxu0 0
    %1127 = vmatpush.bf16.msra.mxu0 0
    %1128 = vmatpush.bf16.msra.mxu0 0
    %1129 = vmatpush.bf16.msra.mxu0 0
    %1130 = vmatpush.bf16.msra.mxu0 %v987
    %1131 = vmatpush.bf16.msra.mxu0 %v986
    %1132 = vmatpush.bf16.msra.mxu0 %v985
    %1133 = vmatpush.bf16.msra.mxu0 %v984
    %1134 = vmatmul.bf16.gmra.mxu0 %v1124
    %v1135 = vpop.f32.mrf.mxu0
    %v1136 = vadd.f32 0.0, %v1135
    %v1137 = vpop.f32.mrf.mxu0
    %1138 = vdwg.mxu0
    %v1139 = vadd.f32 %v1122, %v1136
    %v1140 = vxor.u32 %v1139, 2147483648
    %v1141 = vmul.f32 %v1140, 1.442695
    %v1142 = vpow.pop %v1141
    %v1143 = vadd.f32 %v1142, 1.0
    %v1144 = vrcp.pop %v1143
    %v1145 = vmul.f32 %v1143, %v1144
    %v1146 = vsub.f32 1.0, %v1145
    %v1147 = vmul.f32 %v1144, %v1146
    %v1148 = vadd.f32 %v1144, %v1147
    %vm1149 = vweird.f32 %v1143
    %vm1150 = vweird.f32 %v1144
    %vm1151 = vmor %vm1149, %vm1150
    %v1152 = vsel %vm1151, %v1144, %v1148
    %v1153 = vand.u32 2147483647, %v1143
    %vm1154 = vcmp.eq.f32.partialorder %v1153, 8.507059e+37
    %v1155 = vand.u32 %v1143, 2147483648
    %v1156 = vor.u32 1.1754944e-38, %v1155
    %v1157 = vsel %vm1154, %v1156, %v1152
    %v1158 = vmul.f32 1.0, %v1157
    %v1159 = vtanh.pop %v1139
    %v1160 = vsel %vm192, %v1158, %v1159
    %v1161 = vmul.f32 %v1160, %v1104
    %1163 = vrot.lane.b32.xlu0 %v1160, 32
    %v1164 = vpop.permute.xlu0 %1163
    %v1166 = vmul.f32 %v1160, %v1164
    %1168 = vrot.lane.b32.xlu0 %v1166, 32
    %v1169 = vpop.permute.xlu0 %1168
    %v1171 = vadd.f32 %v1161, %v1169
    %v1172 = vtanh.pop %v1171
    %1174 = vrot.lane.b32.xlu0 %v1172, 32
    %v1175 = vpop.permute.xlu0 %1174
    %v1177 = vmul.f32 %v1160, %v1175
    %1179 = vrot.lane.b32.xlu0 %v1177, 64
    %v1180 = vpop.permute.xlu0 %1179
    %1182 = vrot.lane.b32.xlu0 %v1177, 96
    %v1183 = vpop.permute.xlu0 %1182
    %v1185 = vsel %vm385, %v1180, %v1183
    %v1186 = vmul.f32 %v1185, %v205
    %v1187 = vpack.c.bf16 %v1186, %v1186
    %1188 = vst.msk [vmem:[#allocation3 + $0x10] sm:$0xff] %vm322, %v1186
    %v1189 = vld [vmem:[#allocation2 + $0x18] sm:$0xff]
    %v1191 = vsel %vm322, %v1187, 0
    %1193 = vmatpush.bf16.msra.mxu0 0
    %1194 = vmatpush.bf16.msra.mxu0 0
    %1195 = vmatpush.bf16.msra.mxu0 0
    %1196 = vmatpush.bf16.msra.mxu0 0
    %1197 = vmatpush.bf16.msra.mxu0 %v987
    %1198 = vmatpush.bf16.msra.mxu0 %v986
    %1199 = vmatpush.bf16.msra.mxu0 %v985
    %1200 = vmatpush.bf16.msra.mxu0 %v984
    %1201 = vmatmul.bf16.gmra.mxu0 %v1191
    %v1202 = vpop.f32.mrf.mxu0
    %v1203 = vadd.f32 0.0, %v1202
    %v1204 = vpop.f32.mrf.mxu0
    %1205 = vdwg.mxu0
    %v1206 = vadd.f32 %v1189, %v1203
    %v1207 = vxor.u32 %v1206, 2147483648
    %v1208 = vmul.f32 %v1207, 1.442695
    %v1209 = vpow.pop %v1208
    %v1210 = vadd.f32 %v1209, 1.0
    %v1211 = vrcp.pop %v1210
    %v1212 = vmul.f32 %v1210, %v1211
    %v1213 = vsub.f32 1.0, %v1212
    %v1214 = vmul.f32 %v1211, %v1213
    %v1215 = vadd.f32 %v1211, %v1214
    %vm1216 = vweird.f32 %v1210
    %vm1217 = vweird.f32 %v1211
    %vm1218 = vmor %vm1216, %vm1217
    %v1219 = vsel %vm1218, %v1211, %v1215
    %v1220 = vand.u32 2147483647, %v1210
    %vm1221 = vcmp.eq.f32.partialorder %v1220, 8.507059e+37
    %v1222 = vand.u32 %v1210, 2147483648
    %v1223 = vor.u32 1.1754944e-38, %v1222
    %v1224 = vsel %vm1221, %v1223, %v1219
    %v1225 = vmul.f32 1.0, %v1224
    %v1226 = vtanh.pop %v1206
    %v1227 = vsel %vm192, %v1225, %v1226
    %v1228 = vmul.f32 %v1227, %v1171
    %1230 = vrot.lane.b32.xlu0 %v1227, 32
    %v1231 = vpop.permute.xlu0 %1230
    %v1233 = vmul.f32 %v1227, %v1231
    %1235 = vrot.lane.b32.xlu0 %v1233, 32
    %v1236 = vpop.permute.xlu0 %1235
    %v1238 = vadd.f32 %v1228, %v1236
    %v1239 = vtanh.pop %v1238
    %1241 = vrot.lane.b32.xlu0 %v1239, 32
    %v1242 = vpop.permute.xlu0 %1241
    %v1244 = vmul.f32 %v1227, %v1242
    %1246 = vrot.lane.b32.xlu0 %v1244, 64
    %v1247 = vpop.permute.xlu0 %1246
    %1249 = vrot.lane.b32.xlu0 %v1244, 96
    %v1250 = vpop.permute.xlu0 %1249
    %v1252 = vsel %vm385, %v1247, %v1250
    %v1253 = vmul.f32 %v1252, %v205
    %v1254 = vpack.c.bf16 %v1253, %v1253
    %1255 = vst.msk [vmem:[#allocation3 + $0x18] sm:$0xff] %vm322, %v1253
    %v1256 = vld [vmem:[#allocation2 + $0x20] sm:$0xff]
    %v1258 = vsel %vm322, %v1254, 0
    %1260 = vmatpush.bf16.msra.mxu0 0
    %1261 = vmatpush.bf16.msra.mxu0 0
    %1262 = vmatpush.bf16.msra.mxu0 0
    %1263 = vmatpush.bf16.msra.mxu0 0
    %1264 = vmatpush.bf16.msra.mxu0 %v987
    %1265 = vmatpush.bf16.msra.mxu0 %v986
    %1266 = vmatpush.bf16.msra.mxu0 %v985
    %1267 = vmatpush.bf16.msra.mxu0 %v984
    %1268 = vmatmul.bf16.gmra.mxu0 %v1258
    %v1269 = vpop.f32.mrf.mxu0
    %v1270 = vadd.f32 0.0, %v1269
    %v1271 = vpop.f32.mrf.mxu0
    %1272 = vdwg.mxu0
    %v1273 = vadd.f32 %v1256, %v1270
    %v1274 = vxor.u32 %v1273, 2147483648
    %v1275 = vmul.f32 %v1274, 1.442695
    %v1276 = vpow.pop %v1275
    %v1277 = vadd.f32 %v1276, 1.0
    %v1278 = vrcp.pop %v1277
    %v1279 = vmul.f32 %v1277, %v1278
    %v1280 = vsub.f32 1.0, %v1279
    %v1281 = vmul.f32 %v1278, %v1280
    %v1282 = vadd.f32 %v1278, %v1281
    %vm1283 = vweird.f32 %v1277
    %vm1284 = vweird.f32 %v1278
    %vm1285 = vmor %vm1283, %vm1284
    %v1286 = vsel %vm1285, %v1278, %v1282
    %v1287 = vand.u32 2147483647, %v1277
    %vm1288 = vcmp.eq.f32.partialorder %v1287, 8.507059e+37
    %v1289 = vand.u32 %v1277, 2147483648
    %v1290 = vor.u32 1.1754944e-38, %v1289
    %v1291 = vsel %vm1288, %v1290, %v1286
    %v1292 = vmul.f32 1.0, %v1291
    %v1293 = vtanh.pop %v1273
    %v1294 = vsel %vm192, %v1292, %v1293
    %v1295 = vmul.f32 %v1294, %v1238
    %1297 = vrot.lane.b32.xlu0 %v1294, 32
    %v1298 = vpop.permute.xlu0 %1297
    %v1300 = vmul.f32 %v1294, %v1298
    %1302 = vrot.lane.b32.xlu0 %v1300, 32
    %v1303 = vpop.permute.xlu0 %1302
    %v1305 = vadd.f32 %v1295, %v1303
    %v1306 = vtanh.pop %v1305
    %1308 = vrot.lane.b32.xlu0 %v1306, 32
    %v1309 = vpop.permute.xlu0 %1308
    %v1311 = vmul.f32 %v1294, %v1309
    %1313 = vrot.lane.b32.xlu0 %v1311, 64
    %v1314 = vpop.permute.xlu0 %1313
    %1316 = vrot.lane.b32.xlu0 %v1311, 96
    %v1317 = vpop.permute.xlu0 %1316
    %v1319 = vsel %vm385, %v1314, %v1317
    %v1320 = vmul.f32 %v1319, %v205
    %v1321 = vpack.c.bf16 %v1320, %v1320
    %1322 = vst.msk [vmem:[#allocation3 + $0x20] sm:$0xff] %vm322, %v1320
    %v1323 = vld [vmem:[#allocation2 + $0x28] sm:$0xff]
    %v1325 = vsel %vm322, %v1321, 0
    %1327 = vmatpush.bf16.msra.mxu0 0
    %1328 = vmatpush.bf16.msra.mxu0 0
    %1329 = vmatpush.bf16.msra.mxu0 0
    %1330 = vmatpush.bf16.msra.mxu0 0
    %1331 = vmatpush.bf16.msra.mxu0 %v987
    %1332 = vmatpush.bf16.msra.mxu0 %v986
    %1333 = vmatpush.bf16.msra.mxu0 %v985
    %1334 = vmatpush.bf16.msra.mxu0 %v984
    %1335 = vmatmul.bf16.gmra.mxu0 %v1325
    %v1336 = vpop.f32.mrf.mxu0
    %v1337 = vadd.f32 0.0, %v1336
    %v1338 = vpop.f32.mrf.mxu0
    %1339 = vdwg.mxu0
    %v1340 = vadd.f32 %v1323, %v1337
    %v1341 = vxor.u32 %v1340, 2147483648
    %v1342 = vmul.f32 %v1341, 1.442695
    %v1343 = vpow.pop %v1342
    %v1344 = vadd.f32 %v1343, 1.0
    %v1345 = vrcp.pop %v1344
    %v1346 = vmul.f32 %v1344, %v1345
    %v1347 = vsub.f32 1.0, %v1346
    %v1348 = vmul.f32 %v1345, %v1347
    %v1349 = vadd.f32 %v1345, %v1348
    %vm1350 = vweird.f32 %v1344
    %vm1351 = vweird.f32 %v1345
    %vm1352 = vmor %vm1350, %vm1351
    %v1353 = vsel %vm1352, %v1345, %v1349
    %v1354 = vand.u32 2147483647, %v1344
    %vm1355 = vcmp.eq.f32.partialorder %v1354, 8.507059e+37
    %v1356 = vand.u32 %v1344, 2147483648
    %v1357 = vor.u32 1.1754944e-38, %v1356
    %v1358 = vsel %vm1355, %v1357, %v1353
    %v1359 = vmul.f32 1.0, %v1358
    %v1360 = vtanh.pop %v1340
    %v1361 = vsel %vm192, %v1359, %v1360
    %v1362 = vmul.f32 %v1361, %v1305
    %1364 = vrot.lane.b32.xlu0 %v1361, 32
    %v1365 = vpop.permute.xlu0 %1364
    %v1367 = vmul.f32 %v1361, %v1365
    %1369 = vrot.lane.b32.xlu0 %v1367, 32
    %v1370 = vpop.permute.xlu0 %1369
    %v1372 = vadd.f32 %v1362, %v1370
    %v1373 = vtanh.pop %v1372
    %1375 = vrot.lane.b32.xlu0 %v1373, 32
    %v1376 = vpop.permute.xlu0 %1375
    %v1378 = vmul.f32 %v1361, %v1376
    %1380 = vrot.lane.b32.xlu0 %v1378, 64
    %v1381 = vpop.permute.xlu0 %1380
    %1383 = vrot.lane.b32.xlu0 %v1378, 96
    %v1384 = vpop.permute.xlu0 %1383
    %v1386 = vsel %vm385, %v1381, %v1384
    %v1387 = vmul.f32 %v1386, %v205
    %v1388 = vpack.c.bf16 %v1387, %v1387
    %1389 = vst.msk [vmem:[#allocation3 + $0x28] sm:$0xff] %vm322, %v1387
    %v1390 = vld [vmem:[#allocation2 + $0x30] sm:$0xff]
    %v1392 = vsel %vm322, %v1388, 0
    %1394 = vmatpush.bf16.msra.mxu0 0
    %1395 = vmatpush.bf16.msra.mxu0 0
    %1396 = vmatpush.bf16.msra.mxu0 0
    %1397 = vmatpush.bf16.msra.mxu0 0
    %1398 = vmatpush.bf16.msra.mxu0 %v987
    %1399 = vmatpush.bf16.msra.mxu0 %v986
    %1400 = vmatpush.bf16.msra.mxu0 %v985
    %1401 = vmatpush.bf16.msra.mxu0 %v984
    %1402 = vmatmul.bf16.gmra.mxu0 %v1392
    %v1403 = vpop.f32.mrf.mxu0
    %v1404 = vadd.f32 0.0, %v1403
    %v1405 = vpop.f32.mrf.mxu0
    %1406 = vdwg.mxu0
    %v1407 = vadd.f32 %v1390, %v1404
    %v1408 = vxor.u32 %v1407, 2147483648
    %v1409 = vmul.f32 %v1408, 1.442695
    %v1410 = vpow.pop %v1409
    %v1411 = vadd.f32 %v1410, 1.0
    %v1412 = vrcp.pop %v1411
    %v1413 = vmul.f32 %v1411, %v1412
    %v1414 = vsub.f32 1.0, %v1413
    %v1415 = vmul.f32 %v1412, %v1414
    %v1416 = vadd.f32 %v1412, %v1415
    %vm1417 = vweird.f32 %v1411
    %vm1418 = vweird.f32 %v1412
    %vm1419 = vmor %vm1417, %vm1418
    %v1420 = vsel %vm1419, %v1412, %v1416
    %v1421 = vand.u32 2147483647, %v1411
    %vm1422 = vcmp.eq.f32.partialorder %v1421, 8.507059e+37
    %v1423 = vand.u32 %v1411, 2147483648
    %v1424 = vor.u32 1.1754944e-38, %v1423
    %v1425 = vsel %vm1422, %v1424, %v1420
    %v1426 = vmul.f32 1.0, %v1425
    %v1427 = vtanh.pop %v1407
    %v1428 = vsel %vm192, %v1426, %v1427
    %v1429 = vmul.f32 %v1428, %v1372
    %1431 = vrot.lane.b32.xlu0 %v1428, 32
    %v1432 = vpop.permute.xlu0 %1431
    %v1434 = vmul.f32 %v1428, %v1432
    %1436 = vrot.lane.b32.xlu0 %v1434, 32
    %v1437 = vpop.permute.xlu0 %1436
    %v1439 = vadd.f32 %v1429, %v1437
    %v1440 = vtanh.pop %v1439
    %1442 = vrot.lane.b32.xlu0 %v1440, 32
    %v1443 = vpop.permute.xlu0 %1442
    %v1445 = vmul.f32 %v1428, %v1443
    %1447 = vrot.lane.b32.xlu0 %v1445, 64
    %v1448 = vpop.permute.xlu0 %1447
    %1450 = vrot.lane.b32.xlu0 %v1445, 96
    %v1451 = vpop.permute.xlu0 %1450
    %v1453 = vsel %vm385, %v1448, %v1451
    %v1454 = vmul.f32 %v1453, %v205
    %v1455 = vpack.c.bf16 %v1454, %v1454
    %1456 = vst.msk [vmem:[#allocation3 + $0x30] sm:$0xff] %vm322, %v1454
    %v1457 = vld [vmem:[#allocation2 + $0x38] sm:$0xff]
    %v1459 = vsel %vm322, %v1455, 0
    %1461 = vmatpush.bf16.msra.mxu0 0
    %1462 = vmatpush.bf16.msra.mxu0 0
    %1463 = vmatpush.bf16.msra.mxu0 0
    %1464 = vmatpush.bf16.msra.mxu0 0
    %1465 = vmatpush.bf16.msra.mxu0 %v987
    %1466 = vmatpush.bf16.msra.mxu0 %v986
    %1467 = vmatpush.bf16.msra.mxu0 %v985
    %1468 = vmatpush.bf16.msra.mxu0 %v984
    %1469 = vmatmul.bf16.gmra.mxu0 %v1459
    %v1470 = vpop.f32.mrf.mxu0
    %v1471 = vadd.f32 0.0, %v1470
    %v1472 = vpop.f32.mrf.mxu0
    %1473 = vdwg.mxu0
    %v1474 = vadd.f32 %v1457, %v1471
    %v1475 = vxor.u32 %v1474, 2147483648
    %v1476 = vmul.f32 %v1475, 1.442695
    %v1477 = vpow.pop %v1476
    %v1478 = vadd.f32 %v1477, 1.0
    %v1479 = vrcp.pop %v1478
    %v1480 = vmul.f32 %v1478, %v1479
    %v1481 = vsub.f32 1.0, %v1480
    %v1482 = vmul.f32 %v1479, %v1481
    %v1483 = vadd.f32 %v1479, %v1482
    %vm1484 = vweird.f32 %v1478
    %vm1485 = vweird.f32 %v1479
    %vm1486 = vmor %vm1484, %vm1485
    %v1487 = vsel %vm1486, %v1479, %v1483
    %v1488 = vand.u32 2147483647, %v1478
    %vm1489 = vcmp.eq.f32.partialorder %v1488, 8.507059e+37
    %v1490 = vand.u32 %v1478, 2147483648
    %v1491 = vor.u32 1.1754944e-38, %v1490
    %v1492 = vsel %vm1489, %v1491, %v1487
    %v1493 = vmul.f32 1.0, %v1492
    %v1494 = vtanh.pop %v1474
    %v1495 = vsel %vm192, %v1493, %v1494
    %v1496 = vmul.f32 %v1495, %v1439
    %1498 = vrot.lane.b32.xlu0 %v1495, 32
    %v1499 = vpop.permute.xlu0 %1498
    %v1501 = vmul.f32 %v1495, %v1499
    %1503 = vrot.lane.b32.xlu0 %v1501, 32
    %v1504 = vpop.permute.xlu0 %1503
    %v1506 = vadd.f32 %v1496, %v1504
    %v1507 = vtanh.pop %v1506
    %1509 = vrot.lane.b32.xlu0 %v1507, 32
    %v1510 = vpop.permute.xlu0 %1509
    %v1512 = vmul.f32 %v1495, %v1510
    %1514 = vrot.lane.b32.xlu0 %v1512, 64
    %v1515 = vpop.permute.xlu0 %1514
    %1517 = vrot.lane.b32.xlu0 %v1512, 96
    %v1518 = vpop.permute.xlu0 %1517
    %v1520 = vsel %vm385, %v1515, %v1518
    %v1521 = vmul.f32 %v1520, %v205
    %1522 = vst.msk [vmem:[#allocation3 + $0x38] sm:$0xff] %vm322, %v1521
    %v1523 = vld [vmem:[#allocation3] sm:$0xff]
    %v1524 = vld [vmem:[#allocation3 + $0x8] sm:$0xff]
    %v1525 = vld [vmem:[#allocation3 + $0x10] sm:$0xff]
    %v1526 = vld [vmem:[#allocation3 + $0x18] sm:$0xff]
    %v1527 = vld [vmem:[#allocation3 + $0x20] sm:$0xff]
    %v1528 = vld [vmem:[#allocation3 + $0x28] sm:$0xff]
    %v1529 = vld [vmem:[#allocation3 + $0x30] sm:$0xff]
    %v1530 = vld [vmem:[#allocation3 + $0x38] sm:$0xff]
    %v1531 = vpack.c.bf16 %v1524, %v1523
    %v1532 = vpack.c.bf16 %v1526, %v1525
    %v1533 = vpack.c.bf16 %v1528, %v1527
    %v1534 = vpack.c.bf16 %v1530, %v1529
    %v1535 = vld [vmem:[#allocation7] sm:$0xf]
    %v1536 = vld [vmem:[#allocation7 + $0x4] sm:$0xf]
    %v1537 = vld [vmem:[#allocation7 + $0x8] sm:$0xf]
    %v1538 = vld [vmem:[#allocation7 + $0xc] sm:$0xf]
    %v1539 = vld [vmem:[#allocation7 + $0x10] sm:$0xf]
    %v1540 = vld [vmem:[#allocation7 + $0x14] sm:$0xf]
    %v1541 = vld [vmem:[#allocation7 + $0x18] sm:$0xf]
    %v1542 = vld [vmem:[#allocation7 + $0x1c] sm:$0xf]
    %v1543 = vld [vmem:[#allocation10] sm:$0xff]
    %v1544 = vld [vmem:[#allocation10 + $0x8] sm:$0xff]
    %v1545 = vld [vmem:[#allocation10 + $0x10] sm:$0xff]
    %v1546 = vld [vmem:[#allocation10 + $0x18] sm:$0xff]
    %v1547 = vld [vmem:[#allocation10 + $0x20] sm:$0xff]
    %v1548 = vld [vmem:[#allocation10 + $0x28] sm:$0xff]
    %v1549 = vld [vmem:[#allocation10 + $0x30] sm:$0xff]
    %v1550 = vld [vmem:[#allocation10 + $0x38] sm:$0xff]
    %v1559 = vunpack.c.l.b16 %v1535
    %v1560 = vunpack.c.l.b16 %v1536
    %v1561 = vunpack.c.l.b16 %v1537
    %v1562 = vunpack.c.l.b16 %v1538
    %v1563 = vunpack.c.l.b16 %v1539
    %v1564 = vunpack.c.l.b16 %v1540
    %v1565 = vunpack.c.l.b16 %v1541
    %v1566 = vunpack.c.l.b16 %v1542
    %v1567 = vpack.c.b16 %v1560, %v1559
    %v1568 = vpack.c.b16 %v1562, %v1561
    %v1569 = vpack.c.b16 %v1564, %v1563
    %v1570 = vpack.c.b16 %v1566, %v1565
    %v1576 = vsel %vm322, %v1531, 0
    %v1579 = vsel %vm322, %v1532, 0
    %v1582 = vsel %vm322, %v1533, 0
    %v1585 = vsel %vm322, %v1534, 0
    %1587 = vmatpush.bf16.msra.mxu0 0
    %1588 = vmatpush.bf16.msra.mxu0 0
    %1589 = vmatpush.bf16.msra.mxu0 0
    %1590 = vmatpush.bf16.msra.mxu0 0
    %1591 = vmatpush.bf16.msra.mxu0 %v1570
    %1592 = vmatpush.bf16.msra.mxu0 %v1569
    %1593 = vmatpush.bf16.msra.mxu0 %v1568
    %1594 = vmatpush.bf16.msra.mxu0 %v1567
    %1595 = vmatmul.bf16.gmra.mxu0 %v1576
    %v1596 = vpop.f32.mrf.mxu0
    %v1597 = vadd.f32 %v1543, %v1596
    %v1598 = vpop.f32.mrf.mxu0
    %v1599 = vadd.f32 %v1544, %v1598
    %1600 = vmatmul.bf16.gmra.mxu0 %v1579
    %v1601 = vpop.f32.mrf.mxu0
    %v1602 = vadd.f32 %v1545, %v1601
    %v1603 = vpop.f32.mrf.mxu0
    %v1604 = vadd.f32 %v1546, %v1603
    %1605 = vmatmul.bf16.gmra.mxu0 %v1582
    %v1606 = vpop.f32.mrf.mxu0
    %v1607 = vadd.f32 %v1547, %v1606
    %v1608 = vpop.f32.mrf.mxu0
    %v1609 = vadd.f32 %v1548, %v1608
    %1610 = vmatmul.bf16.gmra.mxu0 %v1585
    %v1611 = vpop.f32.mrf.mxu0
    %v1612 = vadd.f32 %v1549, %v1611
    %v1613 = vpop.f32.mrf.mxu0
    %v1614 = vadd.f32 %v1550, %v1613
    %1615 = vdwg.mxu0
    %1616 = vst [vmem:[#allocation2] sm:$0xff] %v1597
    %1617 = vst [vmem:[#allocation2 + $0x8] sm:$0xff] %v1599
    %1618 = vst [vmem:[#allocation2 + $0x10] sm:$0xff] %v1602
    %1619 = vst [vmem:[#allocation2 + $0x18] sm:$0xff] %v1604
    %1620 = vst [vmem:[#allocation2 + $0x20] sm:$0xff] %v1607
    %1621 = vst [vmem:[#allocation2 + $0x28] sm:$0xff] %v1609
    %1622 = vst [vmem:[#allocation2 + $0x30] sm:$0xff] %v1612
    %1623 = vst [vmem:[#allocation2 + $0x38] sm:$0xff] %v1614
    %v1624 = vld [vmem:[#allocation9] sm:$0xf]
    %v1625 = vld [vmem:[#allocation9 + $0x4] sm:$0xf]
    %v1626 = vld [vmem:[#allocation9 + $0x8] sm:$0xf]
    %v1627 = vld [vmem:[#allocation9 + $0xc] sm:$0xf]
    %v1628 = vld [vmem:[#allocation9 + $0x10] sm:$0xf]
    %v1629 = vld [vmem:[#allocation9 + $0x14] sm:$0xf]
    %v1630 = vld [vmem:[#allocation9 + $0x18] sm:$0xf]
    %v1631 = vld [vmem:[#allocation9 + $0x1c] sm:$0xf]
    %v1632 = vld [vmem:[#allocation2] sm:$0xff]
    %v1641 = vunpack.c.l.b16 %v1624
    %v1642 = vunpack.c.l.b16 %v1625
    %v1643 = vunpack.c.l.b16 %v1626
    %v1644 = vunpack.c.l.b16 %v1627
    %v1645 = vunpack.c.l.b16 %v1628
    %v1646 = vunpack.c.l.b16 %v1629
    %v1647 = vunpack.c.l.b16 %v1630
    %v1648 = vunpack.c.l.b16 %v1631
    %v1649 = vpack.c.b16 %v1642, %v1641
    %v1650 = vpack.c.b16 %v1644, %v1643
    %v1651 = vpack.c.b16 %v1646, %v1645
    %v1652 = vpack.c.b16 %v1648, %v1647
    %1657 = vmatpush.bf16.msra.mxu0 0
    %1658 = vmatpush.bf16.msra.mxu0 0
    %1659 = vmatpush.bf16.msra.mxu0 0
    %1660 = vmatpush.bf16.msra.mxu0 0
    %1661 = vmatpush.bf16.msra.mxu0 %v1652
    %1662 = vmatpush.bf16.msra.mxu0 %v1651
    %1663 = vmatpush.bf16.msra.mxu0 %v1650
    %1664 = vmatpush.bf16.msra.mxu0 %v1649
    %1665 = vmatmul.bf16.gmra.mxu0 %v324
    %v1666 = vpop.f32.mrf.mxu0
    %v1667 = vadd.f32 0.0, %v1666
    %v1668 = vpop.f32.mrf.mxu0
    %1669 = vdwg.mxu0
    %v1670 = vadd.f32 %v1632, %v1667
    %v1671 = vxor.u32 %v1670, 2147483648
    %v1672 = vmul.f32 %v1671, 1.442695
    %v1673 = vpow.pop %v1672
    %v1674 = vadd.f32 %v1673, 1.0
    %v1675 = vrcp.pop %v1674
    %v1676 = vmul.f32 %v1674, %v1675
    %v1677 = vsub.f32 1.0, %v1676
    %v1678 = vmul.f32 %v1675, %v1677
    %v1679 = vadd.f32 %v1675, %v1678
    %vm1680 = vweird.f32 %v1674
    %vm1681 = vweird.f32 %v1675
    %vm1682 = vmor %vm1680, %vm1681
    %v1683 = vsel %vm1682, %v1675, %v1679
    %v1684 = vand.u32 2147483647, %v1674
    %vm1685 = vcmp.eq.f32.partialorder %v1684, 8.507059e+37
    %v1686 = vand.u32 %v1674, 2147483648
    %v1687 = vor.u32 1.1754944e-38, %v1686
    %v1688 = vsel %vm1685, %v1687, %v1683
    %v1689 = vmul.f32 1.0, %v1688
    %v1690 = vtanh.pop %v1670
    %v1691 = vsel %vm192, %v1689, %v1690
    %v1692 = vmul.f32 %v1691, 0.0
    %1694 = vrot.lane.b32.xlu0 %v1691, 32
    %v1695 = vpop.permute.xlu0 %1694
    %v1697 = vmul.f32 %v1691, %v1695
    %1699 = vrot.lane.b32.xlu0 %v1697, 32
    %v1700 = vpop.permute.xlu0 %1699
    %v1702 = vadd.f32 %v1692, %v1700
    %v1703 = vtanh.pop %v1702
    %1705 = vrot.lane.b32.xlu0 %v1703, 32
    %v1706 = vpop.permute.xlu0 %1705
    %v1708 = vmul.f32 %v1691, %v1706
    %1710 = vrot.lane.b32.xlu0 %v1708, 64
    %v1711 = vpop.permute.xlu0 %1710
    %1713 = vrot.lane.b32.xlu0 %v1708, 96
    %v1714 = vpop.permute.xlu0 %1713
    %v1716 = vsel %vm385, %v1711, %v1714
    %v1717 = vmul.f32 %v1716, %v205
    %v1718 = vpack.c.bf16 %v1717, %v1717
    %v1719 = vld [vmem:[#allocation2 + $0x8] sm:$0xff]
    %v1721 = vsel %vm322, %v1718, 0
    %1723 = vmatpush.bf16.msra.mxu0 0
    %1724 = vmatpush.bf16.msra.mxu0 0
    %1725 = vmatpush.bf16.msra.mxu0 0
    %1726 = vmatpush.bf16.msra.mxu0 0
    %1727 = vmatpush.bf16.msra.mxu0 %v1652
    %1728 = vmatpush.bf16.msra.mxu0 %v1651
    %1729 = vmatpush.bf16.msra.mxu0 %v1650
    %1730 = vmatpush.bf16.msra.mxu0 %v1649
    %1731 = vmatmul.bf16.gmra.mxu0 %v1721
    %v1732 = vpop.f32.mrf.mxu0
    %v1733 = vadd.f32 0.0, %v1732
    %v1734 = vpop.f32.mrf.mxu0
    %1735 = vdwg.mxu0
    %v1736 = vadd.f32 %v1719, %v1733
    %v1737 = vxor.u32 %v1736, 2147483648
    %v1738 = vmul.f32 %v1737, 1.442695
    %v1739 = vpow.pop %v1738
    %v1740 = vadd.f32 %v1739, 1.0
    %v1741 = vrcp.pop %v1740
    %v1742 = vmul.f32 %v1740, %v1741
    %v1743 = vsub.f32 1.0, %v1742
    %v1744 = vmul.f32 %v1741, %v1743
    %v1745 = vadd.f32 %v1741, %v1744
    %vm1746 = vweird.f32 %v1740
    %vm1747 = vweird.f32 %v1741
    %vm1748 = vmor %vm1746, %vm1747
    %v1749 = vsel %vm1748, %v1741, %v1745
    %v1750 = vand.u32 2147483647, %v1740
    %vm1751 = vcmp.eq.f32.partialorder %v1750, 8.507059e+37
    %v1752 = vand.u32 %v1740, 2147483648
    %v1753 = vor.u32 1.1754944e-38, %v1752
    %v1754 = vsel %vm1751, %v1753, %v1749
    %v1755 = vmul.f32 1.0, %v1754
    %v1756 = vtanh.pop %v1736
    %v1757 = vsel %vm192, %v1755, %v1756
    %v1758 = vmul.f32 %v1757, %v1702
    %1760 = vrot.lane.b32.xlu0 %v1757, 32
    %v1761 = vpop.permute.xlu0 %1760
    %v1763 = vmul.f32 %v1757, %v1761
    %1765 = vrot.lane.b32.xlu0 %v1763, 32
    %v1766 = vpop.permute.xlu0 %1765
    %v1768 = vadd.f32 %v1758, %v1766
    %v1769 = vtanh.pop %v1768
    %1771 = vrot.lane.b32.xlu0 %v1769, 32
    %v1772 = vpop.permute.xlu0 %1771
    %v1774 = vmul.f32 %v1757, %v1772
    %1776 = vrot.lane.b32.xlu0 %v1774, 64
    %v1777 = vpop.permute.xlu0 %1776
    %1779 = vrot.lane.b32.xlu0 %v1774, 96
    %v1780 = vpop.permute.xlu0 %1779
    %v1782 = vsel %vm385, %v1777, %v1780
    %v1783 = vmul.f32 %v1782, %v205
    %v1784 = vpack.c.bf16 %v1783, %v1783
    %v1785 = vld [vmem:[#allocation2 + $0x10] sm:$0xff]
    %v1787 = vsel %vm322, %v1784, 0
    %1789 = vmatpush.bf16.msra.mxu0 0
    %1790 = vmatpush.bf16.msra.mxu0 0
    %1791 = vmatpush.bf16.msra.mxu0 0
    %1792 = vmatpush.bf16.msra.mxu0 0
    %1793 = vmatpush.bf16.msra.mxu0 %v1652
    %1794 = vmatpush.bf16.msra.mxu0 %v1651
    %1795 = vmatpush.bf16.msra.mxu0 %v1650
    %1796 = vmatpush.bf16.msra.mxu0 %v1649
    %1797 = vmatmul.bf16.gmra.mxu0 %v1787
    %v1798 = vpop.f32.mrf.mxu0
    %v1799 = vadd.f32 0.0, %v1798
    %v1800 = vpop.f32.mrf.mxu0
    %1801 = vdwg.mxu0
    %v1802 = vadd.f32 %v1785, %v1799
    %v1803 = vxor.u32 %v1802, 2147483648
    %v1804 = vmul.f32 %v1803, 1.442695
    %v1805 = vpow.pop %v1804
    %v1806 = vadd.f32 %v1805, 1.0
    %v1807 = vrcp.pop %v1806
    %v1808 = vmul.f32 %v1806, %v1807
    %v1809 = vsub.f32 1.0, %v1808
    %v1810 = vmul.f32 %v1807, %v1809
    %v1811 = vadd.f32 %v1807, %v1810
    %vm1812 = vweird.f32 %v1806
    %vm1813 = vweird.f32 %v1807
    %vm1814 = vmor %vm1812, %vm1813
    %v1815 = vsel %vm1814, %v1807, %v1811
    %v1816 = vand.u32 2147483647, %v1806
    %vm1817 = vcmp.eq.f32.partialorder %v1816, 8.507059e+37
    %v1818 = vand.u32 %v1806, 2147483648
    %v1819 = vor.u32 1.1754944e-38, %v1818
    %v1820 = vsel %vm1817, %v1819, %v1815
    %v1821 = vmul.f32 1.0, %v1820
    %v1822 = vtanh.pop %v1802
    %v1823 = vsel %vm192, %v1821, %v1822
    %v1824 = vmul.f32 %v1823, %v1768
    %1826 = vrot.lane.b32.xlu0 %v1823, 32
    %v1827 = vpop.permute.xlu0 %1826
    %v1829 = vmul.f32 %v1823, %v1827
    %1831 = vrot.lane.b32.xlu0 %v1829, 32
    %v1832 = vpop.permute.xlu0 %1831
    %v1834 = vadd.f32 %v1824, %v1832
    %v1835 = vtanh.pop %v1834
    %1837 = vrot.lane.b32.xlu0 %v1835, 32
    %v1838 = vpop.permute.xlu0 %1837
    %v1840 = vmul.f32 %v1823, %v1838
    %1842 = vrot.lane.b32.xlu0 %v1840, 64
    %v1843 = vpop.permute.xlu0 %1842
    %1845 = vrot.lane.b32.xlu0 %v1840, 96
    %v1846 = vpop.permute.xlu0 %1845
    %v1848 = vsel %vm385, %v1843, %v1846
    %v1849 = vmul.f32 %v1848, %v205
    %v1850 = vpack.c.bf16 %v1849, %v1849
    %v1851 = vld [vmem:[#allocation2 + $0x18] sm:$0xff]
    %v1853 = vsel %vm322, %v1850, 0
    %1855 = vmatpush.bf16.msra.mxu0 0
    %1856 = vmatpush.bf16.msra.mxu0 0
    %1857 = vmatpush.bf16.msra.mxu0 0
    %1858 = vmatpush.bf16.msra.mxu0 0
    %1859 = vmatpush.bf16.msra.mxu0 %v1652
    %1860 = vmatpush.bf16.msra.mxu0 %v1651
    %1861 = vmatpush.bf16.msra.mxu0 %v1650
    %1862 = vmatpush.bf16.msra.mxu0 %v1649
    %1863 = vmatmul.bf16.gmra.mxu0 %v1853
    %v1864 = vpop.f32.mrf.mxu0
    %v1865 = vadd.f32 0.0, %v1864
    %v1866 = vpop.f32.mrf.mxu0
    %1867 = vdwg.mxu0
    %v1868 = vadd.f32 %v1851, %v1865
    %v1869 = vxor.u32 %v1868, 2147483648
    %v1870 = vmul.f32 %v1869, 1.442695
    %v1871 = vpow.pop %v1870
    %v1872 = vadd.f32 %v1871, 1.0
    %v1873 = vrcp.pop %v1872
    %v1874 = vmul.f32 %v1872, %v1873
    %v1875 = vsub.f32 1.0, %v1874
    %v1876 = vmul.f32 %v1873, %v1875
    %v1877 = vadd.f32 %v1873, %v1876
    %vm1878 = vweird.f32 %v1872
    %vm1879 = vweird.f32 %v1873
    %vm1880 = vmor %vm1878, %vm1879
    %v1881 = vsel %vm1880, %v1873, %v1877
    %v1882 = vand.u32 2147483647, %v1872
    %vm1883 = vcmp.eq.f32.partialorder %v1882, 8.507059e+37
    %v1884 = vand.u32 %v1872, 2147483648
    %v1885 = vor.u32 1.1754944e-38, %v1884
    %v1886 = vsel %vm1883, %v1885, %v1881
    %v1887 = vmul.f32 1.0, %v1886
    %v1888 = vtanh.pop %v1868
    %v1889 = vsel %vm192, %v1887, %v1888
    %v1890 = vmul.f32 %v1889, %v1834
    %1892 = vrot.lane.b32.xlu0 %v1889, 32
    %v1893 = vpop.permute.xlu0 %1892
    %v1895 = vmul.f32 %v1889, %v1893
    %1897 = vrot.lane.b32.xlu0 %v1895, 32
    %v1898 = vpop.permute.xlu0 %1897
    %v1900 = vadd.f32 %v1890, %v1898
    %v1901 = vtanh.pop %v1900
    %1903 = vrot.lane.b32.xlu0 %v1901, 32
    %v1904 = vpop.permute.xlu0 %1903
    %v1906 = vmul.f32 %v1889, %v1904
    %1908 = vrot.lane.b32.xlu0 %v1906, 64
    %v1909 = vpop.permute.xlu0 %1908
    %1911 = vrot.lane.b32.xlu0 %v1906, 96
    %v1912 = vpop.permute.xlu0 %1911
    %v1914 = vsel %vm385, %v1909, %v1912
    %v1915 = vmul.f32 %v1914, %v205
    %v1916 = vpack.c.bf16 %v1915, %v1915
    %v1917 = vld [vmem:[#allocation2 + $0x20] sm:$0xff]
    %v1919 = vsel %vm322, %v1916, 0
    %1921 = vmatpush.bf16.msra.mxu0 0
    %1922 = vmatpush.bf16.msra.mxu0 0
    %1923 = vmatpush.bf16.msra.mxu0 0
    %1924 = vmatpush.bf16.msra.mxu0 0
    %1925 = vmatpush.bf16.msra.mxu0 %v1652
    %1926 = vmatpush.bf16.msra.mxu0 %v1651
    %1927 = vmatpush.bf16.msra.mxu0 %v1650
    %1928 = vmatpush.bf16.msra.mxu0 %v1649
    %1929 = vmatmul.bf16.gmra.mxu0 %v1919
    %v1930 = vpop.f32.mrf.mxu0
    %v1931 = vadd.f32 0.0, %v1930
    %v1932 = vpop.f32.mrf.mxu0
    %1933 = vdwg.mxu0
    %v1934 = vadd.f32 %v1917, %v1931
    %v1935 = vxor.u32 %v1934, 2147483648
    %v1936 = vmul.f32 %v1935, 1.442695
    %v1937 = vpow.pop %v1936
    %v1938 = vadd.f32 %v1937, 1.0
    %v1939 = vrcp.pop %v1938
    %v1940 = vmul.f32 %v1938, %v1939
    %v1941 = vsub.f32 1.0, %v1940
    %v1942 = vmul.f32 %v1939, %v1941
    %v1943 = vadd.f32 %v1939, %v1942
    %vm1944 = vweird.f32 %v1938
    %vm1945 = vweird.f32 %v1939
    %vm1946 = vmor %vm1944, %vm1945
    %v1947 = vsel %vm1946, %v1939, %v1943
    %v1948 = vand.u32 2147483647, %v1938
    %vm1949 = vcmp.eq.f32.partialorder %v1948, 8.507059e+37
    %v1950 = vand.u32 %v1938, 2147483648
    %v1951 = vor.u32 1.1754944e-38, %v1950
    %v1952 = vsel %vm1949, %v1951, %v1947
    %v1953 = vmul.f32 1.0, %v1952
    %v1954 = vtanh.pop %v1934
    %v1955 = vsel %vm192, %v1953, %v1954
    %v1956 = vmul.f32 %v1955, %v1900
    %1958 = vrot.lane.b32.xlu0 %v1955, 32
    %v1959 = vpop.permute.xlu0 %1958
    %v1961 = vmul.f32 %v1955, %v1959
    %1963 = vrot.lane.b32.xlu0 %v1961, 32
    %v1964 = vpop.permute.xlu0 %1963
    %v1966 = vadd.f32 %v1956, %v1964
    %v1967 = vtanh.pop %v1966
    %1969 = vrot.lane.b32.xlu0 %v1967, 32
    %v1970 = vpop.permute.xlu0 %1969
    %v1972 = vmul.f32 %v1955, %v1970
    %1974 = vrot.lane.b32.xlu0 %v1972, 64
    %v1975 = vpop.permute.xlu0 %1974
    %1977 = vrot.lane.b32.xlu0 %v1972, 96
    %v1978 = vpop.permute.xlu0 %1977
    %v1980 = vsel %vm385, %v1975, %v1978
    %v1981 = vmul.f32 %v1980, %v205
    %v1982 = vpack.c.bf16 %v1981, %v1981
    %v1983 = vld [vmem:[#allocation2 + $0x28] sm:$0xff]
    %v1985 = vsel %vm322, %v1982, 0
    %1987 = vmatpush.bf16.msra.mxu0 0
    %1988 = vmatpush.bf16.msra.mxu0 0
    %1989 = vmatpush.bf16.msra.mxu0 0
    %1990 = vmatpush.bf16.msra.mxu0 0
    %1991 = vmatpush.bf16.msra.mxu0 %v1652
    %1992 = vmatpush.bf16.msra.mxu0 %v1651
    %1993 = vmatpush.bf16.msra.mxu0 %v1650
    %1994 = vmatpush.bf16.msra.mxu0 %v1649
    %1995 = vmatmul.bf16.gmra.mxu0 %v1985
    %v1996 = vpop.f32.mrf.mxu0
    %v1997 = vadd.f32 0.0, %v1996
    %v1998 = vpop.f32.mrf.mxu0
    %1999 = vdwg.mxu0
    %v2000 = vadd.f32 %v1983, %v1997
    %v2001 = vxor.u32 %v2000, 2147483648
    %v2002 = vmul.f32 %v2001, 1.442695
    %v2003 = vpow.pop %v2002
    %v2004 = vadd.f32 %v2003, 1.0
    %v2005 = vrcp.pop %v2004
    %v2006 = vmul.f32 %v2004, %v2005
    %v2007 = vsub.f32 1.0, %v2006
    %v2008 = vmul.f32 %v2005, %v2007
    %v2009 = vadd.f32 %v2005, %v2008
    %vm2010 = vweird.f32 %v2004
    %vm2011 = vweird.f32 %v2005
    %vm2012 = vmor %vm2010, %vm2011
    %v2013 = vsel %vm2012, %v2005, %v2009
    %v2014 = vand.u32 2147483647, %v2004
    %vm2015 = vcmp.eq.f32.partialorder %v2014, 8.507059e+37
    %v2016 = vand.u32 %v2004, 2147483648
    %v2017 = vor.u32 1.1754944e-38, %v2016
    %v2018 = vsel %vm2015, %v2017, %v2013
    %v2019 = vmul.f32 1.0, %v2018
    %v2020 = vtanh.pop %v2000
    %v2021 = vsel %vm192, %v2019, %v2020
    %v2022 = vmul.f32 %v2021, %v1966
    %2024 = vrot.lane.b32.xlu0 %v2021, 32
    %v2025 = vpop.permute.xlu0 %2024
    %v2027 = vmul.f32 %v2021, %v2025
    %2029 = vrot.lane.b32.xlu0 %v2027, 32
    %v2030 = vpop.permute.xlu0 %2029
    %v2032 = vadd.f32 %v2022, %v2030
    %v2033 = vtanh.pop %v2032
    %2035 = vrot.lane.b32.xlu0 %v2033, 32
    %v2036 = vpop.permute.xlu0 %2035
    %v2038 = vmul.f32 %v2021, %v2036
    %2040 = vrot.lane.b32.xlu0 %v2038, 64
    %v2041 = vpop.permute.xlu0 %2040
    %2043 = vrot.lane.b32.xlu0 %v2038, 96
    %v2044 = vpop.permute.xlu0 %2043
    %v2046 = vsel %vm385, %v2041, %v2044
    %v2047 = vmul.f32 %v2046, %v205
    %v2048 = vpack.c.bf16 %v2047, %v2047
    %v2049 = vld [vmem:[#allocation2 + $0x30] sm:$0xff]
    %v2051 = vsel %vm322, %v2048, 0
    %2053 = vmatpush.bf16.msra.mxu0 0
    %2054 = vmatpush.bf16.msra.mxu0 0
    %2055 = vmatpush.bf16.msra.mxu0 0
    %2056 = vmatpush.bf16.msra.mxu0 0
    %2057 = vmatpush.bf16.msra.mxu0 %v1652
    %2058 = vmatpush.bf16.msra.mxu0 %v1651
    %2059 = vmatpush.bf16.msra.mxu0 %v1650
    %2060 = vmatpush.bf16.msra.mxu0 %v1649
    %2061 = vmatmul.bf16.gmra.mxu0 %v2051
    %v2062 = vpop.f32.mrf.mxu0
    %v2063 = vadd.f32 0.0, %v2062
    %v2064 = vpop.f32.mrf.mxu0
    %2065 = vdwg.mxu0
    %v2066 = vadd.f32 %v2049, %v2063
    %v2067 = vxor.u32 %v2066, 2147483648
    %v2068 = vmul.f32 %v2067, 1.442695
    %v2069 = vpow.pop %v2068
    %v2070 = vadd.f32 %v2069, 1.0
    %v2071 = vrcp.pop %v2070
    %v2072 = vmul.f32 %v2070, %v2071
    %v2073 = vsub.f32 1.0, %v2072
    %v2074 = vmul.f32 %v2071, %v2073
    %v2075 = vadd.f32 %v2071, %v2074
    %vm2076 = vweird.f32 %v2070
    %vm2077 = vweird.f32 %v2071
    %vm2078 = vmor %vm2076, %vm2077
    %v2079 = vsel %vm2078, %v2071, %v2075
    %v2080 = vand.u32 2147483647, %v2070
    %vm2081 = vcmp.eq.f32.partialorder %v2080, 8.507059e+37
    %v2082 = vand.u32 %v2070, 2147483648
    %v2083 = vor.u32 1.1754944e-38, %v2082
    %v2084 = vsel %vm2081, %v2083, %v2079
    %v2085 = vmul.f32 1.0, %v2084
    %v2086 = vtanh.pop %v2066
    %v2087 = vsel %vm192, %v2085, %v2086
    %v2088 = vmul.f32 %v2087, %v2032
    %2090 = vrot.lane.b32.xlu0 %v2087, 32
    %v2091 = vpop.permute.xlu0 %2090
    %v2093 = vmul.f32 %v2087, %v2091
    %2095 = vrot.lane.b32.xlu0 %v2093, 32
    %v2096 = vpop.permute.xlu0 %2095
    %v2098 = vadd.f32 %v2088, %v2096
    %v2099 = vtanh.pop %v2098
    %2101 = vrot.lane.b32.xlu0 %v2099, 32
    %v2102 = vpop.permute.xlu0 %2101
    %v2104 = vmul.f32 %v2087, %v2102
    %2106 = vrot.lane.b32.xlu0 %v2104, 64
    %v2107 = vpop.permute.xlu0 %2106
    %2109 = vrot.lane.b32.xlu0 %v2104, 96
    %v2110 = vpop.permute.xlu0 %2109
    %v2112 = vsel %vm385, %v2107, %v2110
    %v2113 = vmul.f32 %v2112, %v205
    %v2114 = vpack.c.bf16 %v2113, %v2113
    %v2115 = vld [vmem:[#allocation2 + $0x38] sm:$0xff]
    %v2117 = vsel %vm322, %v2114, 0
    %2119 = vmatpush.bf16.msra.mxu0 0
    %2120 = vmatpush.bf16.msra.mxu0 0
    %2121 = vmatpush.bf16.msra.mxu0 0
    %2122 = vmatpush.bf16.msra.mxu0 0
    %2123 = vmatpush.bf16.msra.mxu0 %v1652
    %2124 = vmatpush.bf16.msra.mxu0 %v1651
    %2125 = vmatpush.bf16.msra.mxu0 %v1650
    %2126 = vmatpush.bf16.msra.mxu0 %v1649
    %2127 = vmatmul.bf16.gmra.mxu0 %v2117
    %v2128 = vpop.f32.mrf.mxu0
    %v2129 = vadd.f32 0.0, %v2128
    %v2130 = vpop.f32.mrf.mxu0
    %2131 = vdwg.mxu0
    %v2132 = vadd.f32 %v2115, %v2129
    %v2133 = vxor.u32 %v2132, 2147483648
    %v2134 = vmul.f32 %v2133, 1.442695
    %v2135 = vpow.pop %v2134
    %v2136 = vadd.f32 %v2135, 1.0
    %v2137 = vrcp.pop %v2136
    %v2138 = vmul.f32 %v2136, %v2137
    %v2139 = vsub.f32 1.0, %v2138
    %v2140 = vmul.f32 %v2137, %v2139
    %v2141 = vadd.f32 %v2137, %v2140
    %vm2142 = vweird.f32 %v2136
    %vm2143 = vweird.f32 %v2137
    %vm2144 = vmor %vm2142, %vm2143
    %v2145 = vsel %vm2144, %v2137, %v2141
    %v2146 = vand.u32 2147483647, %v2136
    %vm2147 = vcmp.eq.f32.partialorder %v2146, 8.507059e+37
    %v2148 = vand.u32 %v2136, 2147483648
    %v2149 = vor.u32 1.1754944e-38, %v2148
    %v2150 = vsel %vm2147, %v2149, %v2145
    %v2151 = vmul.f32 1.0, %v2150
    %v2152 = vtanh.pop %v2132
    %v2153 = vsel %vm192, %v2151, %v2152
    %v2154 = vmul.f32 %v2153, %v2098
    %2156 = vrot.lane.b32.xlu0 %v2153, 32
    %v2157 = vpop.permute.xlu0 %2156
    %v2159 = vmul.f32 %v2153, %v2157
    %2161 = vrot.lane.b32.xlu0 %v2159, 32
    %v2162 = vpop.permute.xlu0 %2161
    %v2164 = vadd.f32 %v2154, %v2162
    %v2165 = vtanh.pop %v2164
    %2167 = vrot.lane.b32.xlu0 %v2165, 32
    %v2168 = vpop.permute.xlu0 %2167
    %v2170 = vmul.f32 %v2153, %v2168
    %2172 = vrot.lane.b32.xlu0 %v2170, 64
    %v2173 = vpop.permute.xlu0 %2172
    %2175 = vrot.lane.b32.xlu0 %v2170, 96
    %v2176 = vpop.permute.xlu0 %2175
    %v2178 = vsel %vm385, %v2173, %v2176
    %v2179 = vmul.f32 %v2178, %v205
    %v2181 = vrot.slane %v2179, 2
    %v2183 = vadd.f32 %v2179, %v2181
    %v2184 = vpack.c.bf16 %v2183, %v2183
    %v2185 = vld [vmem:[#allocation12] sm:$0xf]
    %v2186 = vld [vmem:[#allocation12 + $0x4] sm:$0xf]
    %v2187 = vld [vmem:[#allocation12 + $0x8] sm:$0xf]
    %v2188 = vld [vmem:[#allocation12 + $0xc] sm:$0xf]
    %v2189 = vld [vmem:[#allocation12 + $0x10] sm:$0xf]
    %v2190 = vld [vmem:[#allocation12 + $0x14] sm:$0xf]
    %v2191 = vld [vmem:[#allocation12 + $0x18] sm:$0xf]
    %v2192 = vld [vmem:[#allocation12 + $0x1c] sm:$0xf]
    %v2193 = vld [vmem:[%s10] sm:$0x1]
    %v2195 = vperm.slane %v2193, 0
    %v2205 = vunpack.c.l.b16 %v2185
    %v2206 = vunpack.c.l.b16 %v2186
    %v2207 = vunpack.c.l.b16 %v2187
    %v2208 = vunpack.c.l.b16 %v2188
    %v2209 = vunpack.c.l.b16 %v2189
    %v2210 = vunpack.c.l.b16 %v2190
    %v2211 = vunpack.c.l.b16 %v2191
    %v2212 = vunpack.c.l.b16 %v2192
    %v2213 = vpack.c.b16 %v2206, %v2205
    %v2214 = vpack.c.b16 %v2208, %v2207
    %v2215 = vpack.c.b16 %v2210, %v2209
    %v2216 = vpack.c.b16 %v2212, %v2211
    %v2222 = vsel %vm322, %v2184, 0
    %2224 = vmatpush.bf16.msra.mxu0 0
    %2225 = vmatpush.bf16.msra.mxu0 0
    %2226 = vmatpush.bf16.msra.mxu0 0
    %2227 = vmatpush.bf16.msra.mxu0 0
    %2228 = vmatpush.bf16.msra.mxu0 %v2216
    %2229 = vmatpush.bf16.msra.mxu0 %v2215
    %2230 = vmatpush.bf16.msra.mxu0 %v2214
    %2231 = vmatpush.bf16.msra.mxu0 %v2213
    %2232 = vmatmul.bf16.gmra.mxu0 %v2222
    %v2233 = vpop.f32.mrf.mxu0
    %v2234 = vadd.f32 %v2195, %v2233
    %v2235 = vpop.f32.mrf.mxu0
    %2236 = vdwg.mxu0
    %v2237 = vmax.f32 %v2234, 0.0
    %v2238 = vpack.c.bf16 %v2237, %v2237
    %v2239 = vld [vmem:[#allocation13] sm:$0xf]
    %v2240 = vld [vmem:[#allocation13 + $0x4] sm:$0xf]
    %v2241 = vld [vmem:[#allocation13 + $0x8] sm:$0xf]
    %v2242 = vld [vmem:[#allocation13 + $0xc] sm:$0xf]
    %v2243 = vld [vmem:[#allocation13 + $0x10] sm:$0xf]
    %v2244 = vld [vmem:[#allocation13 + $0x14] sm:$0xf]
    %v2245 = vld [vmem:[#allocation13 + $0x18] sm:$0xf]
    %v2246 = vld [vmem:[#allocation13 + $0x1c] sm:$0xf]
    %v2247 = vld [vmem:[%s12] sm:$0x1]
    %v2249 = vperm.slane %v2247, 0
    %v2259 = vunpack.c.l.b16 %v2239
    %v2260 = vunpack.c.l.b16 %v2240
    %v2261 = vunpack.c.l.b16 %v2241
    %v2262 = vunpack.c.l.b16 %v2242
    %v2263 = vunpack.c.l.b16 %v2243
    %v2264 = vunpack.c.l.b16 %v2244
    %v2265 = vunpack.c.l.b16 %v2245
    %v2266 = vunpack.c.l.b16 %v2246
    %v2267 = vpack.c.b16 %v2260, %v2259
    %v2268 = vpack.c.b16 %v2262, %v2261
    %v2269 = vpack.c.b16 %v2264, %v2263
    %v2270 = vpack.c.b16 %v2266, %v2265
    %v2276 = vsel %vm322, %v2238, 0
    %2278 = vmatpush.bf16.msra.mxu0 0
    %2279 = vmatpush.bf16.msra.mxu0 0
    %2280 = vmatpush.bf16.msra.mxu0 0
    %2281 = vmatpush.bf16.msra.mxu0 0
    %2282 = vmatpush.bf16.msra.mxu0 %v2270
    %2283 = vmatpush.bf16.msra.mxu0 %v2269
    %2284 = vmatpush.bf16.msra.mxu0 %v2268
    %2285 = vmatpush.bf16.msra.mxu0 %v2267
    %2286 = vmatmul.bf16.gmra.mxu0 %v2276
    %v2287 = vpop.f32.mrf.mxu0
    %v2288 = vadd.f32 %v2249, %v2287
    %v2289 = vpop.f32.mrf.mxu0
    %2290 = vdwg.mxu0
    %v2291 = vmax.f32 %v2288, 0.0
    %v2292 = vpack.c.bf16 %v2291, %v2291
    %v2293 = vld [vmem:[#allocation15] sm:$0xf]
    %v2294 = vld [vmem:[#allocation15 + $0x4] sm:$0xf]
    %v2295 = vld [vmem:[#allocation15 + $0x8] sm:$0xf]
    %v2296 = vld [vmem:[#allocation15 + $0xc] sm:$0xf]
    %v2297 = vld [vmem:[#allocation15 + $0x10] sm:$0xf]
    %v2298 = vld [vmem:[#allocation15 + $0x14] sm:$0xf]
    %v2299 = vld [vmem:[#allocation15 + $0x18] sm:$0xf]
    %v2300 = vld [vmem:[#allocation15 + $0x1c] sm:$0xf]
    %v2301 = vld [vmem:[%s14] sm:$0x1]
    %v2303 = vperm.slane %v2301, 0
    %v2313 = vunpack.c.l.b16 %v2293
    %v2314 = vunpack.c.l.b16 %v2294
    %v2315 = vunpack.c.l.b16 %v2295
    %v2316 = vunpack.c.l.b16 %v2296
    %v2317 = vunpack.c.l.b16 %v2297
    %v2318 = vunpack.c.l.b16 %v2298
    %v2319 = vunpack.c.l.b16 %v2299
    %v2320 = vunpack.c.l.b16 %v2300
    %v2321 = vpack.c.b16 %v2314, %v2313
    %v2322 = vpack.c.b16 %v2316, %v2315
    %v2323 = vpack.c.b16 %v2318, %v2317
    %v2324 = vpack.c.b16 %v2320, %v2319
    %v2330 = vsel %vm322, %v2292, 0
    %2332 = vmatpush.bf16.msra.mxu0 0
    %2333 = vmatpush.bf16.msra.mxu0 0
    %2334 = vmatpush.bf16.msra.mxu0 0
    %2335 = vmatpush.bf16.msra.mxu0 0
    %2336 = vmatpush.bf16.msra.mxu0 %v2324
    %2337 = vmatpush.bf16.msra.mxu0 %v2323
    %2338 = vmatpush.bf16.msra.mxu0 %v2322
    %2339 = vmatpush.bf16.msra.mxu0 %v2321
    %2340 = vmatmul.bf16.gmra.mxu0 %v2330
    %v2341 = vpop.f32.mrf.mxu0
    %v2342 = vadd.f32 %v2303, %v2341
    %v2343 = vpop.f32.mrf.mxu0
    %2344 = vdwg.mxu0
    %v2345 = vmax.f32 %v2342, 0.0
    %v2346 = vpack.c.bf16 %v2345, %v2345
    %v2347 = vld [vmem:[#allocation16] sm:$0xf]
    %v2348 = vld [vmem:[#allocation16 + $0x4] sm:$0xf]
    %v2349 = vld [vmem:[#allocation16 + $0x8] sm:$0xf]
    %v2350 = vld [vmem:[#allocation16 + $0xc] sm:$0xf]
    %v2351 = vld [vmem:[#allocation16 + $0x10] sm:$0xf]
    %v2352 = vld [vmem:[#allocation16 + $0x14] sm:$0xf]
    %v2353 = vld [vmem:[#allocation16 + $0x18] sm:$0xf]
    %v2354 = vld [vmem:[#allocation16 + $0x1c] sm:$0xf]
    %v2355 = vld [vmem:[%s16] sm:$0x1]
    %v2357 = vperm.slane %v2355, 0
    %v2367 = vunpack.c.l.b16 %v2347
    %v2368 = vunpack.c.l.b16 %v2348
    %v2369 = vunpack.c.l.b16 %v2349
    %v2370 = vunpack.c.l.b16 %v2350
    %v2371 = vunpack.c.l.b16 %v2351
    %v2372 = vunpack.c.l.b16 %v2352
    %v2373 = vunpack.c.l.b16 %v2353
    %v2374 = vunpack.c.l.b16 %v2354
    %v2375 = vpack.c.b16 %v2368, %v2367
    %v2376 = vpack.c.b16 %v2370, %v2369
    %v2377 = vpack.c.b16 %v2372, %v2371
    %v2378 = vpack.c.b16 %v2374, %v2373
    %v2384 = vsel %vm322, %v2346, 0
    %2386 = vmatpush.bf16.msra.mxu0 0
    %2387 = vmatpush.bf16.msra.mxu0 0
    %2388 = vmatpush.bf16.msra.mxu0 0
    %2389 = vmatpush.bf16.msra.mxu0 0
    %2390 = vmatpush.bf16.msra.mxu0 %v2378
    %2391 = vmatpush.bf16.msra.mxu0 %v2377
    %2392 = vmatpush.bf16.msra.mxu0 %v2376
    %2393 = vmatpush.bf16.msra.mxu0 %v2375
    %2394 = vmatmul.bf16.gmra.mxu0 %v2384
    %v2395 = vpop.f32.mrf.mxu0
    %v2396 = vadd.f32 %v2357, %v2395
    %v2397 = vpop.f32.mrf.mxu0
    %2398 = vdwg.mxu0
    %v2399 = vmax.f32 %v2396, 0.0
    %v2400 = vpack.c.bf16 %v2399, %v2399
    %v2401 = vld [vmem:[%s17] sm:$0xf]
    %v2402 = vld [vmem:[%s17 + $0x4] sm:$0xf]
    %v2403 = vld [vmem:[%s17 + $0x8] sm:$0xf]
    %v2404 = vld [vmem:[%s17 + $0xc] sm:$0xf]
    %v2405 = vld [vmem:[%s17 + $0x10] sm:$0xf]
    %v2406 = vld [vmem:[%s17 + $0x14] sm:$0xf]
    %v2407 = vld [vmem:[%s17 + $0x18] sm:$0xf]
    %v2408 = vld [vmem:[%s17 + $0x1c] sm:$0xf]
    %v2409 = vld [vmem:[#allocation4] sm:$0x1]
    %v2411 = vperm.slane %v2409, 0
    %v2421 = vunpack.c.l.b16 %v2401
    %v2422 = vunpack.c.l.b16 %v2402
    %v2423 = vunpack.c.l.b16 %v2403
    %v2424 = vunpack.c.l.b16 %v2404
    %v2425 = vunpack.c.l.b16 %v2405
    %v2426 = vunpack.c.l.b16 %v2406
    %v2427 = vunpack.c.l.b16 %v2407
    %v2428 = vunpack.c.l.b16 %v2408
    %v2429 = vpack.c.b16 %v2422, %v2421
    %v2430 = vpack.c.b16 %v2424, %v2423
    %v2431 = vpack.c.b16 %v2426, %v2425
    %v2432 = vpack.c.b16 %v2428, %v2427
    %v2438 = vsel %vm322, %v2400, 0
    %2440 = vmatpush.bf16.msra.mxu0 0
    %2441 = vmatpush.bf16.msra.mxu0 0
    %2442 = vmatpush.bf16.msra.mxu0 0
    %2443 = vmatpush.bf16.msra.mxu0 0
    %2444 = vmatpush.bf16.msra.mxu0 %v2432
    %2445 = vmatpush.bf16.msra.mxu0 %v2431
    %2446 = vmatpush.bf16.msra.mxu0 %v2430
    %2447 = vmatpush.bf16.msra.mxu0 %v2429
    %2448 = vmatmul.bf16.gmra.mxu0 %v2438
    %v2449 = vpop.f32.mrf.mxu0
    %v2450 = vadd.f32 %v2411, %v2449
    %v2451 = vpop.f32.mrf.mxu0
    %2452 = vdwg.mxu0
    %vm2453 = vcmask 1024
    %2454 = vst.msk [vmem:[%s19] sm:$0x3] %vm2453, %v2450
    // Predicated region
    $region110: #{forward_pallas.1} parent=1 // pred_check
      _
    $region111: #{forward_pallas.1} parent=1 // pred_check_branch
      %2456 = sbr.rel (0) target = $region113
    $region112: #{forward_pallas.1} parent=1 // pred_region
      _
    $region113: #{forward_pallas.1} parent=1 // pred_fallthru
      _
    // Predicated region
    $region114: #{forward_pallas.1} parent=1 // pred_check
      _
    $region115: #{forward_pallas.1} parent=1 // pred_check_branch
      %2458 = sbr.rel (0) target = $region117
    $region116: #{forward_pallas.1} parent=1 // pred_region
      _
    $region117: #{forward_pallas.1} parent=1 // pred_fallthru
      _
    %2459 = vsyncpa [#allocation6], 1
    %2460 = vsyncpa [#allocation8], 1
    %2461 = vsyncpa [#allocation11], 1
    %2462 = vsyncpa [#allocation14], 1
    %2463 = vsyncpa [#allocation17], 1

</llo_original>
